<compile_context>
chip_gen: v7x
topology: tpu7x:2x2x1
jax: 0.10.0
libtpu: 0.0.40
codegen_flags: <defaults>
</compile_context>

<pallas_src>
import jax
import jax.numpy as jnp
from jax.experimental import pallas as pl
from jax.experimental.pallas import tpu as pltpu

H = 32            # para['encoder_attention_size']
N_HEADS = 2
D_HEAD = H // N_HEADS
S_KEYS = 56       # tokens in hmae (matches c_mask[:, :56])
A_TOK = 8         # agent tokens in ar
N_COORD = 64      # candidate coordinates
B = 2

# ---- packed-slab indices -----------------------------------------------------
# w_in  : (10, H, D_HEAD)  [q_h0, q_h1, k_h0, k_h1, v_h0, v_h1, k2_h0, k2_h1, v2_h0, v2_h1]
# b_in  : (10, D_HEAD)     matching per-head biases
# w_out : (4, D_HEAD, H)   [wo_h0, wo_h1, wo2_h0, wo2_h1]
# vecs  : (10, H)          [bo, g1, be1, bo2, bm, gm, bem, wfc_a, wfc_b, bfc]
IW_Q, IW_K, IW_V, IW_K2, IW_V2 = 0, 2, 4, 6, 8
IW_O, IW_O2 = 0, 2
V_BO, V_G1, V_BE1, V_BO2, V_BM, V_GM, V_BEM, V_WFA, V_WFB, V_BFC = range(10)


def regularize_decoder_kernel(hmae_ref, ar_ref, mask_ref, q2h_ref,
                              w_in_ref, b_in_ref, w_out_ref, wm_ref, vecs_ref,
                              out_ref):
    f32 = jnp.float32
    bf16 = jnp.bfloat16

    def mm(a, b):        # a @ b  (contract last of a with first of b), bf16 in, f32 acc
        return jax.lax.dot_general(a.astype(bf16), b.astype(bf16),
                                   (((1,), (0,)), ((), ())),
                                   preferred_element_type=f32)

    def mm_t(a, b):      # a @ b.T (contract last dims of both) -- no transpose materialized
        return jax.lax.dot_general(a.astype(bf16), b.astype(bf16),
                                   (((1,), (1,)), ((), ())),
                                   preferred_element_type=f32)

    def layernorm(x, gamma, beta, eps=1e-5):
        mu = jnp.mean(x, axis=-1, keepdims=True)
        var = jnp.mean(jnp.square(x - mu), axis=-1, keepdims=True)
        return (x - mu) * jax.lax.rsqrt(var + eps) * gamma + beta

    x = hmae_ref[0]          # (S, H)  f32
    ar = ar_ref[0]           # (A, H)  f32
    mask_add = mask_ref[0]   # (1, S)  additive key mask (0 / -1e9), precomputed in wrapper
    scale = 1.0 / (D_HEAD ** 0.5)

    # ---- map2ego: 2-head cross attention (query = map/ego tokens, key/value = agents) ----
    # NOTE: the original module passes no agent mask to map2ego, so none is applied here.
    attn = None
    for h in range(N_HEADS):   # unrolled, per-head weights pre-split in wrapper (no lane slicing)
        qh = mm(x, w_in_ref[IW_Q + h]) + b_in_ref[IW_Q + h:IW_Q + h + 1, :]     # (S, 16)
        kh = mm(ar, w_in_ref[IW_K + h]) + b_in_ref[IW_K + h:IW_K + h + 1, :]    # (A, 16)
        vh = mm(ar, w_in_ref[IW_V + h]) + b_in_ref[IW_V + h:IW_V + h + 1, :]    # (A, 16)
        s = mm_t(qh, kh) * scale                                                # (S, A)
        p = jax.nn.softmax(s, axis=-1)
        oh = mm(p, vh)                                                          # (S, 16)
        c = mm(oh, w_out_ref[IW_O + h])                                         # (S, H)
        attn = c if attn is None else attn + c
    h1 = attn + vecs_ref[V_BO:V_BO + 1, :]
    h1 = jnp.maximum(h1, 0.0)                                   # self.act (ReLU)
    h1 = h1 + x                                                 # residual
    h1 = layernorm(h1, vecs_ref[V_G1:V_G1 + 1, :], vecs_ref[V_BE1:V_BE1 + 1, :])  # self.lnorm

    # ---- heatmapdecoder: coordinate cross attention (q2 precomputed per head, keys masked) ----
    attn2 = None
    for h in range(N_HEADS):
        k2 = mm(h1, w_in_ref[IW_K2 + h]) + b_in_ref[IW_K2 + h:IW_K2 + h + 1, :]  # (S, 16)
        v2 = mm(h1, w_in_ref[IW_V2 + h]) + b_in_ref[IW_V2 + h:IW_V2 + h + 1, :]  # (S, 16)
        s2 = mm_t(q2h_ref[h], k2) * scale + mask_add                             # (Nc, S)
        p2 = jax.nn.softmax(s2, axis=-1)
        o2 = mm(p2, v2)                                                          # (Nc, 16)
        c2 = mm(o2, w_out_ref[IW_O2 + h])                                        # (Nc, H)
        attn2 = c2 if attn2 is None else attn2 + c2
    h2 = attn2 + vecs_ref[V_BO2:V_BO2 + 1, :]                                    # (Nc, H)

    # ---- convert: DecoderResCat(H, H, 1); wfc split in wrapper so no [h2, m] lane-concat ----
    m = mm(h2, wm_ref[...]) + vecs_ref[V_BM:V_BM + 1, :]
    m = layernorm(m, vecs_ref[V_GM:V_GM + 1, :], vecs_ref[V_BEM:V_BEM + 1, :])
    m = jnp.maximum(m, 0.0)
    wfa = vecs_ref[V_WFA:V_WFA + 1, :]                   # (1, H)  fc weight, h2 half
    wfb = vecs_ref[V_WFB:V_WFB + 1, :]                   # (1, H)  fc weight, m half
    bfc = vecs_ref[V_BFC:V_BFC + 1, 0:1]                 # (1, 1)  (cancels in log-softmax; kept)
    logits = mm_t(wfa, h2) + mm_t(wfb, m) + bfc          # (1, Nc)  lane-dense row

    # ---- prob_mode == 'nll': LogSoftmax over candidates ----
    mx = jnp.max(logits, axis=-1, keepdims=True)
    lse = jnp.log(jnp.sum(jnp.exp(logits - mx), axis=-1, keepdims=True)) + mx
    out_ref[0] = logits - lse                            # single (1, Nc) store


def regularize_decoder(hmae, ar, coordinates, c_mask, masker, params):
    # TODO(synk): drivable=True branch (masker clamp of coordinates) not implemented (drivable=False).
    del masker
    f32, bf16 = jnp.float32, jnp.bfloat16
    bn, s, hid = hmae.shape
    a_tok = ar.shape[1]
    nc = coordinates.shape[0]

    # ---- batch-invariant precompute: coordinate embedding -> q2 query, split head-major ----
    ce = coordinates.astype(f32) @ params["wce"] + params["bce"]          # (Nc, H)
    q2 = ce @ params["wq2"] + params["bq2"]                               # (Nc, H)
    q2h = jnp.stack([q2[:, :D_HEAD], q2[:, D_HEAD:]], axis=0).astype(bf16)  # (2, Nc, 16)

    # ---- additive key mask (hoisted out of the kernel) ----
    cm = c_mask[:, :s].astype(f32)                                        # module slices [:, :56]
    mask_add = jnp.where(cm > 0.0, 0.0, -1e9).reshape(bn, 1, s)

    # ---- pack parameters into a few slabs (per-head pre-split; no in-kernel lane slicing) ----
    def heads_in(w):   # (H, H) -> two (H, D_HEAD) column halves
        return [w[:, :D_HEAD], w[:, D_HEAD:]]

    def heads_b(b):    # (1, H) -> two (D_HEAD,) halves
        return [b[0, :D_HEAD], b[0, D_HEAD:]]

    w_in = jnp.stack(heads_in(params["wq"]) + heads_in(params["wk"]) + heads_in(params["wv"])
                     + heads_in(params["wk2"]) + heads_in(params["wv2"]), axis=0).astype(bf16)
    b_in = jnp.stack(heads_b(params["bq"]) + heads_b(params["bk"]) + heads_b(params["bv"])
                     + heads_b(params["bk2"]) + heads_b(params["bv2"]), axis=0).astype(f32)
    w_out = jnp.stack([params["wo"][:D_HEAD], params["wo"][D_HEAD:],
                       params["wo2"][:D_HEAD], params["wo2"][D_HEAD:]], axis=0).astype(bf16)
    wm = params["wm"].astype(bf16)
    bfc_row = jnp.broadcast_to(params["bfc"].reshape(1, 1), (1, hid))
    vecs = jnp.concatenate([params["bo"], params["g1"], params["be1"], params["bo2"],
                            params["bm"], params["gm"], params["bem"],
                            params["wfc"][:hid, 0].reshape(1, hid),
                            params["wfc"][hid:, 0].reshape(1, hid),
                            bfc_row], axis=0).astype(f32)                  # (10, H)

    data = [hmae.astype(f32), ar.astype(f32), mask_add, q2h, w_in, b_in, w_out, wm, vecs]
    in_specs = [
        pl.BlockSpec((1, s, hid), lambda b: (b, 0, 0)),          # hmae   (per batch)
        pl.BlockSpec((1, a_tok, hid), lambda b: (b, 0, 0)),      # ar     (per batch)
        pl.BlockSpec((1, 1, s), lambda b: (b, 0, 0)),            # mask   (per batch)
        pl.BlockSpec((N_HEADS, nc, D_HEAD), lambda b: (0, 0, 0)),  # q2h  (grid-invariant)
        pl.BlockSpec((10, hid, D_HEAD), lambda b: (0, 0, 0)),    # w_in
        pl.BlockSpec((10, D_HEAD), lambda b: (0, 0)),            # b_in
        pl.BlockSpec((4, D_HEAD, hid), lambda b: (0, 0, 0)),     # w_out
        pl.BlockSpec((hid, hid), lambda b: (0, 0)),              # wm
        pl.BlockSpec((10, hid), lambda b: (0, 0)),               # vecs
    ]

    out = pl.pallas_call(
        regularize_decoder_kernel,
        out_shape=jax.ShapeDtypeStruct((bn, 1, nc), jnp.float32),   # candidate axis last (lane-dense)
        grid_spec=pltpu.PrefetchScalarGridSpec(
            num_scalar_prefetch=0,
            grid=(bn,),
            in_specs=in_specs,
            out_specs=pl.BlockSpec((1, 1, nc), lambda b: (b, 0, 0)),
        ),
        compiler_params=pltpu.CompilerParams(dimension_semantics=("parallel",)),
    )(*data)
    return out.reshape(bn, nc)   # .squeeze() in the PyTorch module


def init_params(key):
    def w(k, shape):
        fan_in = shape[0]
        return jax.random.normal(k, shape, jnp.float32) / jnp.sqrt(jnp.float32(fan_in))

    ks = jax.random.split(key, 12)
    z = lambda *s: jnp.zeros(s, jnp.float32)
    o = lambda *s: jnp.ones(s, jnp.float32)
    return {
        "wq": w(ks[0], (H, H)), "bq": z(1, H),
        "wk": w(ks[1], (H, H)), "bk": z(1, H),
        "wv": w(ks[2], (H, H)), "bv": z(1, H),
        "wo": w(ks[3], (H, H)), "bo": z(1, H),
        "g1": o(1, H), "be1": z(1, H),
        "wce": w(ks[4], (2, H)), "bce": z(1, H),
        "wq2": w(ks[5], (H, H)), "bq2": z(1, H),
        "wk2": w(ks[6], (H, H)), "bk2": z(1, H),
        "wv2": w(ks[7], (H, H)), "bv2": z(1, H),
        "wo2": w(ks[8], (H, H)), "bo2": z(1, H),
        "wm": w(ks[9], (H, H)), "bm": z(1, H),
        "gm": o(1, H), "bem": z(1, H),
        "wfc": w(ks[10], (2 * H, 1)), "bfc": z(1, 1),
    }


if __name__ == "__main__":
    key = jax.random.PRNGKey(0)
    kh, ka, kc, kp = jax.random.split(key, 4)
    hmae = jax.random.normal(kh, (B, S_KEYS, H), jnp.float32)
    ar = jax.random.normal(ka, (B, A_TOK, H), jnp.float32)
    coordinates = jax.random.normal(kc, (N_COORD, 2), jnp.float32)
    # c_mask longer than 56 (module slices [:, :56]); last keys invalid.
    c_mask = jnp.tile((jnp.arange(60)[None, :] < 50).astype(jnp.float32), (B, 1))
    masker = jnp.ones((B, 8, 8), jnp.float32)   # unused: drivable=False
    params = init_params(kp)

    heatmap = regularize_decoder(hmae, ar, coordinates, c_mask, masker, params)
    heatmap = jax.block_until_ready(heatmap)

    assert heatmap.shape == (B, N_COORD)
    # log-softmax sanity: rows exponentiate+sum to 1
    assert bool(jnp.all(jnp.abs(jnp.sum(jnp.exp(heatmap), axis=-1) - 1.0) < 1e-3))
    print("KERNEL_OK")
</pallas_src>

<mosaic_0001>
module attributes {stable_mosaic.version = 11 : i64} {
  func.func @regularize_decoder_kernel(%arg0: i32, %arg1: memref<1x56x32xf32, #tpu.memory_space<vmem>>, %arg2: memref<1x8x32xf32, #tpu.memory_space<vmem>>, %arg3: memref<1x1x56xf32, #tpu.memory_space<vmem>>, %arg4: memref<2x64x16xbf16, #tpu.memory_space<vmem>>, %arg5: memref<10x32x16xbf16, #tpu.memory_space<vmem>>, %arg6: memref<10x16xf32, #tpu.memory_space<vmem>>, %arg7: memref<4x16x32xbf16, #tpu.memory_space<vmem>>, %arg8: memref<32x32xbf16, #tpu.memory_space<vmem>>, %arg9: memref<10x32xf32, #tpu.memory_space<vmem>>, %arg10: memref<1x1x64xf32, #tpu.memory_space<vmem>>) attributes {dimension_semantics = [#tpu.dimension_semantics<parallel>], iteration_bounds = array<i64: 2>, scalar_prefetch = 0 : i64, scratch_operands = 0 : i64, tpu.core_type = #tpu.core_type<tc>, window_params = [{transform_indices = @transform_0, window_bounds = array<i64: 1, 56, 32>}, {transform_indices = @transform_1, window_bounds = array<i64: 1, 8, 32>}, {transform_indices = @transform_2, window_bounds = array<i64: 1, 1, 56>}, {pipeline_mode = #tpu.pipeline_mode<synchronous>, transform_indices = @transform_3, window_bounds = array<i64: 2, 64, 16>}, {pipeline_mode = #tpu.pipeline_mode<synchronous>, transform_indices = @transform_4, window_bounds = array<i64: 10, 32, 16>}, {pipeline_mode = #tpu.pipeline_mode<synchronous>, transform_indices = @transform_5, window_bounds = array<i64: 10, 16>}, {pipeline_mode = #tpu.pipeline_mode<synchronous>, transform_indices = @transform_6, window_bounds = array<i64: 4, 16, 32>}, {pipeline_mode = #tpu.pipeline_mode<synchronous>, transform_indices = @transform_7, window_bounds = array<i64: 32, 32>}, {pipeline_mode = #tpu.pipeline_mode<synchronous>, transform_indices = @transform_8, window_bounds = array<i64: 10, 32>}, {transform_indices = @transform_9, window_bounds = array<i64: 1, 1, 64>}]} {
    %c0 = arith.constant 0 : index
    %c0_0 = arith.constant 0 : index
    %c0_1 = arith.constant 0 : index
    %0 = vector.load %arg1[%c0, %c0_0, %c0_1] : memref<1x56x32xf32, #tpu.memory_space<vmem>>, vector<1x56x32xf32>
    %1 = vector.shape_cast %0 : vector<1x56x32xf32> to vector<56x32xf32>
    %c0_2 = arith.constant 0 : index
    %c0_3 = arith.constant 0 : index
    %c0_4 = arith.constant 0 : index
    %2 = vector.load %arg2[%c0_2, %c0_3, %c0_4] : memref<1x8x32xf32, #tpu.memory_space<vmem>>, vector<1x8x32xf32>
    %3 = vector.shape_cast %2 : vector<1x8x32xf32> to vector<8x32xf32>
    %c0_5 = arith.constant 0 : index
    %c0_6 = arith.constant 0 : index
    %c0_7 = arith.constant 0 : index
    %4 = vector.load %arg3[%c0_5, %c0_6, %c0_7] : memref<1x1x56xf32, #tpu.memory_space<vmem>>, vector<1x1x56xf32>
    %5 = vector.shape_cast %4 : vector<1x1x56xf32> to vector<1x56xf32>
    %c0_8 = arith.constant 0 : index
    %c0_9 = arith.constant 0 : index
    %c0_10 = arith.constant 0 : index
    %6 = vector.load %arg5[%c0_8, %c0_9, %c0_10] : memref<10x32x16xbf16, #tpu.memory_space<vmem>>, vector<1x32x16xbf16>
    %7 = vector.shape_cast %6 : vector<1x32x16xbf16> to vector<32x16xbf16>
    %8 = arith.truncf %1 : vector<56x32xf32> to vector<56x32xbf16>
    %cst = arith.constant dense<0.000000e+00> : vector<56x16xf32>
    %9 = tpu.matmul %8, %7, %cst {dimension_numbers = #tpu.dot_dimension_numbers<[1], [0], [0], [1], [0, 0, 1, 1], [], []>} : vector<56x32xbf16>, vector<32x16xbf16>, vector<56x16xf32> -> vector<56x16xf32>
    %c0_11 = arith.constant 0 : index
    %c0_12 = arith.constant 0 : index
    %10 = vector.load %arg6[%c0_11, %c0_12] : memref<10x16xf32, #tpu.memory_space<vmem>>, vector<1x16xf32>
    %11 = vector.broadcast %10 : vector<1x16xf32> to vector<56x16xf32>
    %12 = arith.addf %9, %11 : vector<56x16xf32>
    %c2 = arith.constant 2 : index
    %c0_13 = arith.constant 0 : index
    %c0_14 = arith.constant 0 : index
    %13 = vector.load %arg5[%c2, %c0_13, %c0_14] : memref<10x32x16xbf16, #tpu.memory_space<vmem>>, vector<1x32x16xbf16>
    %14 = vector.shape_cast %13 : vector<1x32x16xbf16> to vector<32x16xbf16>
    %15 = arith.truncf %3 : vector<8x32xf32> to vector<8x32xbf16>
    %cst_15 = arith.constant dense<0.000000e+00> : vector<8x16xf32>
    %16 = tpu.matmul %15, %14, %cst_15 {dimension_numbers = #tpu.dot_dimension_numbers<[1], [0], [0], [1], [0, 0, 1, 1], [], []>} : vector<8x32xbf16>, vector<32x16xbf16>, vector<8x16xf32> -> vector<8x16xf32>
    %c2_16 = arith.constant 2 : index
    %c0_17 = arith.constant 0 : index
    %17 = vector.load %arg6[%c2_16, %c0_17] : memref<10x16xf32, #tpu.memory_space<vmem>>, vector<1x16xf32>
    %18 = vector.broadcast %17 : vector<1x16xf32> to vector<8x16xf32>
    %19 = arith.addf %16, %18 : vector<8x16xf32>
    %c4 = arith.constant 4 : index
    %c0_18 = arith.constant 0 : index
    %c0_19 = arith.constant 0 : index
    %20 = vector.load %arg5[%c4, %c0_18, %c0_19] : memref<10x32x16xbf16, #tpu.memory_space<vmem>>, vector<1x32x16xbf16>
    %21 = vector.shape_cast %20 : vector<1x32x16xbf16> to vector<32x16xbf16>
    %22 = arith.truncf %3 : vector<8x32xf32> to vector<8x32xbf16>
    %cst_20 = arith.constant dense<0.000000e+00> : vector<8x16xf32>
    %23 = tpu.matmul %22, %21, %cst_20 {dimension_numbers = #tpu.dot_dimension_numbers<[1], [0], [0], [1], [0, 0, 1, 1], [], []>} : vector<8x32xbf16>, vector<32x16xbf16>, vector<8x16xf32> -> vector<8x16xf32>
    %c4_21 = arith.constant 4 : index
    %c0_22 = arith.constant 0 : index
    %24 = vector.load %arg6[%c4_21, %c0_22] : memref<10x16xf32, #tpu.memory_space<vmem>>, vector<1x16xf32>
    %25 = vector.broadcast %24 : vector<1x16xf32> to vector<8x16xf32>
    %26 = arith.addf %23, %25 : vector<8x16xf32>
    %27 = arith.truncf %12 : vector<56x16xf32> to vector<56x16xbf16>
    %28 = arith.truncf %19 : vector<8x16xf32> to vector<8x16xbf16>
    %cst_23 = arith.constant dense<0.000000e+00> : vector<56x8xf32>
    %29 = tpu.matmul %27, %28, %cst_23 {dimension_numbers = #tpu.dot_dimension_numbers<[1], [1], [0], [0], [0, 0, 1, 0], [], []>} : vector<56x16xbf16>, vector<8x16xbf16>, vector<56x8xf32> -> vector<56x8xf32>
    %cst_24 = arith.constant 2.500000e-01 : f32
    %30 = vector.broadcast %cst_24 : f32 to vector<56x8xf32>
    %31 = arith.mulf %29, %30 : vector<56x8xf32>
    %cst_25 = arith.constant dense<0xFF800000> : vector<56xf32>
    %32 = vector.multi_reduction <maximumf>, %31, %cst_25 [1] : vector<56x8xf32> to vector<56xf32>
    %cst_26 = arith.constant 0xFF800000 : f32
    %33 = vector.broadcast %cst_26 : f32 to vector<56xf32>
    %34 = arith.maximumf %33, %32 : vector<56xf32>
    %35 = vector.shape_cast %34 : vector<56xf32> to vector<56x1xf32>
    %36 = vector.broadcast %35 : vector<56x1xf32> to vector<56x8xf32>
    %37 = arith.subf %31, %36 : vector<56x8xf32>
    %38 = math.exp %37 : vector<56x8xf32>
    %cst_27 = arith.constant dense<0.000000e+00> : vector<56xf32>
    %39 = vector.multi_reduction <add>, %38, %cst_27 [1] : vector<56x8xf32> to vector<56xf32>
    %40 = vector.shape_cast %39 : vector<56xf32> to vector<56x1xf32>
    %41 = vector.broadcast %40 : vector<56x1xf32> to vector<56x8xf32>
    %42 = arith.divf %38, %41 : vector<56x8xf32>
    %43 = arith.truncf %42 : vector<56x8xf32> to vector<56x8xbf16>
    %44 = arith.truncf %26 : vector<8x16xf32> to vector<8x16xbf16>
    %cst_28 = arith.constant dense<0.000000e+00> : vector<56x16xf32>
    %45 = tpu.matmul %43, %44, %cst_28 {dimension_numbers = #tpu.dot_dimension_numbers<[1], [0], [0], [1], [0, 0, 1, 1], [], []>} : vector<56x8xbf16>, vector<8x16xbf16>, vector<56x16xf32> -> vector<56x16xf32>
    %c0_29 = arith.constant 0 : index
    %c0_30 = arith.constant 0 : index
    %c0_31 = arith.constant 0 : index
    %46 = vector.load %arg7[%c0_29, %c0_30, %c0_31] : memref<4x16x32xbf16, #tpu.memory_space<vmem>>, vector<1x16x32xbf16>
    %47 = vector.shape_cast %46 : vector<1x16x32xbf16> to vector<16x32xbf16>
    %48 = arith.truncf %45 : vector<56x16xf32> to vector<56x16xbf16>
    %cst_32 = arith.constant dense<0.000000e+00> : vector<56x32xf32>
    %49 = tpu.matmul %48, %47, %cst_32 {dimension_numbers = #tpu.dot_dimension_numbers<[1], [0], [0], [1], [0, 0, 1, 1], [], []>} : vector<56x16xbf16>, vector<16x32xbf16>, vector<56x32xf32> -> vector<56x32xf32>
    %c1 = arith.constant 1 : index
    %c0_33 = arith.constant 0 : index
    %c0_34 = arith.constant 0 : index
    %50 = vector.load %arg5[%c1, %c0_33, %c0_34] : memref<10x32x16xbf16, #tpu.memory_space<vmem>>, vector<1x32x16xbf16>
    %51 = vector.shape_cast %50 : vector<1x32x16xbf16> to vector<32x16xbf16>
    %52 = arith.truncf %1 : vector<56x32xf32> to vector<56x32xbf16>
    %cst_35 = arith.constant dense<0.000000e+00> : vector<56x16xf32>
    %53 = tpu.matmul %52, %51, %cst_35 {dimension_numbers = #tpu.dot_dimension_numbers<[1], [0], [0], [1], [0, 0, 1, 1], [], []>} : vector<56x32xbf16>, vector<32x16xbf16>, vector<56x16xf32> -> vector<56x16xf32>
    %c1_36 = arith.constant 1 : index
    %c0_37 = arith.constant 0 : index
    %54 = vector.load %arg6[%c1_36, %c0_37] : memref<10x16xf32, #tpu.memory_space<vmem>>, vector<1x16xf32>
    %55 = vector.broadcast %54 : vector<1x16xf32> to vector<56x16xf32>
    %56 = arith.addf %53, %55 : vector<56x16xf32>
    %c3 = arith.constant 3 : index
    %c0_38 = arith.constant 0 : index
    %c0_39 = arith.constant 0 : index
    %57 = vector.load %arg5[%c3, %c0_38, %c0_39] : memref<10x32x16xbf16, #tpu.memory_space<vmem>>, vector<1x32x16xbf16>
    %58 = vector.shape_cast %57 : vector<1x32x16xbf16> to vector<32x16xbf16>
    %59 = arith.truncf %3 : vector<8x32xf32> to vector<8x32xbf16>
    %cst_40 = arith.constant dense<0.000000e+00> : vector<8x16xf32>
    %60 = tpu.matmul %59, %58, %cst_40 {dimension_numbers = #tpu.dot_dimension_numbers<[1], [0], [0], [1], [0, 0, 1, 1], [], []>} : vector<8x32xbf16>, vector<32x16xbf16>, vector<8x16xf32> -> vector<8x16xf32>
    %c3_41 = arith.constant 3 : index
    %c0_42 = arith.constant 0 : index
    %61 = vector.load %arg6[%c3_41, %c0_42] : memref<10x16xf32, #tpu.memory_space<vmem>>, vector<1x16xf32>
    %62 = vector.broadcast %61 : vector<1x16xf32> to vector<8x16xf32>
    %63 = arith.addf %60, %62 : vector<8x16xf32>
    %c5 = arith.constant 5 : index
    %c0_43 = arith.constant 0 : index
    %c0_44 = arith.constant 0 : index
    %64 = vector.load %arg5[%c5, %c0_43, %c0_44] : memref<10x32x16xbf16, #tpu.memory_space<vmem>>, vector<1x32x16xbf16>
    %65 = vector.shape_cast %64 : vector<1x32x16xbf16> to vector<32x16xbf16>
    %66 = arith.truncf %3 : vector<8x32xf32> to vector<8x32xbf16>
    %cst_45 = arith.constant dense<0.000000e+00> : vector<8x16xf32>
    %67 = tpu.matmul %66, %65, %cst_45 {dimension_numbers = #tpu.dot_dimension_numbers<[1], [0], [0], [1], [0, 0, 1, 1], [], []>} : vector<8x32xbf16>, vector<32x16xbf16>, vector<8x16xf32> -> vector<8x16xf32>
    %c5_46 = arith.constant 5 : index
    %c0_47 = arith.constant 0 : index
    %68 = vector.load %arg6[%c5_46, %c0_47] : memref<10x16xf32, #tpu.memory_space<vmem>>, vector<1x16xf32>
    %69 = vector.broadcast %68 : vector<1x16xf32> to vector<8x16xf32>
    %70 = arith.addf %67, %69 : vector<8x16xf32>
    %71 = arith.truncf %56 : vector<56x16xf32> to vector<56x16xbf16>
    %72 = arith.truncf %63 : vector<8x16xf32> to vector<8x16xbf16>
    %cst_48 = arith.constant dense<0.000000e+00> : vector<56x8xf32>
    %73 = tpu.matmul %71, %72, %cst_48 {dimension_numbers = #tpu.dot_dimension_numbers<[1], [1], [0], [0], [0, 0, 1, 0], [], []>} : vector<56x16xbf16>, vector<8x16xbf16>, vector<56x8xf32> -> vector<56x8xf32>
    %cst_49 = arith.constant 2.500000e-01 : f32
    %74 = vector.broadcast %cst_49 : f32 to vector<56x8xf32>
    %75 = arith.mulf %73, %74 : vector<56x8xf32>
    %cst_50 = arith.constant dense<0xFF800000> : vector<56xf32>
    %76 = vector.multi_reduction <maximumf>, %75, %cst_50 [1] : vector<56x8xf32> to vector<56xf32>
    %cst_51 = arith.constant 0xFF800000 : f32
    %77 = vector.broadcast %cst_51 : f32 to vector<56xf32>
    %78 = arith.maximumf %77, %76 : vector<56xf32>
    %79 = vector.shape_cast %78 : vector<56xf32> to vector<56x1xf32>
    %80 = vector.broadcast %79 : vector<56x1xf32> to vector<56x8xf32>
    %81 = arith.subf %75, %80 : vector<56x8xf32>
    %82 = math.exp %81 : vector<56x8xf32>
    %cst_52 = arith.constant dense<0.000000e+00> : vector<56xf32>
    %83 = vector.multi_reduction <add>, %82, %cst_52 [1] : vector<56x8xf32> to vector<56xf32>
    %84 = vector.shape_cast %83 : vector<56xf32> to vector<56x1xf32>
    %85 = vector.broadcast %84 : vector<56x1xf32> to vector<56x8xf32>
    %86 = arith.divf %82, %85 : vector<56x8xf32>
    %87 = arith.truncf %86 : vector<56x8xf32> to vector<56x8xbf16>
    %88 = arith.truncf %70 : vector<8x16xf32> to vector<8x16xbf16>
    %cst_53 = arith.constant dense<0.000000e+00> : vector<56x16xf32>
    %89 = tpu.matmul %87, %88, %cst_53 {dimension_numbers = #tpu.dot_dimension_numbers<[1], [0], [0], [1], [0, 0, 1, 1], [], []>} : vector<56x8xbf16>, vector<8x16xbf16>, vector<56x16xf32> -> vector<56x16xf32>
    %c1_54 = arith.constant 1 : index
    %c0_55 = arith.constant 0 : index
    %c0_56 = arith.constant 0 : index
    %90 = vector.load %arg7[%c1_54, %c0_55, %c0_56] : memref<4x16x32xbf16, #tpu.memory_space<vmem>>, vector<1x16x32xbf16>
    %91 = vector.shape_cast %90 : vector<1x16x32xbf16> to vector<16x32xbf16>
    %92 = arith.truncf %89 : vector<56x16xf32> to vector<56x16xbf16>
    %cst_57 = arith.constant dense<0.000000e+00> : vector<56x32xf32>
    %93 = tpu.matmul %92, %91, %cst_57 {dimension_numbers = #tpu.dot_dimension_numbers<[1], [0], [0], [1], [0, 0, 1, 1], [], []>} : vector<56x16xbf16>, vector<16x32xbf16>, vector<56x32xf32> -> vector<56x32xf32>
    %94 = arith.addf %49, %93 : vector<56x32xf32>
    %c0_58 = arith.constant 0 : index
    %c0_59 = arith.constant 0 : index
    %95 = vector.load %arg9[%c0_58, %c0_59] : memref<10x32xf32, #tpu.memory_space<vmem>>, vector<1x32xf32>
    %96 = vector.broadcast %95 : vector<1x32xf32> to vector<56x32xf32>
    %97 = arith.addf %94, %96 : vector<56x32xf32>
    %cst_60 = arith.constant 0.000000e+00 : f32
    %98 = vector.broadcast %cst_60 : f32 to vector<56x32xf32>
    %99 = arith.maximumf %97, %98 : vector<56x32xf32>
    %100 = arith.addf %99, %1 : vector<56x32xf32>
    %c1_61 = arith.constant 1 : index
    %c0_62 = arith.constant 0 : index
    %101 = vector.load %arg9[%c1_61, %c0_62] : memref<10x32xf32, #tpu.memory_space<vmem>>, vector<1x32xf32>
    %c2_63 = arith.constant 2 : index
    %c0_64 = arith.constant 0 : index
    %102 = vector.load %arg9[%c2_63, %c0_64] : memref<10x32xf32, #tpu.memory_space<vmem>>, vector<1x32xf32>
    %cst_65 = arith.constant dense<0.000000e+00> : vector<56xf32>
    %103 = vector.multi_reduction <add>, %100, %cst_65 [1] : vector<56x32xf32> to vector<56xf32>
    %104 = vector.shape_cast %103 : vector<56xf32> to vector<56x1xf32>
    %cst_66 = arith.constant 3.200000e+01 : f32
    %105 = vector.broadcast %cst_66 : f32 to vector<56x1xf32>
    %106 = arith.divf %104, %105 : vector<56x1xf32>
    %107 = vector.broadcast %106 : vector<56x1xf32> to vector<56x32xf32>
    %108 = arith.subf %100, %107 : vector<56x32xf32>
    %109 = arith.mulf %108, %108 : vector<56x32xf32>
    %cst_67 = arith.constant dense<0.000000e+00> : vector<56xf32>
    %110 = vector.multi_reduction <add>, %109, %cst_67 [1] : vector<56x32xf32> to vector<56xf32>
    %111 = vector.shape_cast %110 : vector<56xf32> to vector<56x1xf32>
    %cst_68 = arith.constant 3.200000e+01 : f32
    %112 = vector.broadcast %cst_68 : f32 to vector<56x1xf32>
    %113 = arith.divf %111, %112 : vector<56x1xf32>
    %114 = vector.broadcast %106 : vector<56x1xf32> to vector<56x32xf32>
    %115 = arith.subf %100, %114 : vector<56x32xf32>
    %cst_69 = arith.constant 9.99999974E-6 : f32
    %116 = vector.broadcast %cst_69 : f32 to vector<56x1xf32>
    %117 = arith.addf %113, %116 : vector<56x1xf32>
    %118 = math.rsqrt %117 : vector<56x1xf32>
    %119 = vector.broadcast %118 : vector<56x1xf32> to vector<56x32xf32>
    %120 = arith.mulf %115, %119 : vector<56x32xf32>
    %121 = vector.broadcast %101 : vector<1x32xf32> to vector<56x32xf32>
    %122 = arith.mulf %120, %121 : vector<56x32xf32>
    %123 = vector.broadcast %102 : vector<1x32xf32> to vector<56x32xf32>
    %124 = arith.addf %122, %123 : vector<56x32xf32>
    %c6 = arith.constant 6 : index
    %c0_70 = arith.constant 0 : index
    %c0_71 = arith.constant 0 : index
    %125 = vector.load %arg5[%c6, %c0_70, %c0_71] : memref<10x32x16xbf16, #tpu.memory_space<vmem>>, vector<1x32x16xbf16>
    %126 = vector.shape_cast %125 : vector<1x32x16xbf16> to vector<32x16xbf16>
    %127 = arith.truncf %124 : vector<56x32xf32> to vector<56x32xbf16>
    %cst_72 = arith.constant dense<0.000000e+00> : vector<56x16xf32>
    %128 = tpu.matmul %127, %126, %cst_72 {dimension_numbers = #tpu.dot_dimension_numbers<[1], [0], [0], [1], [0, 0, 1, 1], [], []>} : vector<56x32xbf16>, vector<32x16xbf16>, vector<56x16xf32> -> vector<56x16xf32>
    %c6_73 = arith.constant 6 : index
    %c0_74 = arith.constant 0 : index
    %129 = vector.load %arg6[%c6_73, %c0_74] : memref<10x16xf32, #tpu.memory_space<vmem>>, vector<1x16xf32>
    %130 = vector.broadcast %129 : vector<1x16xf32> to vector<56x16xf32>
    %131 = arith.addf %128, %130 : vector<56x16xf32>
    %c8 = arith.constant 8 : index
    %c0_75 = arith.constant 0 : index
    %c0_76 = arith.constant 0 : index
    %132 = vector.load %arg5[%c8, %c0_75, %c0_76] : memref<10x32x16xbf16, #tpu.memory_space<vmem>>, vector<1x32x16xbf16>
    %133 = vector.shape_cast %132 : vector<1x32x16xbf16> to vector<32x16xbf16>
    %134 = arith.truncf %124 : vector<56x32xf32> to vector<56x32xbf16>
    %cst_77 = arith.constant dense<0.000000e+00> : vector<56x16xf32>
    %135 = tpu.matmul %134, %133, %cst_77 {dimension_numbers = #tpu.dot_dimension_numbers<[1], [0], [0], [1], [0, 0, 1, 1], [], []>} : vector<56x32xbf16>, vector<32x16xbf16>, vector<56x16xf32> -> vector<56x16xf32>
    %c8_78 = arith.constant 8 : index
    %c0_79 = arith.constant 0 : index
    %136 = vector.load %arg6[%c8_78, %c0_79] : memref<10x16xf32, #tpu.memory_space<vmem>>, vector<1x16xf32>
    %137 = vector.broadcast %136 : vector<1x16xf32> to vector<56x16xf32>
    %138 = arith.addf %135, %137 : vector<56x16xf32>
    %c0_80 = arith.constant 0 : index
    %c0_81 = arith.constant 0 : index
    %c0_82 = arith.constant 0 : index
    %139 = vector.load %arg4[%c0_80, %c0_81, %c0_82] : memref<2x64x16xbf16, #tpu.memory_space<vmem>>, vector<1x64x16xbf16>
    %140 = vector.shape_cast %139 : vector<1x64x16xbf16> to vector<64x16xbf16>
    %141 = arith.truncf %131 : vector<56x16xf32> to vector<56x16xbf16>
    %cst_83 = arith.constant dense<0.000000e+00> : vector<64x56xf32>
    %142 = tpu.matmul %140, %141, %cst_83 {dimension_numbers = #tpu.dot_dimension_numbers<[1], [1], [0], [0], [0, 0, 1, 0], [], []>} : vector<64x16xbf16>, vector<56x16xbf16>, vector<64x56xf32> -> vector<64x56xf32>
    %cst_84 = arith.constant 2.500000e-01 : f32
    %143 = vector.broadcast %cst_84 : f32 to vector<64x56xf32>
    %144 = arith.mulf %142, %143 : vector<64x56xf32>
    %145 = vector.broadcast %5 : vector<1x56xf32> to vector<64x56xf32>
    %146 = arith.addf %144, %145 : vector<64x56xf32>
    %cst_85 = arith.constant dense<0xFF800000> : vector<64xf32>
    %147 = vector.multi_reduction <maximumf>, %146, %cst_85 [1] : vector<64x56xf32> to vector<64xf32>
    %cst_86 = arith.constant 0xFF800000 : f32
    %148 = vector.broadcast %cst_86 : f32 to vector<64xf32>
    %149 = arith.maximumf %148, %147 : vector<64xf32>
    %150 = vector.shape_cast %149 : vector<64xf32> to vector<64x1xf32>
    %151 = vector.broadcast %150 : vector<64x1xf32> to vector<64x56xf32>
    %152 = arith.subf %146, %151 : vector<64x56xf32>
    %153 = math.exp %152 : vector<64x56xf32>
    %cst_87 = arith.constant dense<0.000000e+00> : vector<64xf32>
    %154 = vector.multi_reduction <add>, %153, %cst_87 [1] : vector<64x56xf32> to vector<64xf32>
    %155 = vector.shape_cast %154 : vector<64xf32> to vector<64x1xf32>
    %156 = vector.broadcast %155 : vector<64x1xf32> to vector<64x56xf32>
    %157 = arith.divf %153, %156 : vector<64x56xf32>
    %158 = arith.truncf %157 : vector<64x56xf32> to vector<64x56xbf16>
    %159 = arith.truncf %138 : vector<56x16xf32> to vector<56x16xbf16>
    %cst_88 = arith.constant dense<0.000000e+00> : vector<64x16xf32>
    %160 = tpu.matmul %158, %159, %cst_88 {dimension_numbers = #tpu.dot_dimension_numbers<[1], [0], [0], [1], [0, 0, 1, 1], [], []>} : vector<64x56xbf16>, vector<56x16xbf16>, vector<64x16xf32> -> vector<64x16xf32>
    %c2_89 = arith.constant 2 : index
    %c0_90 = arith.constant 0 : index
    %c0_91 = arith.constant 0 : index
    %161 = vector.load %arg7[%c2_89, %c0_90, %c0_91] : memref<4x16x32xbf16, #tpu.memory_space<vmem>>, vector<1x16x32xbf16>
    %162 = vector.shape_cast %161 : vector<1x16x32xbf16> to vector<16x32xbf16>
    %163 = arith.truncf %160 : vector<64x16xf32> to vector<64x16xbf16>
    %cst_92 = arith.constant dense<0.000000e+00> : vector<64x32xf32>
    %164 = tpu.matmul %163, %162, %cst_92 {dimension_numbers = #tpu.dot_dimension_numbers<[1], [0], [0], [1], [0, 0, 1, 1], [], []>} : vector<64x16xbf16>, vector<16x32xbf16>, vector<64x32xf32> -> vector<64x32xf32>
    %c7 = arith.constant 7 : index
    %c0_93 = arith.constant 0 : index
    %c0_94 = arith.constant 0 : index
    %165 = vector.load %arg5[%c7, %c0_93, %c0_94] : memref<10x32x16xbf16, #tpu.memory_space<vmem>>, vector<1x32x16xbf16>
    %166 = vector.shape_cast %165 : vector<1x32x16xbf16> to vector<32x16xbf16>
    %167 = arith.truncf %124 : vector<56x32xf32> to vector<56x32xbf16>
    %cst_95 = arith.constant dense<0.000000e+00> : vector<56x16xf32>
    %168 = tpu.matmul %167, %166, %cst_95 {dimension_numbers = #tpu.dot_dimension_numbers<[1], [0], [0], [1], [0, 0, 1, 1], [], []>} : vector<56x32xbf16>, vector<32x16xbf16>, vector<56x16xf32> -> vector<56x16xf32>
    %c7_96 = arith.constant 7 : index
    %c0_97 = arith.constant 0 : index
    %169 = vector.load %arg6[%c7_96, %c0_97] : memref<10x16xf32, #tpu.memory_space<vmem>>, vector<1x16xf32>
    %170 = vector.broadcast %169 : vector<1x16xf32> to vector<56x16xf32>
    %171 = arith.addf %168, %170 : vector<56x16xf32>
    %c9 = arith.constant 9 : index
    %c0_98 = arith.constant 0 : index
    %c0_99 = arith.constant 0 : index
    %172 = vector.load %arg5[%c9, %c0_98, %c0_99] : memref<10x32x16xbf16, #tpu.memory_space<vmem>>, vector<1x32x16xbf16>
    %173 = vector.shape_cast %172 : vector<1x32x16xbf16> to vector<32x16xbf16>
    %174 = arith.truncf %124 : vector<56x32xf32> to vector<56x32xbf16>
    %cst_100 = arith.constant dense<0.000000e+00> : vector<56x16xf32>
    %175 = tpu.matmul %174, %173, %cst_100 {dimension_numbers = #tpu.dot_dimension_numbers<[1], [0], [0], [1], [0, 0, 1, 1], [], []>} : vector<56x32xbf16>, vector<32x16xbf16>, vector<56x16xf32> -> vector<56x16xf32>
    %c9_101 = arith.constant 9 : index
    %c0_102 = arith.constant 0 : index
    %176 = vector.load %arg6[%c9_101, %c0_102] : memref<10x16xf32, #tpu.memory_space<vmem>>, vector<1x16xf32>
    %177 = vector.broadcast %176 : vector<1x16xf32> to vector<56x16xf32>
    %178 = arith.addf %175, %177 : vector<56x16xf32>
    %c1_103 = arith.constant 1 : index
    %c0_104 = arith.constant 0 : index
    %c0_105 = arith.constant 0 : index
    %179 = vector.load %arg4[%c1_103, %c0_104, %c0_105] : memref<2x64x16xbf16, #tpu.memory_space<vmem>>, vector<1x64x16xbf16>
    %180 = vector.shape_cast %179 : vector<1x64x16xbf16> to vector<64x16xbf16>
    %181 = arith.truncf %171 : vector<56x16xf32> to vector<56x16xbf16>
    %cst_106 = arith.constant dense<0.000000e+00> : vector<64x56xf32>
    %182 = tpu.matmul %180, %181, %cst_106 {dimension_numbers = #tpu.dot_dimension_numbers<[1], [1], [0], [0], [0, 0, 1, 0], [], []>} : vector<64x16xbf16>, vector<56x16xbf16>, vector<64x56xf32> -> vector<64x56xf32>
    %cst_107 = arith.constant 2.500000e-01 : f32
    %183 = vector.broadcast %cst_107 : f32 to vector<64x56xf32>
    %184 = arith.mulf %182, %183 : vector<64x56xf32>
    %185 = vector.broadcast %5 : vector<1x56xf32> to vector<64x56xf32>
    %186 = arith.addf %184, %185 : vector<64x56xf32>
    %cst_108 = arith.constant dense<0xFF800000> : vector<64xf32>
    %187 = vector.multi_reduction <maximumf>, %186, %cst_108 [1] : vector<64x56xf32> to vector<64xf32>
    %cst_109 = arith.constant 0xFF800000 : f32
    %188 = vector.broadcast %cst_109 : f32 to vector<64xf32>
    %189 = arith.maximumf %188, %187 : vector<64xf32>
    %190 = vector.shape_cast %189 : vector<64xf32> to vector<64x1xf32>
    %191 = vector.broadcast %190 : vector<64x1xf32> to vector<64x56xf32>
    %192 = arith.subf %186, %191 : vector<64x56xf32>
    %193 = math.exp %192 : vector<64x56xf32>
    %cst_110 = arith.constant dense<0.000000e+00> : vector<64xf32>
    %194 = vector.multi_reduction <add>, %193, %cst_110 [1] : vector<64x56xf32> to vector<64xf32>
    %195 = vector.shape_cast %194 : vector<64xf32> to vector<64x1xf32>
    %196 = vector.broadcast %195 : vector<64x1xf32> to vector<64x56xf32>
    %197 = arith.divf %193, %196 : vector<64x56xf32>
    %198 = arith.truncf %197 : vector<64x56xf32> to vector<64x56xbf16>
    %199 = arith.truncf %178 : vector<56x16xf32> to vector<56x16xbf16>
    %cst_111 = arith.constant dense<0.000000e+00> : vector<64x16xf32>
    %200 = tpu.matmul %198, %199, %cst_111 {dimension_numbers = #tpu.dot_dimension_numbers<[1], [0], [0], [1], [0, 0, 1, 1], [], []>} : vector<64x56xbf16>, vector<56x16xbf16>, vector<64x16xf32> -> vector<64x16xf32>
    %c3_112 = arith.constant 3 : index
    %c0_113 = arith.constant 0 : index
    %c0_114 = arith.constant 0 : index
    %201 = vector.load %arg7[%c3_112, %c0_113, %c0_114] : memref<4x16x32xbf16, #tpu.memory_space<vmem>>, vector<1x16x32xbf16>
    %202 = vector.shape_cast %201 : vector<1x16x32xbf16> to vector<16x32xbf16>
    %203 = arith.truncf %200 : vector<64x16xf32> to vector<64x16xbf16>
    %cst_115 = arith.constant dense<0.000000e+00> : vector<64x32xf32>
    %204 = tpu.matmul %203, %202, %cst_115 {dimension_numbers = #tpu.dot_dimension_numbers<[1], [0], [0], [1], [0, 0, 1, 1], [], []>} : vector<64x16xbf16>, vector<16x32xbf16>, vector<64x32xf32> -> vector<64x32xf32>
    %205 = arith.addf %164, %204 : vector<64x32xf32>
    %c3_116 = arith.constant 3 : index
    %c0_117 = arith.constant 0 : index
    %206 = vector.load %arg9[%c3_116, %c0_117] : memref<10x32xf32, #tpu.memory_space<vmem>>, vector<1x32xf32>
    %207 = vector.broadcast %206 : vector<1x32xf32> to vector<64x32xf32>
    %208 = arith.addf %205, %207 : vector<64x32xf32>
    %c0_118 = arith.constant 0 : index
    %c0_119 = arith.constant 0 : index
    %209 = vector.load %arg8[%c0_118, %c0_119] : memref<32x32xbf16, #tpu.memory_space<vmem>>, vector<32x32xbf16>
    %210 = arith.truncf %208 : vector<64x32xf32> to vector<64x32xbf16>
    %cst_120 = arith.constant dense<0.000000e+00> : vector<64x32xf32>
    %211 = tpu.matmul %210, %209, %cst_120 {dimension_numbers = #tpu.dot_dimension_numbers<[1], [0], [0], [1], [0, 0, 1, 1], [], []>} : vector<64x32xbf16>, vector<32x32xbf16>, vector<64x32xf32> -> vector<64x32xf32>
    %c4_121 = arith.constant 4 : index
    %c0_122 = arith.constant 0 : index
    %212 = vector.load %arg9[%c4_121, %c0_122] : memref<10x32xf32, #tpu.memory_space<vmem>>, vector<1x32xf32>
    %213 = vector.broadcast %212 : vector<1x32xf32> to vector<64x32xf32>
    %214 = arith.addf %211, %213 : vector<64x32xf32>
    %c5_123 = arith.constant 5 : index
    %c0_124 = arith.constant 0 : index
    %215 = vector.load %arg9[%c5_123, %c0_124] : memref<10x32xf32, #tpu.memory_space<vmem>>, vector<1x32xf32>
    %c6_125 = arith.constant 6 : index
    %c0_126 = arith.constant 0 : index
    %216 = vector.load %arg9[%c6_125, %c0_126] : memref<10x32xf32, #tpu.memory_space<vmem>>, vector<1x32xf32>
    %cst_127 = arith.constant dense<0.000000e+00> : vector<64xf32>
    %217 = vector.multi_reduction <add>, %214, %cst_127 [1] : vector<64x32xf32> to vector<64xf32>
    %218 = vector.shape_cast %217 : vector<64xf32> to vector<64x1xf32>
    %cst_128 = arith.constant 3.200000e+01 : f32
    %219 = vector.broadcast %cst_128 : f32 to vector<64x1xf32>
    %220 = arith.divf %218, %219 : vector<64x1xf32>
    %221 = vector.broadcast %220 : vector<64x1xf32> to vector<64x32xf32>
    %222 = arith.subf %214, %221 : vector<64x32xf32>
    %223 = arith.mulf %222, %222 : vector<64x32xf32>
    %cst_129 = arith.constant dense<0.000000e+00> : vector<64xf32>
    %224 = vector.multi_reduction <add>, %223, %cst_129 [1] : vector<64x32xf32> to vector<64xf32>
    %225 = vector.shape_cast %224 : vector<64xf32> to vector<64x1xf32>
    %cst_130 = arith.constant 3.200000e+01 : f32
    %226 = vector.broadcast %cst_130 : f32 to vector<64x1xf32>
    %227 = arith.divf %225, %226 : vector<64x1xf32>
    %228 = vector.broadcast %220 : vector<64x1xf32> to vector<64x32xf32>
    %229 = arith.subf %214, %228 : vector<64x32xf32>
    %cst_131 = arith.constant 9.99999974E-6 : f32
    %230 = vector.broadcast %cst_131 : f32 to vector<64x1xf32>
    %231 = arith.addf %227, %230 : vector<64x1xf32>
    %232 = math.rsqrt %231 : vector<64x1xf32>
    %233 = vector.broadcast %232 : vector<64x1xf32> to vector<64x32xf32>
    %234 = arith.mulf %229, %233 : vector<64x32xf32>
    %235 = vector.broadcast %215 : vector<1x32xf32> to vector<64x32xf32>
    %236 = arith.mulf %234, %235 : vector<64x32xf32>
    %237 = vector.broadcast %216 : vector<1x32xf32> to vector<64x32xf32>
    %238 = arith.addf %236, %237 : vector<64x32xf32>
    %cst_132 = arith.constant 0.000000e+00 : f32
    %239 = vector.broadcast %cst_132 : f32 to vector<64x32xf32>
    %240 = arith.maximumf %238, %239 : vector<64x32xf32>
    %c7_133 = arith.constant 7 : index
    %c0_134 = arith.constant 0 : index
    %241 = vector.load %arg9[%c7_133, %c0_134] : memref<10x32xf32, #tpu.memory_space<vmem>>, vector<1x32xf32>
    %c8_135 = arith.constant 8 : index
    %c0_136 = arith.constant 0 : index
    %242 = vector.load %arg9[%c8_135, %c0_136] : memref<10x32xf32, #tpu.memory_space<vmem>>, vector<1x32xf32>
    %c9_137 = arith.constant 9 : index
    %c0_138 = arith.constant 0 : index
    %243 = vector.load %arg9[%c9_137, %c0_138] : memref<10x32xf32, #tpu.memory_space<vmem>>, vector<1x1xf32>
    %244 = arith.truncf %241 : vector<1x32xf32> to vector<1x32xbf16>
    %245 = arith.truncf %208 : vector<64x32xf32> to vector<64x32xbf16>
    %cst_139 = arith.constant dense<0.000000e+00> : vector<1x64xf32>
    %246 = tpu.matmul %244, %245, %cst_139 {dimension_numbers = #tpu.dot_dimension_numbers<[1], [1], [0], [0], [0, 0, 1, 0], [], []>} : vector<1x32xbf16>, vector<64x32xbf16>, vector<1x64xf32> -> vector<1x64xf32>
    %247 = arith.truncf %242 : vector<1x32xf32> to vector<1x32xbf16>
    %248 = arith.truncf %240 : vector<64x32xf32> to vector<64x32xbf16>
    %cst_140 = arith.constant dense<0.000000e+00> : vector<1x64xf32>
    %249 = tpu.matmul %247, %248, %cst_140 {dimension_numbers = #tpu.dot_dimension_numbers<[1], [1], [0], [0], [0, 0, 1, 0], [], []>} : vector<1x32xbf16>, vector<64x32xbf16>, vector<1x64xf32> -> vector<1x64xf32>
    %250 = arith.addf %246, %249 : vector<1x64xf32>
    %251 = vector.broadcast %243 : vector<1x1xf32> to vector<1x64xf32>
    %252 = arith.addf %250, %251 : vector<1x64xf32>
    %cst_141 = arith.constant dense<0xFF800000> : vector<1xf32>
    %253 = vector.multi_reduction <maximumf>, %252, %cst_141 [1] : vector<1x64xf32> to vector<1xf32>
    %254 = vector.shape_cast %253 : vector<1xf32> to vector<1x1xf32>
    %255 = vector.broadcast %254 : vector<1x1xf32> to vector<1x64xf32>
    %256 = arith.subf %252, %255 : vector<1x64xf32>
    %257 = math.exp %256 : vector<1x64xf32>
    %cst_142 = arith.constant dense<0.000000e+00> : vector<1xf32>
    %258 = vector.multi_reduction <add>, %257, %cst_142 [1] : vector<1x64xf32> to vector<1xf32>
    %259 = vector.shape_cast %258 : vector<1xf32> to vector<1x1xf32>
    %260 = math.log %259 : vector<1x1xf32>
    %261 = arith.addf %260, %254 : vector<1x1xf32>
    %262 = vector.broadcast %261 : vector<1x1xf32> to vector<1x64xf32>
    %263 = arith.subf %252, %262 : vector<1x64xf32>
    %c0_143 = arith.constant 0 : index
    %c0_144 = arith.constant 0 : index
    %c0_145 = arith.constant 0 : index
    %264 = vector.load %arg10[%c0_143, %c0_144, %c0_145] : memref<1x1x64xf32, #tpu.memory_space<vmem>>, vector<1x1x64xf32>
    %265 = vector.shape_cast %264 : vector<1x1x64xf32> to vector<1x64xf32>
    %266 = vector.shape_cast %263 : vector<1x64xf32> to vector<1x1x64xf32>
    tpu.vector_store %arg10[%c0_143, %c0_144, %c0_145], %266 {strides = array<i32>} : memref<1x1x64xf32, #tpu.memory_space<vmem>>, vector<1x1x64xf32>,
    return
  }
  func.func @transform_0(%arg0: i32) -> (i32, i32, i32) {
    %c0_i32 = arith.constant 0 : i32
    %c0_i32_0 = arith.constant 0 : i32
    %c0_i32_1 = arith.constant 0 : i32
    return %arg0, %c0_i32, %c0_i32_0 : i32, i32, i32
  }
  func.func @transform_1(%arg0: i32) -> (i32, i32, i32) {
    %c0_i32 = arith.constant 0 : i32
    %c0_i32_0 = arith.constant 0 : i32
    %c0_i32_1 = arith.constant 0 : i32
    return %arg0, %c0_i32, %c0_i32_0 : i32, i32, i32
  }
  func.func @transform_2(%arg0: i32) -> (i32, i32, i32) {
    %c0_i32 = arith.constant 0 : i32
    %c0_i32_0 = arith.constant 0 : i32
    %c0_i32_1 = arith.constant 0 : i32
    return %arg0, %c0_i32, %c0_i32_0 : i32, i32, i32
  }
  func.func @transform_3(%arg0: i32) -> (i32, i32, i32) {
    %c0_i32 = arith.constant 0 : i32
    %c0_i32_0 = arith.constant 0 : i32
    %c0_i32_1 = arith.constant 0 : i32
    %c0_i32_2 = arith.constant 0 : i32
    return %c0_i32, %c0_i32_0, %c0_i32_1 : i32, i32, i32
  }
  func.func @transform_4(%arg0: i32) -> (i32, i32, i32) {
    %c0_i32 = arith.constant 0 : i32
    %c0_i32_0 = arith.constant 0 : i32
    %c0_i32_1 = arith.constant 0 : i32
    %c0_i32_2 = arith.constant 0 : i32
    return %c0_i32, %c0_i32_0, %c0_i32_1 : i32, i32, i32
  }
  func.func @transform_5(%arg0: i32) -> (i32, i32) {
    %c0_i32 = arith.constant 0 : i32
    %c0_i32_0 = arith.constant 0 : i32
    %c0_i32_1 = arith.constant 0 : i32
    return %c0_i32, %c0_i32_0 : i32, i32
  }
  func.func @transform_6(%arg0: i32) -> (i32, i32, i32) {
    %c0_i32 = arith.constant 0 : i32
    %c0_i32_0 = arith.constant 0 : i32
    %c0_i32_1 = arith.constant 0 : i32
    %c0_i32_2 = arith.constant 0 : i32
    return %c0_i32, %c0_i32_0, %c0_i32_1 : i32, i32, i32
  }
  func.func @transform_7(%arg0: i32) -> (i32, i32) {
    %c0_i32 = arith.constant 0 : i32
    %c0_i32_0 = arith.constant 0 : i32
    %c0_i32_1 = arith.constant 0 : i32
    return %c0_i32, %c0_i32_0 : i32, i32
  }
  func.func @transform_8(%arg0: i32) -> (i32, i32) {
    %c0_i32 = arith.constant 0 : i32
    %c0_i32_0 = arith.constant 0 : i32
    %c0_i32_1 = arith.constant 0 : i32
    return %c0_i32, %c0_i32_0 : i32, i32
  }
  func.func @transform_9(%arg0: i32) -> (i32, i32, i32) {
    %c0_i32 = arith.constant 0 : i32
    %c0_i32_0 = arith.constant 0 : i32
    %c0_i32_1 = arith.constant 0 : i32
    return %arg0, %c0_i32, %c0_i32_0 : i32, i32, i32
  }
}

</mosaic_0001>

<llo_original>
// kernel: tpu_custom_call.1
$region0: #{tpu_custom_call.1}
  #allocation0 [shape = 'u32[]', space=smem, size = 0x4, offset = 0x4, fixed_abs, tag = 'smem constant byte address 0x4 - core index']
  #allocation1 [shape = 'u32[144,128]{1,0:T(1,128)}', space=vmem, size = 0x12000, scoped, tag = 'internal scratch']
  %s0 = inlined_call_operand.vmem [shape: f32[2,56,32], index: 0, kind: input, shape index: {}]
  %s1 = inlined_call_operand.vmem [shape: f32[2,8,32], index: 1, kind: input, shape index: {}]
  %s2 = inlined_call_operand.vmem [shape: f32[2,1,56], index: 2, kind: input, shape index: {}]
  %s3 = inlined_call_operand.vmem [shape: bf16[2,64,16], index: 3, kind: input, shape index: {}]
  %s4 = inlined_call_operand.vmem [shape: bf16[10,32,16], index: 4, kind: input, shape index: {}]
  %s5 = inlined_call_operand.vmem [shape: f32[10,16], index: 5, kind: input, shape index: {}]
  %s6 = inlined_call_operand.vmem [shape: bf16[4,16,32], index: 6, kind: input, shape index: {}]
  %s7 = inlined_call_operand.vmem [shape: bf16[32,32], index: 7, kind: input, shape index: {}]
  %s8 = inlined_call_operand.vmem [shape: f32[10,32], index: 8, kind: input, shape index: {}]
  %s9 = inlined_call_operand.hbm [shape: f32[2,1,64], index: 9, kind: output, shape index: {}]
  %s10 = sld [smem:[#allocation0]]
  $region69: #{tpu_custom_call.1} parent=0
    _
  %s12 = ssub.s32 1, %s10
  %s13 = scalar_select 0, %s12, %s10
  $region1: #{tpu_custom_call.1} parent=0
    #allocation2 [shape = 'u8[1024]{0}', space=vmem, size = 0x400, scoped, tag = 'output window, operand 0']
    #allocation3 [shape = 's32[2]{0}', space=sflag, size = 0x8, scoped, tag = 'scoped memory for tpu_custom_call.1']
    %14 = vsyncpa [#allocation3], 0
    %s15 = scalar_lea.sflag [#allocation3], 1
    %16 = vsyncpa %s15, 0
    loop: start=0, step=1, limit=4
    $region2: #{tpu_custom_call.1} parent=1 // loop_pre_header
      _
    $region3: #{tpu_custom_call.1} parent=1 // loop_header
      %s18 = sphi 0, %s22
      %p19 = scmp.ge.s32.totalorder %s18, 4
      %s28 = sphi 0, %s30
      %s31 = sphi 0, %s28
      %s32 = sphi 0, %s31
      %s48 = sphi 0, %s32
      %s54 = sphi 0, %s56
      %s57 = sphi 0, %s54
      %s58 = sphi 0, %s57
      %s74 = sphi 0, %s58
      %s80 = sphi 0, %s82
      %s83 = sphi 0, %s80
      %s84 = sphi 0, %s83
      %s100 = sphi 0, %s84
      %s104 = sphi 0, %s104
      %s106 = sphi 0, %s104
      %s107 = sphi 0, %s106
      %s121 = sphi 0, %s107
      %s125 = sphi 0, %s125
      %s127 = sphi 0, %s125
      %s128 = sphi 0, %s127
      %s142 = sphi 0, %s128
      %s146 = sphi 0, %s146
      %s148 = sphi 0, %s146
      %s149 = sphi 0, %s148
      %s163 = sphi 0, %s149
      %s167 = sphi 0, %s167
      %s169 = sphi 0, %s167
      %s170 = sphi 0, %s169
      %s184 = sphi 0, %s170
      %s188 = sphi 0, %s188
      %s190 = sphi 0, %s188
      %s191 = sphi 0, %s190
      %s205 = sphi 0, %s191
      %s209 = sphi 0, %s209
      %s211 = sphi 0, %s209
      %s212 = sphi 0, %s211
      %s226 = sphi 0, %s212
      %s232 = sphi 0, %s234
      %s235 = sphi 0, %s232
      %s236 = sphi 0, %s235
      %s252 = sphi 0, %s236
    $region4: #{tpu_custom_call.1} parent=1 // loop_header_branch
      %21 = sbr.rel (%p19) target = $region8
    $region5: #{tpu_custom_call.1} parent=1 // loop_body
      %s23 = ssub.s32 %s18, 1
      %s24 = ssub.s32 %s18, 2
      %s25 = sadd.s32 %s18, 1
      %s26 = ssub.s32 %s18, %s25
      %p27 = scmp.eq.s32.totalorder %s26, 0
      %s29 = sadd.s32 %s28, 1
      %s30 = scalar_select %p27, %s28, %s29
      %p33 = pneg %p27
      %p34 = scmp.eq.s32.totalorder %s18, 1
      %p35 = por %p33, %p34
      %p36 = scmp.ne.s32.totalorder %s28, %s31
      %p37 = scmp.eq.s32.totalorder %s18, 0
      %p38 = por %p36, %p37
      %p39 = scmp.ne.s32.totalorder %s28, %s31
      %p40 = scmp.eq.s32.totalorder %s23, 1
      %p41 = por %p39, %p40
      %p42 = scmp.ne.s32.totalorder %s31, %s32
      %p43 = scmp.eq.s32.totalorder %s23, 0
      %p44 = por %p42, %p43
      %p45 = scmp.ne.s32.totalorder %s31, %s32
      %p46 = scmp.eq.s32.totalorder %s24, 1
      %p47 = por %p45, %p46
      %p49 = scmp.ne.s32.totalorder %s32, %s48
      %p50 = scmp.eq.s32.totalorder %s24, 0
      %p51 = por %p49, %p50
      %s52 = ssub.s32 %s18, %s25
      %p53 = scmp.eq.s32.totalorder %s52, 0
      %s55 = sadd.s32 %s54, 1
      %s56 = scalar_select %p53, %s54, %s55
      %p59 = pneg %p53
      %p60 = scmp.eq.s32.totalorder %s18, 1
      %p61 = por %p59, %p60
      %p62 = scmp.ne.s32.totalorder %s54, %s57
      %p63 = scmp.eq.s32.totalorder %s18, 0
      %p64 = por %p62, %p63
      %p65 = scmp.ne.s32.totalorder %s54, %s57
      %p66 = scmp.eq.s32.totalorder %s23, 1
      %p67 = por %p65, %p66
      %p68 = scmp.ne.s32.totalorder %s57, %s58
      %p69 = scmp.eq.s32.totalorder %s23, 0
      %p70 = por %p68, %p69
      %p71 = scmp.ne.s32.totalorder %s57, %s58
      %p72 = scmp.eq.s32.totalorder %s24, 1
      %p73 = por %p71, %p72
      %p75 = scmp.ne.s32.totalorder %s58, %s74
      %p76 = scmp.eq.s32.totalorder %s24, 0
      %p77 = por %p75, %p76
      %s78 = ssub.s32 %s18, %s25
      %p79 = scmp.eq.s32.totalorder %s78, 0
      %s81 = sadd.s32 %s80, 1
      %s82 = scalar_select %p79, %s80, %s81
      %p85 = pneg %p79
      %p86 = scmp.eq.s32.totalorder %s18, 1
      %p87 = por %p85, %p86
      %p88 = scmp.ne.s32.totalorder %s80, %s83
      %p89 = scmp.eq.s32.totalorder %s18, 0
      %p90 = por %p88, %p89
      %p91 = scmp.ne.s32.totalorder %s80, %s83
      %p92 = scmp.eq.s32.totalorder %s23, 1
      %p93 = por %p91, %p92
      %p94 = scmp.ne.s32.totalorder %s83, %s84
      %p95 = scmp.eq.s32.totalorder %s23, 0
      %p96 = por %p94, %p95
      %p97 = scmp.ne.s32.totalorder %s83, %s84
      %p98 = scmp.eq.s32.totalorder %s24, 1
      %p99 = por %p97, %p98
      %p101 = scmp.ne.s32.totalorder %s84, %s100
      %p102 = scmp.eq.s32.totalorder %s24, 0
      %p103 = por %p101, %p102
      %s105 = sadd.s32 %s104, 1
      %p108 = scmp.eq.s32.totalorder %s18, 1
      %p109 = scmp.ne.s32.totalorder %s104, %s106
      %p110 = scmp.eq.s32.totalorder %s18, 0
      %p111 = por %p109, %p110
      %p112 = scmp.ne.s32.totalorder %s104, %s106
      %p113 = scmp.eq.s32.totalorder %s23, 1
      %p114 = por %p112, %p113
      %p115 = scmp.ne.s32.totalorder %s106, %s107
      %p116 = scmp.eq.s32.totalorder %s23, 0
      %p117 = por %p115, %p116
      %p118 = scmp.ne.s32.totalorder %s106, %s107
      %p119 = scmp.eq.s32.totalorder %s24, 1
      %p120 = por %p118, %p119
      %p122 = scmp.ne.s32.totalorder %s107, %s121
      %p123 = scmp.eq.s32.totalorder %s24, 0
      %p124 = por %p122, %p123
      %s126 = sadd.s32 %s125, 1
      %p129 = scmp.eq.s32.totalorder %s18, 1
      %p130 = scmp.ne.s32.totalorder %s125, %s127
      %p131 = scmp.eq.s32.totalorder %s18, 0
      %p132 = por %p130, %p131
      %p133 = scmp.ne.s32.totalorder %s125, %s127
      %p134 = scmp.eq.s32.totalorder %s23, 1
      %p135 = por %p133, %p134
      %p136 = scmp.ne.s32.totalorder %s127, %s128
      %p137 = scmp.eq.s32.totalorder %s23, 0
      %p138 = por %p136, %p137
      %p139 = scmp.ne.s32.totalorder %s127, %s128
      %p140 = scmp.eq.s32.totalorder %s24, 1
      %p141 = por %p139, %p140
      %p143 = scmp.ne.s32.totalorder %s128, %s142
      %p144 = scmp.eq.s32.totalorder %s24, 0
      %p145 = por %p143, %p144
      %s147 = sadd.s32 %s146, 1
      %p150 = scmp.eq.s32.totalorder %s18, 1
      %p151 = scmp.ne.s32.totalorder %s146, %s148
      %p152 = scmp.eq.s32.totalorder %s18, 0
      %p153 = por %p151, %p152
      %p154 = scmp.ne.s32.totalorder %s146, %s148
      %p155 = scmp.eq.s32.totalorder %s23, 1
      %p156 = por %p154, %p155
      %p157 = scmp.ne.s32.totalorder %s148, %s149
      %p158 = scmp.eq.s32.totalorder %s23, 0
      %p159 = por %p157, %p158
      %p160 = scmp.ne.s32.totalorder %s148, %s149
      %p161 = scmp.eq.s32.totalorder %s24, 1
      %p162 = por %p160, %p161
      %p164 = scmp.ne.s32.totalorder %s149, %s163
      %p165 = scmp.eq.s32.totalorder %s24, 0
      %p166 = por %p164, %p165
      %s168 = sadd.s32 %s167, 1
      %p171 = scmp.eq.s32.totalorder %s18, 1
      %p172 = scmp.ne.s32.totalorder %s167, %s169
      %p173 = scmp.eq.s32.totalorder %s18, 0
      %p174 = por %p172, %p173
      %p175 = scmp.ne.s32.totalorder %s167, %s169
      %p176 = scmp.eq.s32.totalorder %s23, 1
      %p177 = por %p175, %p176
      %p178 = scmp.ne.s32.totalorder %s169, %s170
      %p179 = scmp.eq.s32.totalorder %s23, 0
      %p180 = por %p178, %p179
      %p181 = scmp.ne.s32.totalorder %s169, %s170
      %p182 = scmp.eq.s32.totalorder %s24, 1
      %p183 = por %p181, %p182
      %p185 = scmp.ne.s32.totalorder %s170, %s184
      %p186 = scmp.eq.s32.totalorder %s24, 0
      %p187 = por %p185, %p186
      %s189 = sadd.s32 %s188, 1
      %p192 = scmp.eq.s32.totalorder %s18, 1
      %p193 = scmp.ne.s32.totalorder %s188, %s190
      %p194 = scmp.eq.s32.totalorder %s18, 0
      %p195 = por %p193, %p194
      %p196 = scmp.ne.s32.totalorder %s188, %s190
      %p197 = scmp.eq.s32.totalorder %s23, 1
      %p198 = por %p196, %p197
      %p199 = scmp.ne.s32.totalorder %s190, %s191
      %p200 = scmp.eq.s32.totalorder %s23, 0
      %p201 = por %p199, %p200
      %p202 = scmp.ne.s32.totalorder %s190, %s191
      %p203 = scmp.eq.s32.totalorder %s24, 1
      %p204 = por %p202, %p203
      %p206 = scmp.ne.s32.totalorder %s191, %s205
      %p207 = scmp.eq.s32.totalorder %s24, 0
      %p208 = por %p206, %p207
      %s210 = sadd.s32 %s209, 1
      %p213 = scmp.eq.s32.totalorder %s18, 1
      %p214 = scmp.ne.s32.totalorder %s209, %s211
      %p215 = scmp.eq.s32.totalorder %s18, 0
      %p216 = por %p214, %p215
      %p217 = scmp.ne.s32.totalorder %s209, %s211
      %p218 = scmp.eq.s32.totalorder %s23, 1
      %p219 = por %p217, %p218
      %p220 = scmp.ne.s32.totalorder %s211, %s212
      %p221 = scmp.eq.s32.totalorder %s23, 0
      %p222 = por %p220, %p221
      %p223 = scmp.ne.s32.totalorder %s211, %s212
      %p224 = scmp.eq.s32.totalorder %s24, 1
      %p225 = por %p223, %p224
      %p227 = scmp.ne.s32.totalorder %s212, %s226
      %p228 = scmp.eq.s32.totalorder %s24, 0
      %p229 = por %p227, %p228
      %s230 = ssub.s32 %s18, %s25
      %p231 = scmp.eq.s32.totalorder %s230, 0
      %s233 = sadd.s32 %s232, 1
      %s234 = scalar_select %p231, %s232, %s233
      %p237 = pneg %p231
      %p238 = scmp.eq.s32.totalorder %s18, 1
      %p239 = por %p237, %p238
      %p240 = scmp.ne.s32.totalorder %s232, %s235
      %p241 = scmp.eq.s32.totalorder %s18, 0
      %p242 = por %p240, %p241
      %p243 = scmp.ne.s32.totalorder %s232, %s235
      %p244 = scmp.eq.s32.totalorder %s23, 1
      %p245 = por %p243, %p244
      %p246 = scmp.ne.s32.totalorder %s235, %s236
      %p247 = scmp.eq.s32.totalorder %s23, 0
      %p248 = por %p246, %p247
      %p249 = scmp.ne.s32.totalorder %s235, %s236
      %p250 = scmp.eq.s32.totalorder %s24, 1
      %p251 = por %p249, %p250
      %p253 = scmp.ne.s32.totalorder %s236, %s252
      %p254 = scmp.eq.s32.totalorder %s24, 0
      %p255 = por %p253, %p254
      %p256 = scmp.le.s32.totalorder 1, %s18
      %p257 = scmp.lt.s32.totalorder %s18, 3
      %p258 = pnand %p256, %p257
      %p259 = pneg %p258
      // Predicated region
      $region9: #{tpu_custom_call.1} parent=5 // pred_check
        _
      $region10: #{tpu_custom_call.1} parent=5 // pred_check_branch
        %261 = sbr.rel (%p258) target = $region12
      $region11: #{tpu_custom_call.1} parent=5 // pred_region
        %s262 = ssub.s32 %s18, 1
        // Predicated region
        $region13: #{tpu_custom_call.1} parent=11 // pred_check
          %p263 = pneg %p117
        $region14: #{tpu_custom_call.1} parent=11 // pred_check_branch
          %265 = sbr.rel (%p263) target = $region16
        $region15: #{tpu_custom_call.1} parent=11 // pred_region
          _
        $region16: #{tpu_custom_call.1} parent=11 // pred_fallthru
          _
        // Predicated region
        $region17: #{tpu_custom_call.1} parent=11 // pred_check
          %p266 = pneg %p138
        $region18: #{tpu_custom_call.1} parent=11 // pred_check_branch
          %268 = sbr.rel (%p266) target = $region20
        $region19: #{tpu_custom_call.1} parent=11 // pred_region
          _
        $region20: #{tpu_custom_call.1} parent=11 // pred_fallthru
          _
        // Predicated region
        $region21: #{tpu_custom_call.1} parent=11 // pred_check
          %p269 = pneg %p159
        $region22: #{tpu_custom_call.1} parent=11 // pred_check_branch
          %271 = sbr.rel (%p269) target = $region24
        $region23: #{tpu_custom_call.1} parent=11 // pred_region
          _
        $region24: #{tpu_custom_call.1} parent=11 // pred_fallthru
          _
        // Predicated region
        $region25: #{tpu_custom_call.1} parent=11 // pred_check
          %p272 = pneg %p180
        $region26: #{tpu_custom_call.1} parent=11 // pred_check_branch
          %274 = sbr.rel (%p272) target = $region28
        $region27: #{tpu_custom_call.1} parent=11 // pred_region
          _
        $region28: #{tpu_custom_call.1} parent=11 // pred_fallthru
          _
        // Predicated region
        $region29: #{tpu_custom_call.1} parent=11 // pred_check
          %p275 = pneg %p201
        $region30: #{tpu_custom_call.1} parent=11 // pred_check_branch
          %277 = sbr.rel (%p275) target = $region32
        $region31: #{tpu_custom_call.1} parent=11 // pred_region
          _
        $region32: #{tpu_custom_call.1} parent=11 // pred_fallthru
          _
        // Predicated region
        $region33: #{tpu_custom_call.1} parent=11 // pred_check
          %p278 = pneg %p222
        $region34: #{tpu_custom_call.1} parent=11 // pred_check_branch
          %280 = sbr.rel (%p278) target = $region36
        $region35: #{tpu_custom_call.1} parent=11 // pred_region
          _
        $region36: #{tpu_custom_call.1} parent=11 // pred_fallthru
          _
      $region12: #{tpu_custom_call.1} parent=5 // pred_fallthru
        _
      %p281 = scmp.lt.s32.totalorder %s18, 2
      // Predicated region
      $region37: #{tpu_custom_call.1} parent=5 // pred_check
        %p282 = pneg %p281
      $region38: #{tpu_custom_call.1} parent=5 // pred_check_branch
        %284 = sbr.rel (%p282) target = $region40
      $region39: #{tpu_custom_call.1} parent=5 // pred_region
        // Predicated region
        $region41: #{tpu_custom_call.1} parent=39 // pred_check
          %p285 = pneg %p38
        $region42: #{tpu_custom_call.1} parent=39 // pred_check_branch
          %287 = sbr.rel (%p285) target = $region44
        $region43: #{tpu_custom_call.1} parent=39 // pred_region
          %p288 = scmp.lt.s32.totalorder %s18, 1
          %s289 = scalar_select %p288, %s18, 1
          %s290 = smul.addr %s289, 7
          %s291 = smul.addr %s290, 8
          %s292 = scalar_lea.vmem %s0, %s291
        $region44: #{tpu_custom_call.1} parent=39 // pred_fallthru
          _
        // Predicated region
        $region45: #{tpu_custom_call.1} parent=39 // pred_check
          %p293 = pneg %p64
        $region46: #{tpu_custom_call.1} parent=39 // pred_check_branch
          %295 = sbr.rel (%p293) target = $region48
        $region47: #{tpu_custom_call.1} parent=39 // pred_region
          %p296 = scmp.lt.s32.totalorder %s18, 1
          %s297 = scalar_select %p296, %s18, 1
          %s298 = smul.addr %s297, 8
          %s299 = scalar_lea.vmem %s1, %s298
        $region48: #{tpu_custom_call.1} parent=39 // pred_fallthru
          _
        // Predicated region
        $region49: #{tpu_custom_call.1} parent=39 // pred_check
          %p300 = pneg %p90
        $region50: #{tpu_custom_call.1} parent=39 // pred_check_branch
          %302 = sbr.rel (%p300) target = $region52
        $region51: #{tpu_custom_call.1} parent=39 // pred_region
          %p303 = scmp.lt.s32.totalorder %s18, 1
          %s304 = scalar_select %p303, %s18, 1
          %s305 = scalar_lea.vmem %s2, %s304
        $region52: #{tpu_custom_call.1} parent=39 // pred_fallthru
          _
      $region40: #{tpu_custom_call.1} parent=5 // pred_fallthru
        _
      %p306 = scmp.le.s32.totalorder 1, %s18
      %p307 = scmp.lt.s32.totalorder %s18, 3
      %p308 = pnand %p306, %p307
      %p309 = pneg %p308
      // Predicated region
      $region53: #{tpu_custom_call.1} parent=5 // pred_check
        _
      $region54: #{tpu_custom_call.1} parent=5 // pred_check_branch
        %311 = sbr.rel (%p308) target = $region56
      $region55: #{tpu_custom_call.1} parent=5 // pred_region
        %s312 = ssub.s32 %s18, 1
        %p313 = scmp.lt.s32.totalorder %s23, 1
        %s314 = scalar_select %p313, %s23, 1
        %s315 = smul.addr %s314, 7
        %s316 = smul.addr %s315, 8
        %s317 = scalar_lea.vmem %s0, %s316
        %p318 = pneg %p44
        %p319 = pneg %p41
        %p320 = scmp.lt.s32.totalorder %s23, 1
        %s321 = scalar_select %p320, %s23, 1
        %s322 = smul.addr %s321, 8
        %s323 = scalar_lea.vmem %s1, %s322
        %p324 = pneg %p70
        %p325 = pneg %p67
        %p326 = scmp.lt.s32.totalorder %s23, 1
        %s327 = scalar_select %p326, %s23, 1
        %s328 = scalar_lea.vmem %s2, %s327
        %p329 = pneg %p96
        %p330 = pneg %p93
        %p331 = pneg %p117
        %p332 = pneg %p114
        %p333 = pneg %p138
        %p334 = pneg %p135
        %p335 = pneg %p159
        %p336 = pneg %p156
        %p337 = pneg %p180
        %p338 = pneg %p177
        %p339 = pneg %p201
        %p340 = pneg %p198
        %p341 = pneg %p222
        %p342 = pneg %p219
        %p343 = pneg %p248
        %p344 = pneg %p245
        %s345 = sand.u32 %s235, 1
        %s346 = scalar_lea.sflag [#allocation3], %s345
        %s347 = sand.u32 %s235, 1
        %s348 = scalar_lea.vmem [#allocation2], %s347
        %p349 = scmp.lt.s32.totalorder %s23, 1
        %s350 = scalar_select %p349, %s23, 1
        %s351 = smul.addr %s350, 7
        %s352 = smul.addr %s351, 8
        %s353 = scalar_lea.vmem %s0, %s352
        %p354 = scmp.lt.s32.totalorder %s23, 1
        %s355 = scalar_select %p354, %s23, 1
        %s356 = smul.addr %s355, 8
        %s357 = scalar_lea.vmem %s1, %s356
        %p358 = scmp.lt.s32.totalorder %s23, 1
        %s359 = scalar_select %p358, %s23, 1
        %s360 = scalar_lea.vmem %s2, %s359
        %v362 = vld [vmem:[%s353] sm:$0xff]
        %v363 = vld [vmem:[%s353 + $0x8] sm:$0xff]
        %v364 = vld [vmem:[%s353 + $0x10] sm:$0xff]
        %v365 = vld [vmem:[%s353 + $0x18] sm:$0xff]
        %v366 = vld [vmem:[%s353 + $0x20] sm:$0xff]
        %v367 = vld [vmem:[%s353 + $0x28] sm:$0xff]
        %v368 = vld [vmem:[%s353 + $0x30] sm:$0xff]
        %v369 = vld [vmem:[%s357] sm:$0xff]
        %v370 = vld [vmem:[%s360] sm:$0x1]
        %v371 = vld [vmem:[%s4] sm:$0xf]
        %v372 = vld [vmem:[%s4 + $0x4] sm:$0xf]
        %v373 = vld [vmem:[%s4 + $0x8] sm:$0xf]
        %v374 = vld [vmem:[%s4 + $0xc] sm:$0xf]
        %v375 = vpack.c.bf16 %v363, %v362
        %v376 = vpack.c.bf16 %v365, %v364
        %v377 = vpack.c.bf16 %v367, %v366
        %v378 = vpack.c.bf16 %v368, %v368
        %v379 = vld [vmem:[%s5] sm:$0x1]
        %v380 = vlaneseq
        %v381 = vshrl.u32 %v380, 7
        %v382 = vsub.s32 0, %v381
        %v383 = vrot.slane %v379, %v382
        %v388 = vunpack.c.l.b16 %v371
        %v389 = vunpack.c.l.b16 %v372
        %v390 = vunpack.c.l.b16 %v373
        %v391 = vunpack.c.l.b16 %v374
        %v392 = vpack.c.b16 %v389, %v388
        %v393 = vpack.c.b16 %v391, %v390
        %vm396 = vcmask 261120
        %v398 = vsel %vm396, %v375, 0
        %v401 = vsel %vm396, %v376, 0
        %v404 = vsel %vm396, %v377, 0
        %v407 = vsel %vm396, %v378, 0
        %409 = vmatprep.subr.bf16.mxu0 0
        %410 = vmatpush1.bf16.msra.mxu0 %v392
        %411 = vmatprep.subr.bf16.mxu0 0
        %412 = vmatpush1.bf16.msra.mxu0 %v393
        %413 = vmatprep.subr.bf16.mxu0 0
        %414 = vmatpush1.bf16.msra.mxu0 0
        %415 = vmatprep.subr.bf16.mxu0 0
        %416 = vmatpush1.bf16.msra.mxu0 0
        %417 = vmatprep.subr.bf16.mxu0 0
        %418 = vmatpush1.bf16.msra.mxu0 0
        %419 = vmatprep.subr.bf16.mxu0 0
        %420 = vmatpush1.bf16.msra.mxu0 0
        %421 = vmatprep.subr.bf16.mxu0 0
        %422 = vmatpush1.bf16.msra.mxu0 0
        %423 = vmatprep.subr.bf16.mxu0 0
        %424 = vmatpush1.bf16.msra.mxu0 0
        %425 = vmatprep.subr.bf16.mxu0 0
        %426 = vmatpush1.bf16.msra.mxu0 0
        %427 = vmatprep.subr.bf16.mxu0 0
        %428 = vmatpush1.bf16.msra.mxu0 0
        %429 = vmatprep.subr.bf16.mxu0 0
        %430 = vmatpush1.bf16.msra.mxu0 0
        %431 = vmatprep.subr.bf16.mxu0 0
        %432 = vmatpush1.bf16.msra.mxu0 0
        %433 = vmatprep.subr.bf16.mxu0 0
        %434 = vmatpush1.bf16.msra.mxu0 0
        %435 = vmatprep.subr.bf16.mxu0 0
        %436 = vmatpush1.bf16.msra.mxu0 0
        %437 = vmatprep.subr.bf16.mxu0 0
        %438 = vmatpush1.bf16.msra.mxu0 0
        %439 = vmatprep.subr.bf16.mxu0 0
        %440 = vmatpush1.bf16.msra.mxu0 0
        %441 = vmatprep.mubr.bf16.mxu0 0
        %442 = vmatmul.mubr.bf16.gmra.mrb[0].mxu0 %v398
        %v443 = vpop.f32.mrb[0].mxu0
        %v444 = vadd.f32 %v383, %v443
        %v445 = vpop.f32.mrb[0].mxu0
        %v446 = vpop.f32.mrb[0].mxu0
        %v447 = vadd.f32 %v383, %v446
        %v448 = vpop.f32.mrb[0].mxu0
        %449 = vmatprep.mubr.bf16.mxu0 0
        %450 = vmatmul.mubr.bf16.gmra.mrb[0].mxu0 %v401
        %v451 = vpop.f32.mrb[0].mxu0
        %v452 = vadd.f32 %v383, %v451
        %v453 = vpop.f32.mrb[0].mxu0
        %v454 = vpop.f32.mrb[0].mxu0
        %v455 = vadd.f32 %v383, %v454
        %v456 = vpop.f32.mrb[0].mxu0
        %457 = vmatprep.mubr.bf16.mxu0 0
        %458 = vmatmul.mubr.bf16.gmra.mrb[0].mxu0 %v404
        %v459 = vpop.f32.mrb[0].mxu0
        %v460 = vadd.f32 %v383, %v459
        %v461 = vpop.f32.mrb[0].mxu0
        %v462 = vpop.f32.mrb[0].mxu0
        %v463 = vadd.f32 %v383, %v462
        %v464 = vpop.f32.mrb[0].mxu0
        %465 = vmatprep.mubr.bf16.mxu0 0
        %466 = vmatmul.mubr.bf16.gmra.mrb[0].mxu0 %v407
        %v467 = vpop.f32.mrb[0].mxu0
        %v468 = vadd.f32 %v383, %v467
        %v469 = vpop.f32.mrb[0].mxu0
        %v470 = vpop.f32.mrb[0].mxu0
        %v471 = vpop.f32.mrb[0].mxu0
        %472 = vdwg.mxu0
        %s473 = scalar_lea.vmem %s4, 32
        %v474 = vld [vmem:[%s473] sm:$0xf]
        %v475 = vld [vmem:[%s473 + $0x4] sm:$0xf]
        %v476 = vld [vmem:[%s473 + $0x8] sm:$0xf]
        %v477 = vld [vmem:[%s473 + $0xc] sm:$0xf]
        %v478 = vpack.c.bf16 %v369, %v369
        %v479 = vld [vmem:[%s5 + $0x2] sm:$0x1]
        %v480 = vlaneseq
        %v481 = vshrl.u32 %v480, 7
        %v482 = vsub.s32 0, %v481
        %v483 = vrot.slane %v479, %v482
        %v488 = vunpack.c.l.b16 %v474
        %v489 = vunpack.c.l.b16 %v475
        %v490 = vunpack.c.l.b16 %v476
        %v491 = vunpack.c.l.b16 %v477
        %v492 = vpack.c.b16 %v489, %v488
        %v493 = vpack.c.b16 %v491, %v490
        %v497 = vsel %vm396, %v478, 0
        %499 = vmatprep.subr.bf16.mxu0 0
        %500 = vmatpush1.bf16.msra.mxu0 %v492
        %501 = vmatprep.subr.bf16.mxu0 0
        %502 = vmatpush1.bf16.msra.mxu0 %v493
        %503 = vmatprep.subr.bf16.mxu0 0
        %504 = vmatpush1.bf16.msra.mxu0 0
        %505 = vmatprep.subr.bf16.mxu0 0
        %506 = vmatpush1.bf16.msra.mxu0 0
        %507 = vmatprep.subr.bf16.mxu0 0
        %508 = vmatpush1.bf16.msra.mxu0 0
        %509 = vmatprep.subr.bf16.mxu0 0
        %510 = vmatpush1.bf16.msra.mxu0 0
        %511 = vmatprep.subr.bf16.mxu0 0
        %512 = vmatpush1.bf16.msra.mxu0 0
        %513 = vmatprep.subr.bf16.mxu0 0
        %514 = vmatpush1.bf16.msra.mxu0 0
        %515 = vmatprep.subr.bf16.mxu0 0
        %516 = vmatpush1.bf16.msra.mxu0 0
        %517 = vmatprep.subr.bf16.mxu0 0
        %518 = vmatpush1.bf16.msra.mxu0 0
        %519 = vmatprep.subr.bf16.mxu0 0
        %520 = vmatpush1.bf16.msra.mxu0 0
        %521 = vmatprep.subr.bf16.mxu0 0
        %522 = vmatpush1.bf16.msra.mxu0 0
        %523 = vmatprep.subr.bf16.mxu0 0
        %524 = vmatpush1.bf16.msra.mxu0 0
        %525 = vmatprep.subr.bf16.mxu0 0
        %526 = vmatpush1.bf16.msra.mxu0 0
        %527 = vmatprep.subr.bf16.mxu0 0
        %528 = vmatpush1.bf16.msra.mxu0 0
        %529 = vmatprep.subr.bf16.mxu0 0
        %530 = vmatpush1.bf16.msra.mxu0 0
        %531 = vmatprep.mubr.bf16.mxu0 0
        %532 = vmatmul.mubr.bf16.gmra.mrb[0].mxu0 %v497
        %v533 = vpop.f32.mrb[0].mxu0
        %v534 = vadd.f32 %v483, %v533
        %v535 = vpop.f32.mrb[0].mxu0
        %v536 = vpop.f32.mrb[0].mxu0
        %v537 = vpop.f32.mrb[0].mxu0
        %538 = vdwg.mxu0
        %s539 = scalar_lea.vmem %s4, 64
        %v540 = vld [vmem:[%s539] sm:$0xf]
        %v541 = vld [vmem:[%s539 + $0x4] sm:$0xf]
        %v542 = vld [vmem:[%s539 + $0x8] sm:$0xf]
        %v543 = vld [vmem:[%s539 + $0xc] sm:$0xf]
        %v544 = vld [vmem:[%s5 + $0x4] sm:$0x1]
        %v545 = vlaneseq
        %v546 = vshrl.u32 %v545, 7
        %v547 = vsub.s32 0, %v546
        %v548 = vrot.slane %v544, %v547
        %v553 = vunpack.c.l.b16 %v540
        %v554 = vunpack.c.l.b16 %v541
        %v555 = vunpack.c.l.b16 %v542
        %v556 = vunpack.c.l.b16 %v543
        %v557 = vpack.c.b16 %v554, %v553
        %v558 = vpack.c.b16 %v556, %v555
        %561 = vmatprep.subr.bf16.mxu0 0
        %562 = vmatpush1.bf16.msra.mxu0 %v557
        %563 = vmatprep.subr.bf16.mxu0 0
        %564 = vmatpush1.bf16.msra.mxu0 %v558
        %565 = vmatprep.subr.bf16.mxu0 0
        %566 = vmatpush1.bf16.msra.mxu0 0
        %567 = vmatprep.subr.bf16.mxu0 0
        %568 = vmatpush1.bf16.msra.mxu0 0
        %569 = vmatprep.subr.bf16.mxu0 0
        %570 = vmatpush1.bf16.msra.mxu0 0
        %571 = vmatprep.subr.bf16.mxu0 0
        %572 = vmatpush1.bf16.msra.mxu0 0
        %573 = vmatprep.subr.bf16.mxu0 0
        %574 = vmatpush1.bf16.msra.mxu0 0
        %575 = vmatprep.subr.bf16.mxu0 0
        %576 = vmatpush1.bf16.msra.mxu0 0
        %577 = vmatprep.subr.bf16.mxu0 0
        %578 = vmatpush1.bf16.msra.mxu0 0
        %579 = vmatprep.subr.bf16.mxu0 0
        %580 = vmatpush1.bf16.msra.mxu0 0
        %581 = vmatprep.subr.bf16.mxu0 0
        %582 = vmatpush1.bf16.msra.mxu0 0
        %583 = vmatprep.subr.bf16.mxu0 0
        %584 = vmatpush1.bf16.msra.mxu0 0
        %585 = vmatprep.subr.bf16.mxu0 0
        %586 = vmatpush1.bf16.msra.mxu0 0
        %587 = vmatprep.subr.bf16.mxu0 0
        %588 = vmatpush1.bf16.msra.mxu0 0
        %589 = vmatprep.subr.bf16.mxu0 0
        %590 = vmatpush1.bf16.msra.mxu0 0
        %591 = vmatprep.subr.bf16.mxu0 0
        %592 = vmatpush1.bf16.msra.mxu0 0
        %593 = vmatprep.mubr.bf16.mxu0 0
        %594 = vmatmul.mubr.bf16.gmra.mrb[0].mxu0 %v497
        %v595 = vpop.f32.mrb[0].mxu0
        %v596 = vadd.f32 %v548, %v595
        %v597 = vpop.f32.mrb[0].mxu0
        %v598 = vpop.f32.mrb[0].mxu0
        %v599 = vpop.f32.mrb[0].mxu0
        %600 = vdwg.mxu0
        %v601 = vpack.c.bf16 %v447, %v444
        %v602 = vpack.c.bf16 %v455, %v452
        %v603 = vpack.c.bf16 %v463, %v460
        %v604 = vpack.c.bf16 %v468, %v468
        %v605 = vpack.c.bf16 %v534, %v534
        %vm606 = vcmask 130048
        %v608 = vsel %vm606, %v601, 0
        %v611 = vsel %vm606, %v602, 0
        %v614 = vsel %vm606, %v603, 0
        %v617 = vsel %vm606, %v604, 0
        %v620 = vsel %vm606, %v605, 0
        %622 = vmatprep.subr.bf16.mxu0 0
        %623 = vmatpush1.bf16.xpose.msra.mxu0 %v620
        %624 = vmatprep.subr.bf16.mxu0 0
        %625 = vmatpush1.bf16.xpose.msra.mxu0 0
        %626 = vmatprep.subr.bf16.mxu0 0
        %627 = vmatpush1.bf16.xpose.msra.mxu0 0
        %628 = vmatprep.subr.bf16.mxu0 0
        %629 = vmatpush1.bf16.xpose.msra.mxu0 0
        %630 = vmatprep.subr.bf16.mxu0 0
        %631 = vmatpush1.bf16.xpose.msra.mxu0 0
        %632 = vmatprep.subr.bf16.mxu0 0
        %633 = vmatpush1.bf16.xpose.msra.mxu0 0
        %634 = vmatprep.subr.bf16.mxu0 0
        %635 = vmatpush1.bf16.xpose.msra.mxu0 0
        %636 = vmatprep.subr.bf16.mxu0 0
        %637 = vmatpush1.bf16.xpose.msra.mxu0 0
        %638 = vmatprep.subr.bf16.mxu0 0
        %639 = vmatpush1.bf16.xpose.msra.mxu0 0
        %640 = vmatprep.subr.bf16.mxu0 0
        %641 = vmatpush1.bf16.xpose.msra.mxu0 0
        %642 = vmatprep.subr.bf16.mxu0 0
        %643 = vmatpush1.bf16.xpose.msra.mxu0 0
        %644 = vmatprep.subr.bf16.mxu0 0
        %645 = vmatpush1.bf16.xpose.msra.mxu0 0
        %646 = vmatprep.subr.bf16.mxu0 0
        %647 = vmatpush1.bf16.xpose.msra.mxu0 0
        %648 = vmatprep.subr.bf16.mxu0 0
        %649 = vmatpush1.bf16.xpose.msra.mxu0 0
        %650 = vmatprep.subr.bf16.mxu0 0
        %651 = vmatpush1.bf16.xpose.msra.mxu0 0
        %652 = vmatprep.subr.bf16.mxu0 0
        %653 = vmatpush1.bf16.xpose.msra.mxu0 0
        %654 = vmatprep.mubr.bf16.mxu0 0
        %655 = vmatmul.mubr.bf16.gmra.mrb[0].mxu0 %v608
        %v656 = vpop.f32.mrb[0].mxu0
        %v657 = vadd.f32 0.0, %v656
        %v658 = vpop.f32.mrb[0].mxu0
        %v659 = vpop.f32.mrb[0].mxu0
        %v660 = vadd.f32 0.0, %v659
        %v661 = vpop.f32.mrb[0].mxu0
        %662 = vmatprep.mubr.bf16.mxu0 0
        %663 = vmatmul.mubr.bf16.gmra.mrb[0].mxu0 %v611
        %v664 = vpop.f32.mrb[0].mxu0
        %v665 = vadd.f32 0.0, %v664
        %v666 = vpop.f32.mrb[0].mxu0
        %v667 = vpop.f32.mrb[0].mxu0
        %v668 = vadd.f32 0.0, %v667
        %v669 = vpop.f32.mrb[0].mxu0
        %670 = vmatprep.mubr.bf16.mxu0 0
        %671 = vmatmul.mubr.bf16.gmra.mrb[0].mxu0 %v614
        %v672 = vpop.f32.mrb[0].mxu0
        %v673 = vadd.f32 0.0, %v672
        %v674 = vpop.f32.mrb[0].mxu0
        %v675 = vpop.f32.mrb[0].mxu0
        %v676 = vadd.f32 0.0, %v675
        %v677 = vpop.f32.mrb[0].mxu0
        %678 = vmatprep.mubr.bf16.mxu0 0
        %679 = vmatmul.mubr.bf16.gmra.mrb[0].mxu0 %v617
        %v680 = vpop.f32.mrb[0].mxu0
        %v681 = vadd.f32 0.0, %v680
        %v682 = vpop.f32.mrb[0].mxu0
        %v683 = vpop.f32.mrb[0].mxu0
        %v684 = vpop.f32.mrb[0].mxu0
        %685 = vdwg.mxu0
        %v686 = vmul.f32 %v657, 0.25
        %v687 = vmul.f32 %v660, 0.25
        %v688 = vmul.f32 %v665, 0.25
        %v689 = vmul.f32 %v668, 0.25
        %v690 = vmul.f32 %v673, 0.25
        %v691 = vmul.f32 %v676, 0.25
        %v692 = vmul.f32 %v681, 0.25
        %vm693 = vcmask 64512
        %v694 = vsel %vm693, %v686, -inf
        %695 = vmax.xlane.f32.xlu0 %v694
        %v696 = vpop.xlane.xlu0 %695
        %v697 = vsel %vm693, %v687, -inf
        %698 = vmax.xlane.f32.xlu0 %v697
        %v699 = vpop.xlane.xlu0 %698
        %v700 = vsel %vm693, %v688, -inf
        %701 = vmax.xlane.f32.xlu0 %v700
        %v702 = vpop.xlane.xlu0 %701
        %v703 = vsel %vm693, %v689, -inf
        %704 = vmax.xlane.f32.xlu0 %v703
        %v705 = vpop.xlane.xlu0 %704
        %v706 = vsel %vm693, %v690, -inf
        %707 = vmax.xlane.f32.xlu0 %v706
        %v708 = vpop.xlane.xlu0 %707
        %v709 = vsel %vm693, %v691, -inf
        %710 = vmax.xlane.f32.xlu0 %v709
        %v711 = vpop.xlane.xlu0 %710
        %v712 = vsel %vm693, %v692, -inf
        %713 = vmax.xlane.f32.xlu0 %v712
        %v714 = vpop.xlane.xlu0 %713
        %v715 = vsub.f32 %v686, %v696
        %v716 = vsub.f32 %v687, %v699
        %v717 = vsub.f32 %v688, %v702
        %v718 = vsub.f32 %v689, %v705
        %v719 = vsub.f32 %v690, %v708
        %v720 = vsub.f32 %v691, %v711
        %v721 = vsub.f32 %v692, %v714
        %v722 = vmul.f32 %v715, 1.442695
        %v723 = vpow.pop %v722
        %v724 = vmul.f32 %v716, 1.442695
        %v725 = vpow.pop %v724
        %v726 = vmul.f32 %v717, 1.442695
        %v727 = vpow.pop %v726
        %v728 = vmul.f32 %v718, 1.442695
        %v729 = vpow.pop %v728
        %v730 = vmul.f32 %v719, 1.442695
        %v731 = vpow.pop %v730
        %v732 = vmul.f32 %v720, 1.442695
        %v733 = vpow.pop %v732
        %v734 = vmul.f32 %v721, 1.442695
        %v735 = vpow.pop %v734
        %v736 = vsel %vm693, %v723, 0.0
        %737 = vadd.xlane.f32.xlu0 %v736
        %v738 = vpop.xlane.xlu0 %737
        %v739 = vsel %vm693, %v725, 0.0
        %740 = vadd.xlane.f32.xlu0 %v739
        %v741 = vpop.xlane.xlu0 %740
        %v742 = vsel %vm693, %v727, 0.0
        %743 = vadd.xlane.f32.xlu0 %v742
        %v744 = vpop.xlane.xlu0 %743
        %v745 = vsel %vm693, %v729, 0.0
        %746 = vadd.xlane.f32.xlu0 %v745
        %v747 = vpop.xlane.xlu0 %746
        %v748 = vsel %vm693, %v731, 0.0
        %749 = vadd.xlane.f32.xlu0 %v748
        %v750 = vpop.xlane.xlu0 %749
        %v751 = vsel %vm693, %v733, 0.0
        %752 = vadd.xlane.f32.xlu0 %v751
        %v753 = vpop.xlane.xlu0 %752
        %v754 = vsel %vm693, %v735, 0.0
        %755 = vadd.xlane.f32.xlu0 %v754
        %v756 = vpop.xlane.xlu0 %755
        %v757 = vrcp.pop %v738
        %v758 = vmul.f32 %v723, %v757
        %v759 = vrcp.pop %v741
        %v760 = vmul.f32 %v725, %v759
        %v761 = vrcp.pop %v744
        %v762 = vmul.f32 %v727, %v761
        %v763 = vrcp.pop %v747
        %v764 = vmul.f32 %v729, %v763
        %v765 = vrcp.pop %v750
        %v766 = vmul.f32 %v731, %v765
        %v767 = vrcp.pop %v753
        %v768 = vmul.f32 %v733, %v767
        %v769 = vrcp.pop %v756
        %v770 = vmul.f32 %v735, %v769
        %v771 = vpack.c.bf16 %v760, %v758
        %v772 = vpack.c.bf16 %v764, %v762
        %v773 = vpack.c.bf16 %v768, %v766
        %v774 = vpack.c.bf16 %v770, %v770
        %v775 = vpack.c.bf16 %v596, %v596
        %v777 = vsel %vm693, %v771, 0
        %v780 = vsel %vm693, %v772, 0
        %v783 = vsel %vm693, %v773, 0
        %v786 = vsel %vm693, %v774, 0
        %vm788 = vcmask 1043456
        %v790 = vsel %vm788, %v775, 0
        %792 = vmatprep.subr.bf16.mxu0 0
        %793 = vmatpush1.bf16.msra.mxu0 %v790
        %794 = vmatprep.subr.bf16.mxu0 0
        %795 = vmatpush1.bf16.msra.mxu0 0
        %796 = vmatprep.subr.bf16.mxu0 0
        %797 = vmatpush1.bf16.msra.mxu0 0
        %798 = vmatprep.subr.bf16.mxu0 0
        %799 = vmatpush1.bf16.msra.mxu0 0
        %800 = vmatprep.subr.bf16.mxu0 0
        %801 = vmatpush1.bf16.msra.mxu0 0
        %802 = vmatprep.subr.bf16.mxu0 0
        %803 = vmatpush1.bf16.msra.mxu0 0
        %804 = vmatprep.subr.bf16.mxu0 0
        %805 = vmatpush1.bf16.msra.mxu0 0
        %806 = vmatprep.subr.bf16.mxu0 0
        %807 = vmatpush1.bf16.msra.mxu0 0
        %808 = vmatprep.subr.bf16.mxu0 0
        %809 = vmatpush1.bf16.msra.mxu0 0
        %810 = vmatprep.subr.bf16.mxu0 0
        %811 = vmatpush1.bf16.msra.mxu0 0
        %812 = vmatprep.subr.bf16.mxu0 0
        %813 = vmatpush1.bf16.msra.mxu0 0
        %814 = vmatprep.subr.bf16.mxu0 0
        %815 = vmatpush1.bf16.msra.mxu0 0
        %816 = vmatprep.subr.bf16.mxu0 0
        %817 = vmatpush1.bf16.msra.mxu0 0
        %818 = vmatprep.subr.bf16.mxu0 0
        %819 = vmatpush1.bf16.msra.mxu0 0
        %820 = vmatprep.subr.bf16.mxu0 0
        %821 = vmatpush1.bf16.msra.mxu0 0
        %822 = vmatprep.subr.bf16.mxu0 0
        %823 = vmatpush1.bf16.msra.mxu0 0
        %824 = vmatprep.mubr.bf16.mxu0 0
        %825 = vmatmul.mubr.bf16.gmra.mrb[0].mxu0 %v777
        %v826 = vpop.f32.mrb[0].mxu0
        %v827 = vadd.f32 0.0, %v826
        %v828 = vpop.f32.mrb[0].mxu0
        %v829 = vpop.f32.mrb[0].mxu0
        %v830 = vadd.f32 0.0, %v829
        %v831 = vpop.f32.mrb[0].mxu0
        %832 = vmatprep.mubr.bf16.mxu0 0
        %833 = vmatmul.mubr.bf16.gmra.mrb[0].mxu0 %v780
        %v834 = vpop.f32.mrb[0].mxu0
        %v835 = vadd.f32 0.0, %v834
        %v836 = vpop.f32.mrb[0].mxu0
        %v837 = vpop.f32.mrb[0].mxu0
        %v838 = vadd.f32 0.0, %v837
        %v839 = vpop.f32.mrb[0].mxu0
        %840 = vmatprep.mubr.bf16.mxu0 0
        %841 = vmatmul.mubr.bf16.gmra.mrb[0].mxu0 %v783
        %v842 = vpop.f32.mrb[0].mxu0
        %v843 = vadd.f32 0.0, %v842
        %v844 = vpop.f32.mrb[0].mxu0
        %v845 = vpop.f32.mrb[0].mxu0
        %v846 = vadd.f32 0.0, %v845
        %v847 = vpop.f32.mrb[0].mxu0
        %848 = vmatprep.mubr.bf16.mxu0 0
        %849 = vmatmul.mubr.bf16.gmra.mrb[0].mxu0 %v786
        %v850 = vpop.f32.mrb[0].mxu0
        %v851 = vadd.f32 0.0, %v850
        %v852 = vpop.f32.mrb[0].mxu0
        %v853 = vpop.f32.mrb[0].mxu0
        %v854 = vpop.f32.mrb[0].mxu0
        %855 = vdwg.mxu0
        %v856 = vld [vmem:[%s6] sm:$0xf]
        %v857 = vld [vmem:[%s6 + $0x4] sm:$0xf]
        %v858 = vpack.c.bf16 %v830, %v827
        %v859 = vpack.c.bf16 %v838, %v835
        %v860 = vpack.c.bf16 %v846, %v843
        %v861 = vpack.c.bf16 %v851, %v851
        %s862 = scalar_lea.vmem %s4, 16
        %v863 = vld [vmem:[%s862] sm:$0xf]
        %v864 = vld [vmem:[%s862 + $0x4] sm:$0xf]
        %v865 = vld [vmem:[%s862 + $0x8] sm:$0xf]
        %v866 = vld [vmem:[%s862 + $0xc] sm:$0xf]
        %v867 = vld [vmem:[%s5 + $0x1] sm:$0x1]
        %v868 = vlaneseq
        %v869 = vshrl.u32 %v868, 7
        %v870 = vsub.s32 0, %v869
        %v871 = vrot.slane %v867, %v870
        %v876 = vunpack.c.l.b16 %v863
        %v877 = vunpack.c.l.b16 %v864
        %v878 = vunpack.c.l.b16 %v865
        %v879 = vunpack.c.l.b16 %v866
        %v880 = vpack.c.b16 %v877, %v876
        %v881 = vpack.c.b16 %v879, %v878
        %884 = vmatprep.subr.bf16.mxu0 0
        %885 = vmatpush1.bf16.msra.mxu0 %v880
        %886 = vmatprep.subr.bf16.mxu0 0
        %887 = vmatpush1.bf16.msra.mxu0 %v881
        %888 = vmatprep.subr.bf16.mxu0 0
        %889 = vmatpush1.bf16.msra.mxu0 0
        %890 = vmatprep.subr.bf16.mxu0 0
        %891 = vmatpush1.bf16.msra.mxu0 0
        %892 = vmatprep.subr.bf16.mxu0 0
        %893 = vmatpush1.bf16.msra.mxu0 0
        %894 = vmatprep.subr.bf16.mxu0 0
        %895 = vmatpush1.bf16.msra.mxu0 0
        %896 = vmatprep.subr.bf16.mxu0 0
        %897 = vmatpush1.bf16.msra.mxu0 0
        %898 = vmatprep.subr.bf16.mxu0 0
        %899 = vmatpush1.bf16.msra.mxu0 0
        %900 = vmatprep.subr.bf16.mxu0 0
        %901 = vmatpush1.bf16.msra.mxu0 0
        %902 = vmatprep.subr.bf16.mxu0 0
        %903 = vmatpush1.bf16.msra.mxu0 0
        %904 = vmatprep.subr.bf16.mxu0 0
        %905 = vmatpush1.bf16.msra.mxu0 0
        %906 = vmatprep.subr.bf16.mxu0 0
        %907 = vmatpush1.bf16.msra.mxu0 0
        %908 = vmatprep.subr.bf16.mxu0 0
        %909 = vmatpush1.bf16.msra.mxu0 0
        %910 = vmatprep.subr.bf16.mxu0 0
        %911 = vmatpush1.bf16.msra.mxu0 0
        %912 = vmatprep.subr.bf16.mxu0 0
        %913 = vmatpush1.bf16.msra.mxu0 0
        %914 = vmatprep.subr.bf16.mxu0 0
        %915 = vmatpush1.bf16.msra.mxu0 0
        %916 = vmatprep.mubr.bf16.mxu0 0
        %917 = vmatmul.mubr.bf16.gmra.mrb[0].mxu0 %v398
        %v918 = vpop.f32.mrb[0].mxu0
        %v919 = vadd.f32 %v871, %v918
        %v920 = vpop.f32.mrb[0].mxu0
        %v921 = vpop.f32.mrb[0].mxu0
        %v922 = vadd.f32 %v871, %v921
        %v923 = vpop.f32.mrb[0].mxu0
        %924 = vmatprep.mubr.bf16.mxu0 0
        %925 = vmatmul.mubr.bf16.gmra.mrb[0].mxu0 %v401
        %v926 = vpop.f32.mrb[0].mxu0
        %v927 = vadd.f32 %v871, %v926
        %v928 = vpop.f32.mrb[0].mxu0
        %v929 = vpop.f32.mrb[0].mxu0
        %v930 = vadd.f32 %v871, %v929
        %v931 = vpop.f32.mrb[0].mxu0
        %932 = vmatprep.mubr.bf16.mxu0 0
        %933 = vmatmul.mubr.bf16.gmra.mrb[0].mxu0 %v404
        %v934 = vpop.f32.mrb[0].mxu0
        %v935 = vadd.f32 %v871, %v934
        %v936 = vpop.f32.mrb[0].mxu0
        %v937 = vpop.f32.mrb[0].mxu0
        %v938 = vadd.f32 %v871, %v937
        %v939 = vpop.f32.mrb[0].mxu0
        %940 = vmatprep.mubr.bf16.mxu0 0
        %941 = vmatmul.mubr.bf16.gmra.mrb[0].mxu0 %v407
        %v942 = vpop.f32.mrb[0].mxu0
        %v943 = vadd.f32 %v871, %v942
        %v944 = vpop.f32.mrb[0].mxu0
        %v945 = vpop.f32.mrb[0].mxu0
        %v946 = vpop.f32.mrb[0].mxu0
        %947 = vdwg.mxu0
        %s948 = scalar_lea.vmem %s4, 48
        %v949 = vld [vmem:[%s948] sm:$0xf]
        %v950 = vld [vmem:[%s948 + $0x4] sm:$0xf]
        %v951 = vld [vmem:[%s948 + $0x8] sm:$0xf]
        %v952 = vld [vmem:[%s948 + $0xc] sm:$0xf]
        %v953 = vld [vmem:[%s5 + $0x3] sm:$0x1]
        %v954 = vlaneseq
        %v955 = vshrl.u32 %v954, 7
        %v956 = vsub.s32 0, %v955
        %v957 = vrot.slane %v953, %v956
        %v962 = vunpack.c.l.b16 %v949
        %v963 = vunpack.c.l.b16 %v950
        %v964 = vunpack.c.l.b16 %v951
        %v965 = vunpack.c.l.b16 %v952
        %v966 = vpack.c.b16 %v963, %v962
        %v967 = vpack.c.b16 %v965, %v964
        %970 = vmatprep.subr.bf16.mxu0 0
        %971 = vmatpush1.bf16.msra.mxu0 %v966
        %972 = vmatprep.subr.bf16.mxu0 0
        %973 = vmatpush1.bf16.msra.mxu0 %v967
        %974 = vmatprep.subr.bf16.mxu0 0
        %975 = vmatpush1.bf16.msra.mxu0 0
        %976 = vmatprep.subr.bf16.mxu0 0
        %977 = vmatpush1.bf16.msra.mxu0 0
        %978 = vmatprep.subr.bf16.mxu0 0
        %979 = vmatpush1.bf16.msra.mxu0 0
        %980 = vmatprep.subr.bf16.mxu0 0
        %981 = vmatpush1.bf16.msra.mxu0 0
        %982 = vmatprep.subr.bf16.mxu0 0
        %983 = vmatpush1.bf16.msra.mxu0 0
        %984 = vmatprep.subr.bf16.mxu0 0
        %985 = vmatpush1.bf16.msra.mxu0 0
        %986 = vmatprep.subr.bf16.mxu0 0
        %987 = vmatpush1.bf16.msra.mxu0 0
        %988 = vmatprep.subr.bf16.mxu0 0
        %989 = vmatpush1.bf16.msra.mxu0 0
        %990 = vmatprep.subr.bf16.mxu0 0
        %991 = vmatpush1.bf16.msra.mxu0 0
        %992 = vmatprep.subr.bf16.mxu0 0
        %993 = vmatpush1.bf16.msra.mxu0 0
        %994 = vmatprep.subr.bf16.mxu0 0
        %995 = vmatpush1.bf16.msra.mxu0 0
        %996 = vmatprep.subr.bf16.mxu0 0
        %997 = vmatpush1.bf16.msra.mxu0 0
        %998 = vmatprep.subr.bf16.mxu0 0
        %999 = vmatpush1.bf16.msra.mxu0 0
        %1000 = vmatprep.subr.bf16.mxu0 0
        %1001 = vmatpush1.bf16.msra.mxu0 0
        %1002 = vmatprep.mubr.bf16.mxu0 0
        %1003 = vmatmul.mubr.bf16.gmra.mrb[0].mxu0 %v497
        %v1004 = vpop.f32.mrb[0].mxu0
        %v1005 = vadd.f32 %v957, %v1004
        %v1006 = vpop.f32.mrb[0].mxu0
        %v1007 = vpop.f32.mrb[0].mxu0
        %v1008 = vpop.f32.mrb[0].mxu0
        %1009 = vdwg.mxu0
        %s1010 = scalar_lea.vmem %s4, 80
        %v1011 = vld [vmem:[%s1010] sm:$0xf]
        %v1012 = vld [vmem:[%s1010 + $0x4] sm:$0xf]
        %v1013 = vld [vmem:[%s1010 + $0x8] sm:$0xf]
        %v1014 = vld [vmem:[%s1010 + $0xc] sm:$0xf]
        %v1015 = vld [vmem:[%s5 + $0x5] sm:$0x1]
        %v1016 = vlaneseq
        %v1017 = vshrl.u32 %v1016, 7
        %v1018 = vsub.s32 0, %v1017
        %v1019 = vrot.slane %v1015, %v1018
        %v1024 = vunpack.c.l.b16 %v1011
        %v1025 = vunpack.c.l.b16 %v1012
        %v1026 = vunpack.c.l.b16 %v1013
        %v1027 = vunpack.c.l.b16 %v1014
        %v1028 = vpack.c.b16 %v1025, %v1024
        %v1029 = vpack.c.b16 %v1027, %v1026
        %1032 = vmatprep.subr.bf16.mxu0 0
        %1033 = vmatpush1.bf16.msra.mxu0 %v1028
        %1034 = vmatprep.subr.bf16.mxu0 0
        %1035 = vmatpush1.bf16.msra.mxu0 %v1029
        %1036 = vmatprep.subr.bf16.mxu0 0
        %1037 = vmatpush1.bf16.msra.mxu0 0
        %1038 = vmatprep.subr.bf16.mxu0 0
        %1039 = vmatpush1.bf16.msra.mxu0 0
        %1040 = vmatprep.subr.bf16.mxu0 0
        %1041 = vmatpush1.bf16.msra.mxu0 0
        %1042 = vmatprep.subr.bf16.mxu0 0
        %1043 = vmatpush1.bf16.msra.mxu0 0
        %1044 = vmatprep.subr.bf16.mxu0 0
        %1045 = vmatpush1.bf16.msra.mxu0 0
        %1046 = vmatprep.subr.bf16.mxu0 0
        %1047 = vmatpush1.bf16.msra.mxu0 0
        %1048 = vmatprep.subr.bf16.mxu0 0
        %1049 = vmatpush1.bf16.msra.mxu0 0
        %1050 = vmatprep.subr.bf16.mxu0 0
        %1051 = vmatpush1.bf16.msra.mxu0 0
        %1052 = vmatprep.subr.bf16.mxu0 0
        %1053 = vmatpush1.bf16.msra.mxu0 0
        %1054 = vmatprep.subr.bf16.mxu0 0
        %1055 = vmatpush1.bf16.msra.mxu0 0
        %1056 = vmatprep.subr.bf16.mxu0 0
        %1057 = vmatpush1.bf16.msra.mxu0 0
        %1058 = vmatprep.subr.bf16.mxu0 0
        %1059 = vmatpush1.bf16.msra.mxu0 0
        %1060 = vmatprep.subr.bf16.mxu0 0
        %1061 = vmatpush1.bf16.msra.mxu0 0
        %1062 = vmatprep.subr.bf16.mxu0 0
        %1063 = vmatpush1.bf16.msra.mxu0 0
        %1064 = vmatprep.mubr.bf16.mxu0 0
        %1065 = vmatmul.mubr.bf16.gmra.mrb[0].mxu0 %v497
        %v1066 = vpop.f32.mrb[0].mxu0
        %v1067 = vadd.f32 %v1019, %v1066
        %v1068 = vpop.f32.mrb[0].mxu0
        %v1069 = vpop.f32.mrb[0].mxu0
        %v1070 = vpop.f32.mrb[0].mxu0
        %1071 = vdwg.mxu0
        %v1072 = vpack.c.bf16 %v922, %v919
        %v1073 = vpack.c.bf16 %v930, %v927
        %v1074 = vpack.c.bf16 %v938, %v935
        %v1075 = vpack.c.bf16 %v943, %v943
        %v1076 = vpack.c.bf16 %v1005, %v1005
        %v1078 = vsel %vm606, %v1072, 0
        %v1081 = vsel %vm606, %v1073, 0
        %v1084 = vsel %vm606, %v1074, 0
        %v1087 = vsel %vm606, %v1075, 0
        %v1090 = vsel %vm606, %v1076, 0
        %1092 = vmatprep.subr.bf16.mxu0 0
        %1093 = vmatpush1.bf16.xpose.msra.mxu0 %v1090
        %1094 = vmatprep.subr.bf16.mxu0 0
        %1095 = vmatpush1.bf16.xpose.msra.mxu0 0
        %1096 = vmatprep.subr.bf16.mxu0 0
        %1097 = vmatpush1.bf16.xpose.msra.mxu0 0
        %1098 = vmatprep.subr.bf16.mxu0 0
        %1099 = vmatpush1.bf16.xpose.msra.mxu0 0
        %1100 = vmatprep.subr.bf16.mxu0 0
        %1101 = vmatpush1.bf16.xpose.msra.mxu0 0
        %1102 = vmatprep.subr.bf16.mxu0 0
        %1103 = vmatpush1.bf16.xpose.msra.mxu0 0
        %1104 = vmatprep.subr.bf16.mxu0 0
        %1105 = vmatpush1.bf16.xpose.msra.mxu0 0
        %1106 = vmatprep.subr.bf16.mxu0 0
        %1107 = vmatpush1.bf16.xpose.msra.mxu0 0
        %1108 = vmatprep.subr.bf16.mxu0 0
        %1109 = vmatpush1.bf16.xpose.msra.mxu0 0
        %1110 = vmatprep.subr.bf16.mxu0 0
        %1111 = vmatpush1.bf16.xpose.msra.mxu0 0
        %1112 = vmatprep.subr.bf16.mxu0 0
        %1113 = vmatpush1.bf16.xpose.msra.mxu0 0
        %1114 = vmatprep.subr.bf16.mxu0 0
        %1115 = vmatpush1.bf16.xpose.msra.mxu0 0
        %1116 = vmatprep.subr.bf16.mxu0 0
        %1117 = vmatpush1.bf16.xpose.msra.mxu0 0
        %1118 = vmatprep.subr.bf16.mxu0 0
        %1119 = vmatpush1.bf16.xpose.msra.mxu0 0
        %1120 = vmatprep.subr.bf16.mxu0 0
        %1121 = vmatpush1.bf16.xpose.msra.mxu0 0
        %1122 = vmatprep.subr.bf16.mxu0 0
        %1123 = vmatpush1.bf16.xpose.msra.mxu0 0
        %1124 = vmatprep.mubr.bf16.mxu0 0
        %1125 = vmatmul.mubr.bf16.gmra.mrb[0].mxu0 %v1078
        %v1126 = vpop.f32.mrb[0].mxu0
        %v1127 = vadd.f32 0.0, %v1126
        %v1128 = vpop.f32.mrb[0].mxu0
        %v1129 = vpop.f32.mrb[0].mxu0
        %v1130 = vadd.f32 0.0, %v1129
        %v1131 = vpop.f32.mrb[0].mxu0
        %1132 = vmatprep.mubr.bf16.mxu0 0
        %1133 = vmatmul.mubr.bf16.gmra.mrb[0].mxu0 %v1081
        %v1134 = vpop.f32.mrb[0].mxu0
        %v1135 = vadd.f32 0.0, %v1134
        %v1136 = vpop.f32.mrb[0].mxu0
        %v1137 = vpop.f32.mrb[0].mxu0
        %v1138 = vadd.f32 0.0, %v1137
        %v1139 = vpop.f32.mrb[0].mxu0
        %1140 = vmatprep.mubr.bf16.mxu0 0
        %1141 = vmatmul.mubr.bf16.gmra.mrb[0].mxu0 %v1084
        %v1142 = vpop.f32.mrb[0].mxu0
        %v1143 = vadd.f32 0.0, %v1142
        %v1144 = vpop.f32.mrb[0].mxu0
        %v1145 = vpop.f32.mrb[0].mxu0
        %v1146 = vadd.f32 0.0, %v1145
        %v1147 = vpop.f32.mrb[0].mxu0
        %1148 = vmatprep.mubr.bf16.mxu0 0
        %1149 = vmatmul.mubr.bf16.gmra.mrb[0].mxu0 %v1087
        %v1150 = vpop.f32.mrb[0].mxu0
        %v1151 = vadd.f32 0.0, %v1150
        %v1152 = vpop.f32.mrb[0].mxu0
        %v1153 = vpop.f32.mrb[0].mxu0
        %v1154 = vpop.f32.mrb[0].mxu0
        %1155 = vdwg.mxu0
        %v1156 = vmul.f32 %v1127, 0.25
        %v1157 = vmul.f32 %v1130, 0.25
        %v1158 = vmul.f32 %v1135, 0.25
        %v1159 = vmul.f32 %v1138, 0.25
        %v1160 = vmul.f32 %v1143, 0.25
        %v1161 = vmul.f32 %v1146, 0.25
        %v1162 = vmul.f32 %v1151, 0.25
        %v1163 = vsel %vm693, %v1156, -inf
        %1164 = vmax.xlane.f32.xlu0 %v1163
        %v1165 = vpop.xlane.xlu0 %1164
        %v1166 = vsel %vm693, %v1157, -inf
        %1167 = vmax.xlane.f32.xlu0 %v1166
        %v1168 = vpop.xlane.xlu0 %1167
        %v1169 = vsel %vm693, %v1158, -inf
        %1170 = vmax.xlane.f32.xlu0 %v1169
        %v1171 = vpop.xlane.xlu0 %1170
        %v1172 = vsel %vm693, %v1159, -inf
        %1173 = vmax.xlane.f32.xlu0 %v1172
        %v1174 = vpop.xlane.xlu0 %1173
        %v1175 = vsel %vm693, %v1160, -inf
        %1176 = vmax.xlane.f32.xlu0 %v1175
        %v1177 = vpop.xlane.xlu0 %1176
        %v1178 = vsel %vm693, %v1161, -inf
        %1179 = vmax.xlane.f32.xlu0 %v1178
        %v1180 = vpop.xlane.xlu0 %1179
        %v1181 = vsel %vm693, %v1162, -inf
        %1182 = vmax.xlane.f32.xlu0 %v1181
        %v1183 = vpop.xlane.xlu0 %1182
        %v1184 = vsub.f32 %v1156, %v1165
        %v1185 = vsub.f32 %v1157, %v1168
        %v1186 = vsub.f32 %v1158, %v1171
        %v1187 = vsub.f32 %v1159, %v1174
        %v1188 = vsub.f32 %v1160, %v1177
        %v1189 = vsub.f32 %v1161, %v1180
        %v1190 = vsub.f32 %v1162, %v1183
        %v1191 = vmul.f32 %v1184, 1.442695
        %v1192 = vpow.pop %v1191
        %v1193 = vmul.f32 %v1185, 1.442695
        %v1194 = vpow.pop %v1193
        %v1195 = vmul.f32 %v1186, 1.442695
        %v1196 = vpow.pop %v1195
        %v1197 = vmul.f32 %v1187, 1.442695
        %v1198 = vpow.pop %v1197
        %v1199 = vmul.f32 %v1188, 1.442695
        %v1200 = vpow.pop %v1199
        %v1201 = vmul.f32 %v1189, 1.442695
        %v1202 = vpow.pop %v1201
        %v1203 = vmul.f32 %v1190, 1.442695
        %v1204 = vpow.pop %v1203
        %v1205 = vsel %vm693, %v1192, 0.0
        %1206 = vadd.xlane.f32.xlu0 %v1205
        %v1207 = vpop.xlane.xlu0 %1206
        %v1208 = vsel %vm693, %v1194, 0.0
        %1209 = vadd.xlane.f32.xlu0 %v1208
        %v1210 = vpop.xlane.xlu0 %1209
        %v1211 = vsel %vm693, %v1196, 0.0
        %1212 = vadd.xlane.f32.xlu0 %v1211
        %v1213 = vpop.xlane.xlu0 %1212
        %v1214 = vsel %vm693, %v1198, 0.0
        %1215 = vadd.xlane.f32.xlu0 %v1214
        %v1216 = vpop.xlane.xlu0 %1215
        %v1217 = vsel %vm693, %v1200, 0.0
        %1218 = vadd.xlane.f32.xlu0 %v1217
        %v1219 = vpop.xlane.xlu0 %1218
        %v1220 = vsel %vm693, %v1202, 0.0
        %1221 = vadd.xlane.f32.xlu0 %v1220
        %v1222 = vpop.xlane.xlu0 %1221
        %v1223 = vsel %vm693, %v1204, 0.0
        %1224 = vadd.xlane.f32.xlu0 %v1223
        %v1225 = vpop.xlane.xlu0 %1224
        %v1226 = vrcp.pop %v1207
        %v1227 = vmul.f32 %v1192, %v1226
        %v1228 = vrcp.pop %v1210
        %v1229 = vmul.f32 %v1194, %v1228
        %v1230 = vrcp.pop %v1213
        %v1231 = vmul.f32 %v1196, %v1230
        %v1232 = vrcp.pop %v1216
        %v1233 = vmul.f32 %v1198, %v1232
        %v1234 = vrcp.pop %v1219
        %v1235 = vmul.f32 %v1200, %v1234
        %v1236 = vrcp.pop %v1222
        %v1237 = vmul.f32 %v1202, %v1236
        %v1238 = vrcp.pop %v1225
        %v1239 = vmul.f32 %v1204, %v1238
        %v1240 = vpack.c.bf16 %v1229, %v1227
        %v1241 = vpack.c.bf16 %v1233, %v1231
        %v1242 = vpack.c.bf16 %v1237, %v1235
        %v1243 = vpack.c.bf16 %v1239, %v1239
        %v1244 = vpack.c.bf16 %v1067, %v1067
        %v1246 = vsel %vm693, %v1240, 0
        %v1249 = vsel %vm693, %v1241, 0
        %v1252 = vsel %vm693, %v1242, 0
        %v1255 = vsel %vm693, %v1243, 0
        %v1258 = vsel %vm788, %v1244, 0
        %1260 = vmatprep.subr.bf16.mxu0 0
        %1261 = vmatpush1.bf16.msra.mxu0 %v1258
        %1262 = vmatprep.subr.bf16.mxu0 0
        %1263 = vmatpush1.bf16.msra.mxu0 0
        %1264 = vmatprep.subr.bf16.mxu0 0
        %1265 = vmatpush1.bf16.msra.mxu0 0
        %1266 = vmatprep.subr.bf16.mxu0 0
        %1267 = vmatpush1.bf16.msra.mxu0 0
        %1268 = vmatprep.subr.bf16.mxu0 0
        %1269 = vmatpush1.bf16.msra.mxu0 0
        %1270 = vmatprep.subr.bf16.mxu0 0
        %1271 = vmatpush1.bf16.msra.mxu0 0
        %1272 = vmatprep.subr.bf16.mxu0 0
        %1273 = vmatpush1.bf16.msra.mxu0 0
        %1274 = vmatprep.subr.bf16.mxu0 0
        %1275 = vmatpush1.bf16.msra.mxu0 0
        %1276 = vmatprep.subr.bf16.mxu0 0
        %1277 = vmatpush1.bf16.msra.mxu0 0
        %1278 = vmatprep.subr.bf16.mxu0 0
        %1279 = vmatpush1.bf16.msra.mxu0 0
        %1280 = vmatprep.subr.bf16.mxu0 0
        %1281 = vmatpush1.bf16.msra.mxu0 0
        %1282 = vmatprep.subr.bf16.mxu0 0
        %1283 = vmatpush1.bf16.msra.mxu0 0
        %1284 = vmatprep.subr.bf16.mxu0 0
        %1285 = vmatpush1.bf16.msra.mxu0 0
        %1286 = vmatprep.subr.bf16.mxu0 0
        %1287 = vmatpush1.bf16.msra.mxu0 0
        %1288 = vmatprep.subr.bf16.mxu0 0
        %1289 = vmatpush1.bf16.msra.mxu0 0
        %1290 = vmatprep.subr.bf16.mxu0 0
        %1291 = vmatpush1.bf16.msra.mxu0 0
        %1292 = vmatprep.mubr.bf16.mxu0 0
        %1293 = vmatmul.mubr.bf16.gmra.mrb[0].mxu0 %v1246
        %v1294 = vpop.f32.mrb[0].mxu0
        %v1295 = vadd.f32 0.0, %v1294
        %v1296 = vpop.f32.mrb[0].mxu0
        %v1297 = vpop.f32.mrb[0].mxu0
        %v1298 = vadd.f32 0.0, %v1297
        %v1299 = vpop.f32.mrb[0].mxu0
        %1300 = vmatprep.mubr.bf16.mxu0 0
        %1301 = vmatmul.mubr.bf16.gmra.mrb[0].mxu0 %v1249
        %v1302 = vpop.f32.mrb[0].mxu0
        %v1303 = vadd.f32 0.0, %v1302
        %v1304 = vpop.f32.mrb[0].mxu0
        %v1305 = vpop.f32.mrb[0].mxu0
        %v1306 = vadd.f32 0.0, %v1305
        %v1307 = vpop.f32.mrb[0].mxu0
        %1308 = vmatprep.mubr.bf16.mxu0 0
        %1309 = vmatmul.mubr.bf16.gmra.mrb[0].mxu0 %v1252
        %v1310 = vpop.f32.mrb[0].mxu0
        %v1311 = vadd.f32 0.0, %v1310
        %v1312 = vpop.f32.mrb[0].mxu0
        %v1313 = vpop.f32.mrb[0].mxu0
        %v1314 = vadd.f32 0.0, %v1313
        %v1315 = vpop.f32.mrb[0].mxu0
        %1316 = vmatprep.mubr.bf16.mxu0 0
        %1317 = vmatmul.mubr.bf16.gmra.mrb[0].mxu0 %v1255
        %v1318 = vpop.f32.mrb[0].mxu0
        %v1319 = vadd.f32 0.0, %v1318
        %v1320 = vpop.f32.mrb[0].mxu0
        %v1321 = vpop.f32.mrb[0].mxu0
        %v1322 = vpop.f32.mrb[0].mxu0
        %1323 = vdwg.mxu0
        %s1324 = scalar_lea.vmem %s6, 8
        %v1325 = vld [vmem:[%s1324] sm:$0xf]
        %v1326 = vld [vmem:[%s1324 + $0x4] sm:$0xf]
        %v1327 = vpack.c.bf16 %v1298, %v1295
        %v1328 = vpack.c.bf16 %v1306, %v1303
        %v1329 = vpack.c.bf16 %v1314, %v1311
        %v1330 = vpack.c.bf16 %v1319, %v1319
        %v1333 = vunpack.c.l.b16 %v1325
        %v1334 = vunpack.c.l.b16 %v1326
        %v1335 = vpack.c.b16 %v1334, %v1333
        %v1338 = vsel %vm606, %v1327, 0
        %v1341 = vsel %vm606, %v1328, 0
        %v1344 = vsel %vm606, %v1329, 0
        %v1347 = vsel %vm606, %v1330, 0
        %1349 = vmatprep.subr.bf16.mxu0 0
        %1350 = vmatpush1.bf16.msra.mxu0 %v1335
        %1351 = vmatprep.subr.bf16.mxu0 0
        %1352 = vmatpush1.bf16.msra.mxu0 0
        %1353 = vmatprep.subr.bf16.mxu0 0
        %1354 = vmatpush1.bf16.msra.mxu0 0
        %1355 = vmatprep.subr.bf16.mxu0 0
        %1356 = vmatpush1.bf16.msra.mxu0 0
        %1357 = vmatprep.subr.bf16.mxu0 0
        %1358 = vmatpush1.bf16.msra.mxu0 0
        %1359 = vmatprep.subr.bf16.mxu0 0
        %1360 = vmatpush1.bf16.msra.mxu0 0
        %1361 = vmatprep.subr.bf16.mxu0 0
        %1362 = vmatpush1.bf16.msra.mxu0 0
        %1363 = vmatprep.subr.bf16.mxu0 0
        %1364 = vmatpush1.bf16.msra.mxu0 0
        %1365 = vmatprep.subr.bf16.mxu0 0
        %1366 = vmatpush1.bf16.msra.mxu0 0
        %1367 = vmatprep.subr.bf16.mxu0 0
        %1368 = vmatpush1.bf16.msra.mxu0 0
        %1369 = vmatprep.subr.bf16.mxu0 0
        %1370 = vmatpush1.bf16.msra.mxu0 0
        %1371 = vmatprep.subr.bf16.mxu0 0
        %1372 = vmatpush1.bf16.msra.mxu0 0
        %1373 = vmatprep.subr.bf16.mxu0 0
        %1374 = vmatpush1.bf16.msra.mxu0 0
        %1375 = vmatprep.subr.bf16.mxu0 0
        %1376 = vmatpush1.bf16.msra.mxu0 0
        %1377 = vmatprep.subr.bf16.mxu0 0
        %1378 = vmatpush1.bf16.msra.mxu0 0
        %1379 = vmatprep.subr.bf16.mxu0 0
        %1380 = vmatpush1.bf16.msra.mxu0 0
        %1381 = vmatprep.mubr.bf16.mxu0 0
        %1382 = vmatmul.mubr.bf16.gmra.mrb[0].mxu0 %v1338
        %v1383 = vpop.f32.mrb[0].mxu0
        %v1384 = vadd.f32 0.0, %v1383
        %v1385 = vpop.f32.mrb[0].mxu0
        %v1386 = vpop.f32.mrb[0].mxu0
        %v1387 = vadd.f32 0.0, %v1386
        %v1388 = vpop.f32.mrb[0].mxu0
        %1389 = vmatprep.mubr.bf16.mxu0 0
        %1390 = vmatmul.mubr.bf16.gmra.mrb[0].mxu0 %v1341
        %v1391 = vpop.f32.mrb[0].mxu0
        %v1392 = vadd.f32 0.0, %v1391
        %v1393 = vpop.f32.mrb[0].mxu0
        %v1394 = vpop.f32.mrb[0].mxu0
        %v1395 = vadd.f32 0.0, %v1394
        %v1396 = vpop.f32.mrb[0].mxu0
        %1397 = vmatprep.mubr.bf16.mxu0 0
        %1398 = vmatmul.mubr.bf16.gmra.mrb[0].mxu0 %v1344
        %v1399 = vpop.f32.mrb[0].mxu0
        %v1400 = vadd.f32 0.0, %v1399
        %v1401 = vpop.f32.mrb[0].mxu0
        %v1402 = vpop.f32.mrb[0].mxu0
        %v1403 = vadd.f32 0.0, %v1402
        %v1404 = vpop.f32.mrb[0].mxu0
        %1405 = vmatprep.mubr.bf16.mxu0 0
        %1406 = vmatmul.mubr.bf16.gmra.mrb[0].mxu0 %v1347
        %v1407 = vpop.f32.mrb[0].mxu0
        %v1408 = vadd.f32 0.0, %v1407
        %v1409 = vpop.f32.mrb[0].mxu0
        %v1410 = vpop.f32.mrb[0].mxu0
        %v1411 = vpop.f32.mrb[0].mxu0
        %1412 = vdwg.mxu0
        %v1415 = vunpack.c.l.b16 %v856
        %v1416 = vunpack.c.l.b16 %v857
        %v1417 = vpack.c.b16 %v1416, %v1415
        %v1420 = vsel %vm606, %v858, 0
        %v1423 = vsel %vm606, %v859, 0
        %v1426 = vsel %vm606, %v860, 0
        %v1429 = vsel %vm606, %v861, 0
        %1431 = vmatprep.subr.bf16.mxu0 0
        %1432 = vmatpush1.bf16.msra.mxu0 %v1417
        %1433 = vmatprep.subr.bf16.mxu0 0
        %1434 = vmatpush1.bf16.msra.mxu0 0
        %1435 = vmatprep.subr.bf16.mxu0 0
        %1436 = vmatpush1.bf16.msra.mxu0 0
        %1437 = vmatprep.subr.bf16.mxu0 0
        %1438 = vmatpush1.bf16.msra.mxu0 0
        %1439 = vmatprep.subr.bf16.mxu0 0
        %1440 = vmatpush1.bf16.msra.mxu0 0
        %1441 = vmatprep.subr.bf16.mxu0 0
        %1442 = vmatpush1.bf16.msra.mxu0 0
        %1443 = vmatprep.subr.bf16.mxu0 0
        %1444 = vmatpush1.bf16.msra.mxu0 0
        %1445 = vmatprep.subr.bf16.mxu0 0
        %1446 = vmatpush1.bf16.msra.mxu0 0
        %1447 = vmatprep.subr.bf16.mxu0 0
        %1448 = vmatpush1.bf16.msra.mxu0 0
        %1449 = vmatprep.subr.bf16.mxu0 0
        %1450 = vmatpush1.bf16.msra.mxu0 0
        %1451 = vmatprep.subr.bf16.mxu0 0
        %1452 = vmatpush1.bf16.msra.mxu0 0
        %1453 = vmatprep.subr.bf16.mxu0 0
        %1454 = vmatpush1.bf16.msra.mxu0 0
        %1455 = vmatprep.subr.bf16.mxu0 0
        %1456 = vmatpush1.bf16.msra.mxu0 0
        %1457 = vmatprep.subr.bf16.mxu0 0
        %1458 = vmatpush1.bf16.msra.mxu0 0
        %1459 = vmatprep.subr.bf16.mxu0 0
        %1460 = vmatpush1.bf16.msra.mxu0 0
        %1461 = vmatprep.subr.bf16.mxu0 0
        %1462 = vmatpush1.bf16.msra.mxu0 0
        %1463 = vmatprep.mubr.bf16.mxu0 0
        %1464 = vmatmul.mubr.bf16.gmra.mrb[0].mxu0 %v1420
        %v1465 = vpop.f32.mrb[0].mxu0
        %v1466 = vadd.f32 %v1384, %v1465
        %v1467 = vpop.f32.mrb[0].mxu0
        %v1468 = vpop.f32.mrb[0].mxu0
        %v1469 = vadd.f32 %v1387, %v1468
        %v1470 = vpop.f32.mrb[0].mxu0
        %1471 = vmatprep.mubr.bf16.mxu0 0
        %1472 = vmatmul.mubr.bf16.gmra.mrb[0].mxu0 %v1423
        %v1473 = vpop.f32.mrb[0].mxu0
        %v1474 = vadd.f32 %v1392, %v1473
        %v1475 = vpop.f32.mrb[0].mxu0
        %v1476 = vpop.f32.mrb[0].mxu0
        %v1477 = vadd.f32 %v1395, %v1476
        %v1478 = vpop.f32.mrb[0].mxu0
        %1479 = vmatprep.mubr.bf16.mxu0 0
        %1480 = vmatmul.mubr.bf16.gmra.mrb[0].mxu0 %v1426
        %v1481 = vpop.f32.mrb[0].mxu0
        %v1482 = vadd.f32 %v1400, %v1481
        %v1483 = vpop.f32.mrb[0].mxu0
        %v1484 = vpop.f32.mrb[0].mxu0
        %v1485 = vadd.f32 %v1403, %v1484
        %v1486 = vpop.f32.mrb[0].mxu0
        %1487 = vmatprep.mubr.bf16.mxu0 0
        %1488 = vmatmul.mubr.bf16.gmra.mrb[0].mxu0 %v1429
        %v1489 = vpop.f32.mrb[0].mxu0
        %v1490 = vadd.f32 %v1408, %v1489
        %v1491 = vpop.f32.mrb[0].mxu0
        %v1492 = vpop.f32.mrb[0].mxu0
        %v1493 = vpop.f32.mrb[0].mxu0
        %1494 = vdwg.mxu0
        %v1495 = vld [vmem:[%s8] sm:$0x1]
        %v1496 = vlaneseq
        %v1497 = vshrl.u32 %v1496, 7
        %v1498 = vsub.s32 0, %v1497
        %v1499 = vrot.slane %v1495, %v1498
        %v1500 = vadd.f32 %v1466, %v1499
        %v1501 = vadd.f32 %v1469, %v1499
        %v1502 = vadd.f32 %v1474, %v1499
        %v1503 = vadd.f32 %v1477, %v1499
        %v1504 = vadd.f32 %v1482, %v1499
        %v1505 = vadd.f32 %v1485, %v1499
        %v1506 = vadd.f32 %v1490, %v1499
        %v1507 = vmax.f32 %v1500, 0.0
        %v1508 = vmax.f32 %v1501, 0.0
        %v1509 = vmax.f32 %v1502, 0.0
        %v1510 = vmax.f32 %v1503, 0.0
        %v1511 = vmax.f32 %v1504, 0.0
        %v1512 = vmax.f32 %v1505, 0.0
        %v1513 = vmax.f32 %v1506, 0.0
        %v1514 = vadd.f32 %v1507, %v362
        %v1515 = vadd.f32 %v1508, %v363
        %v1516 = vadd.f32 %v1509, %v364
        %v1517 = vadd.f32 %v1510, %v365
        %v1518 = vadd.f32 %v1511, %v366
        %v1519 = vadd.f32 %v1512, %v367
        %v1520 = vadd.f32 %v1513, %v368
        %v1521 = vld [vmem:[%s8 + $0x1] sm:$0x1]
        %v1522 = vld [vmem:[%s8 + $0x2] sm:$0x1]
        %v1523 = vsel %vm396, %v1514, 0.0
        %1524 = vadd.xlane.f32.xlu0 %v1523
        %v1525 = vpop.xlane.xlu0 %1524
        %v1526 = vsel %vm396, %v1515, 0.0
        %1527 = vadd.xlane.f32.xlu0 %v1526
        %v1528 = vpop.xlane.xlu0 %1527
        %v1529 = vsel %vm396, %v1516, 0.0
        %1530 = vadd.xlane.f32.xlu0 %v1529
        %v1531 = vpop.xlane.xlu0 %1530
        %v1532 = vsel %vm396, %v1517, 0.0
        %1533 = vadd.xlane.f32.xlu0 %v1532
        %v1534 = vpop.xlane.xlu0 %1533
        %v1535 = vsel %vm396, %v1518, 0.0
        %1536 = vadd.xlane.f32.xlu0 %v1535
        %v1537 = vpop.xlane.xlu0 %1536
        %v1538 = vsel %vm396, %v1519, 0.0
        %1539 = vadd.xlane.f32.xlu0 %v1538
        %v1540 = vpop.xlane.xlu0 %1539
        %v1541 = vsel %vm396, %v1520, 0.0
        %1542 = vadd.xlane.f32.xlu0 %v1541
        %v1543 = vpop.xlane.xlu0 %1542
        %v1544 = vrcp.pop 32.0
        %v1545 = vmul.f32 %v1525, %v1544
        %v1546 = vmul.f32 %v1528, %v1544
        %v1547 = vmul.f32 %v1531, %v1544
        %v1548 = vmul.f32 %v1534, %v1544
        %v1549 = vmul.f32 %v1537, %v1544
        %v1550 = vmul.f32 %v1540, %v1544
        %v1551 = vmul.f32 %v1543, %v1544
        %v1552 = vsub.f32 %v1514, %v1545
        %v1553 = vsub.f32 %v1515, %v1546
        %v1554 = vsub.f32 %v1516, %v1547
        %v1555 = vsub.f32 %v1517, %v1548
        %v1556 = vsub.f32 %v1518, %v1549
        %v1557 = vsub.f32 %v1519, %v1550
        %v1558 = vsub.f32 %v1520, %v1551
        %v1559 = vmul.f32 %v1552, %v1552
        %v1560 = vmul.f32 %v1553, %v1553
        %v1561 = vmul.f32 %v1554, %v1554
        %v1562 = vmul.f32 %v1555, %v1555
        %v1563 = vmul.f32 %v1556, %v1556
        %v1564 = vmul.f32 %v1557, %v1557
        %v1565 = vmul.f32 %v1558, %v1558
        %v1566 = vsel %vm396, %v1559, 0.0
        %1567 = vadd.xlane.f32.xlu0 %v1566
        %v1568 = vpop.xlane.xlu0 %1567
        %v1569 = vsel %vm396, %v1560, 0.0
        %1570 = vadd.xlane.f32.xlu0 %v1569
        %v1571 = vpop.xlane.xlu0 %1570
        %v1572 = vsel %vm396, %v1561, 0.0
        %1573 = vadd.xlane.f32.xlu0 %v1572
        %v1574 = vpop.xlane.xlu0 %1573
        %v1575 = vsel %vm396, %v1562, 0.0
        %1576 = vadd.xlane.f32.xlu0 %v1575
        %v1577 = vpop.xlane.xlu0 %1576
        %v1578 = vsel %vm396, %v1563, 0.0
        %1579 = vadd.xlane.f32.xlu0 %v1578
        %v1580 = vpop.xlane.xlu0 %1579
        %v1581 = vsel %vm396, %v1564, 0.0
        %1582 = vadd.xlane.f32.xlu0 %v1581
        %v1583 = vpop.xlane.xlu0 %1582
        %v1584 = vsel %vm396, %v1565, 0.0
        %1585 = vadd.xlane.f32.xlu0 %v1584
        %v1586 = vpop.xlane.xlu0 %1585
        %v1587 = vmul.f32 %v1568, %v1544
        %v1588 = vmul.f32 %v1571, %v1544
        %v1589 = vmul.f32 %v1574, %v1544
        %v1590 = vmul.f32 %v1577, %v1544
        %v1591 = vmul.f32 %v1580, %v1544
        %v1592 = vmul.f32 %v1583, %v1544
        %v1593 = vmul.f32 %v1586, %v1544
        %v1594 = vadd.f32 %v1587, 1e-05
        %v1595 = vadd.f32 %v1588, 1e-05
        %v1596 = vadd.f32 %v1589, 1e-05
        %v1597 = vadd.f32 %v1590, 1e-05
        %v1598 = vadd.f32 %v1591, 1e-05
        %v1599 = vadd.f32 %v1592, 1e-05
        %v1600 = vadd.f32 %v1593, 1e-05
        %v1601 = vrsqrt.pop %v1594
        %v1602 = vrsqrt.pop %v1595
        %v1603 = vrsqrt.pop %v1596
        %v1604 = vrsqrt.pop %v1597
        %v1605 = vrsqrt.pop %v1598
        %v1606 = vrsqrt.pop %v1599
        %v1607 = vrsqrt.pop %v1600
        %v1608 = vmul.f32 %v1552, %v1601
        %v1609 = vmul.f32 %v1553, %v1602
        %v1610 = vmul.f32 %v1554, %v1603
        %v1611 = vmul.f32 %v1555, %v1604
        %v1612 = vmul.f32 %v1556, %v1605
        %v1613 = vmul.f32 %v1557, %v1606
        %v1614 = vmul.f32 %v1558, %v1607
        %v1615 = vlaneseq
        %v1616 = vshrl.u32 %v1615, 7
        %v1617 = vsub.s32 0, %v1616
        %v1618 = vrot.slane %v1521, %v1617
        %v1619 = vmul.f32 %v1608, %v1618
        %v1620 = vmul.f32 %v1609, %v1618
        %v1621 = vmul.f32 %v1610, %v1618
        %v1622 = vmul.f32 %v1611, %v1618
        %v1623 = vmul.f32 %v1612, %v1618
        %v1624 = vmul.f32 %v1613, %v1618
        %v1625 = vmul.f32 %v1614, %v1618
        %v1626 = vlaneseq
        %v1627 = vshrl.u32 %v1626, 7
        %v1628 = vsub.s32 0, %v1627
        %v1629 = vrot.slane %v1522, %v1628
        %v1630 = vadd.f32 %v1619, %v1629
        %v1631 = vadd.f32 %v1620, %v1629
        %v1632 = vadd.f32 %v1621, %v1629
        %v1633 = vadd.f32 %v1622, %v1629
        %v1634 = vadd.f32 %v1623, %v1629
        %v1635 = vadd.f32 %v1624, %v1629
        %v1636 = vadd.f32 %v1625, %v1629
        %s1637 = scalar_lea.vmem %s4, 96
        %v1638 = vld [vmem:[%s1637] sm:$0xf]
        %v1639 = vld [vmem:[%s1637 + $0x4] sm:$0xf]
        %v1640 = vld [vmem:[%s1637 + $0x8] sm:$0xf]
        %v1641 = vld [vmem:[%s1637 + $0xc] sm:$0xf]
        %v1642 = vpack.c.bf16 %v1631, %v1630
        %v1643 = vpack.c.bf16 %v1633, %v1632
        %v1644 = vpack.c.bf16 %v1635, %v1634
        %v1645 = vpack.c.bf16 %v1636, %v1636
        %v1646 = vld [vmem:[%s5 + $0x6] sm:$0x1]
        %v1647 = vlaneseq
        %v1648 = vshrl.u32 %v1647, 7
        %v1649 = vsub.s32 0, %v1648
        %v1650 = vrot.slane %v1646, %v1649
        %v1655 = vunpack.c.l.b16 %v1638
        %v1656 = vunpack.c.l.b16 %v1639
        %v1657 = vunpack.c.l.b16 %v1640
        %v1658 = vunpack.c.l.b16 %v1641
        %v1659 = vpack.c.b16 %v1656, %v1655
        %v1660 = vpack.c.b16 %v1658, %v1657
        %v1664 = vsel %vm396, %v1642, 0
        %v1667 = vsel %vm396, %v1643, 0
        %v1670 = vsel %vm396, %v1644, 0
        %v1673 = vsel %vm396, %v1645, 0
        %1675 = vmatprep.subr.bf16.mxu0 0
        %1676 = vmatpush1.bf16.msra.mxu0 %v1659
        %1677 = vmatprep.subr.bf16.mxu0 0
        %1678 = vmatpush1.bf16.msra.mxu0 %v1660
        %1679 = vmatprep.subr.bf16.mxu0 0
        %1680 = vmatpush1.bf16.msra.mxu0 0
        %1681 = vmatprep.subr.bf16.mxu0 0
        %1682 = vmatpush1.bf16.msra.mxu0 0
        %1683 = vmatprep.subr.bf16.mxu0 0
        %1684 = vmatpush1.bf16.msra.mxu0 0
        %1685 = vmatprep.subr.bf16.mxu0 0
        %1686 = vmatpush1.bf16.msra.mxu0 0
        %1687 = vmatprep.subr.bf16.mxu0 0
        %1688 = vmatpush1.bf16.msra.mxu0 0
        %1689 = vmatprep.subr.bf16.mxu0 0
        %1690 = vmatpush1.bf16.msra.mxu0 0
        %1691 = vmatprep.subr.bf16.mxu0 0
        %1692 = vmatpush1.bf16.msra.mxu0 0
        %1693 = vmatprep.subr.bf16.mxu0 0
        %1694 = vmatpush1.bf16.msra.mxu0 0
        %1695 = vmatprep.subr.bf16.mxu0 0
        %1696 = vmatpush1.bf16.msra.mxu0 0
        %1697 = vmatprep.subr.bf16.mxu0 0
        %1698 = vmatpush1.bf16.msra.mxu0 0
        %1699 = vmatprep.subr.bf16.mxu0 0
        %1700 = vmatpush1.bf16.msra.mxu0 0
        %1701 = vmatprep.subr.bf16.mxu0 0
        %1702 = vmatpush1.bf16.msra.mxu0 0
        %1703 = vmatprep.subr.bf16.mxu0 0
        %1704 = vmatpush1.bf16.msra.mxu0 0
        %1705 = vmatprep.subr.bf16.mxu0 0
        %1706 = vmatpush1.bf16.msra.mxu0 0
        %1707 = vmatprep.mubr.bf16.mxu0 0
        %1708 = vmatmul.mubr.bf16.gmra.mrb[0].mxu0 %v1664
        %v1709 = vpop.f32.mrb[0].mxu0
        %v1710 = vadd.f32 %v1650, %v1709
        %v1711 = vpop.f32.mrb[0].mxu0
        %v1712 = vpop.f32.mrb[0].mxu0
        %v1713 = vadd.f32 %v1650, %v1712
        %v1714 = vpop.f32.mrb[0].mxu0
        %1715 = vmatprep.mubr.bf16.mxu0 0
        %1716 = vmatmul.mubr.bf16.gmra.mrb[0].mxu0 %v1667
        %v1717 = vpop.f32.mrb[0].mxu0
        %v1718 = vadd.f32 %v1650, %v1717
        %v1719 = vpop.f32.mrb[0].mxu0
        %v1720 = vpop.f32.mrb[0].mxu0
        %v1721 = vadd.f32 %v1650, %v1720
        %v1722 = vpop.f32.mrb[0].mxu0
        %1723 = vmatprep.mubr.bf16.mxu0 0
        %1724 = vmatmul.mubr.bf16.gmra.mrb[0].mxu0 %v1670
        %v1725 = vpop.f32.mrb[0].mxu0
        %v1726 = vadd.f32 %v1650, %v1725
        %v1727 = vpop.f32.mrb[0].mxu0
        %v1728 = vpop.f32.mrb[0].mxu0
        %v1729 = vadd.f32 %v1650, %v1728
        %v1730 = vpop.f32.mrb[0].mxu0
        %1731 = vmatprep.mubr.bf16.mxu0 0
        %1732 = vmatmul.mubr.bf16.gmra.mrb[0].mxu0 %v1673
        %v1733 = vpop.f32.mrb[0].mxu0
        %v1734 = vadd.f32 %v1650, %v1733
        %v1735 = vpop.f32.mrb[0].mxu0
        %v1736 = vpop.f32.mrb[0].mxu0
        %v1737 = vpop.f32.mrb[0].mxu0
        %1738 = vdwg.mxu0
        %s1739 = scalar_lea.vmem %s4, 128
        %v1740 = vld [vmem:[%s1739] sm:$0xf]
        %v1741 = vld [vmem:[%s1739 + $0x4] sm:$0xf]
        %v1742 = vld [vmem:[%s1739 + $0x8] sm:$0xf]
        %v1743 = vld [vmem:[%s1739 + $0xc] sm:$0xf]
        %v1744 = vld [vmem:[%s5 + $0x8] sm:$0x1]
        %v1745 = vlaneseq
        %v1746 = vshrl.u32 %v1745, 7
        %v1747 = vsub.s32 0, %v1746
        %v1748 = vrot.slane %v1744, %v1747
        %v1753 = vunpack.c.l.b16 %v1740
        %v1754 = vunpack.c.l.b16 %v1741
        %v1755 = vunpack.c.l.b16 %v1742
        %v1756 = vunpack.c.l.b16 %v1743
        %v1757 = vpack.c.b16 %v1754, %v1753
        %v1758 = vpack.c.b16 %v1756, %v1755
        %1761 = vmatprep.subr.bf16.mxu0 0
        %1762 = vmatpush1.bf16.msra.mxu0 %v1757
        %1763 = vmatprep.subr.bf16.mxu0 0
        %1764 = vmatpush1.bf16.msra.mxu0 %v1758
        %1765 = vmatprep.subr.bf16.mxu0 0
        %1766 = vmatpush1.bf16.msra.mxu0 0
        %1767 = vmatprep.subr.bf16.mxu0 0
        %1768 = vmatpush1.bf16.msra.mxu0 0
        %1769 = vmatprep.subr.bf16.mxu0 0
        %1770 = vmatpush1.bf16.msra.mxu0 0
        %1771 = vmatprep.subr.bf16.mxu0 0
        %1772 = vmatpush1.bf16.msra.mxu0 0
        %1773 = vmatprep.subr.bf16.mxu0 0
        %1774 = vmatpush1.bf16.msra.mxu0 0
        %1775 = vmatprep.subr.bf16.mxu0 0
        %1776 = vmatpush1.bf16.msra.mxu0 0
        %1777 = vmatprep.subr.bf16.mxu0 0
        %1778 = vmatpush1.bf16.msra.mxu0 0
        %1779 = vmatprep.subr.bf16.mxu0 0
        %1780 = vmatpush1.bf16.msra.mxu0 0
        %1781 = vmatprep.subr.bf16.mxu0 0
        %1782 = vmatpush1.bf16.msra.mxu0 0
        %1783 = vmatprep.subr.bf16.mxu0 0
        %1784 = vmatpush1.bf16.msra.mxu0 0
        %1785 = vmatprep.subr.bf16.mxu0 0
        %1786 = vmatpush1.bf16.msra.mxu0 0
        %1787 = vmatprep.subr.bf16.mxu0 0
        %1788 = vmatpush1.bf16.msra.mxu0 0
        %1789 = vmatprep.subr.bf16.mxu0 0
        %1790 = vmatpush1.bf16.msra.mxu0 0
        %1791 = vmatprep.subr.bf16.mxu0 0
        %1792 = vmatpush1.bf16.msra.mxu0 0
        %1793 = vmatprep.mubr.bf16.mxu0 0
        %1794 = vmatmul.mubr.bf16.gmra.mrb[0].mxu0 %v1664
        %v1795 = vpop.f32.mrb[0].mxu0
        %v1796 = vadd.f32 %v1748, %v1795
        %v1797 = vpop.f32.mrb[0].mxu0
        %v1798 = vpop.f32.mrb[0].mxu0
        %v1799 = vadd.f32 %v1748, %v1798
        %v1800 = vpop.f32.mrb[0].mxu0
        %1801 = vmatprep.mubr.bf16.mxu0 0
        %1802 = vmatmul.mubr.bf16.gmra.mrb[0].mxu0 %v1667
        %v1803 = vpop.f32.mrb[0].mxu0
        %v1804 = vadd.f32 %v1748, %v1803
        %v1805 = vpop.f32.mrb[0].mxu0
        %v1806 = vpop.f32.mrb[0].mxu0
        %v1807 = vadd.f32 %v1748, %v1806
        %v1808 = vpop.f32.mrb[0].mxu0
        %1809 = vmatprep.mubr.bf16.mxu0 0
        %1810 = vmatmul.mubr.bf16.gmra.mrb[0].mxu0 %v1670
        %v1811 = vpop.f32.mrb[0].mxu0
        %v1812 = vadd.f32 %v1748, %v1811
        %v1813 = vpop.f32.mrb[0].mxu0
        %v1814 = vpop.f32.mrb[0].mxu0
        %v1815 = vadd.f32 %v1748, %v1814
        %v1816 = vpop.f32.mrb[0].mxu0
        %1817 = vmatprep.mubr.bf16.mxu0 0
        %1818 = vmatmul.mubr.bf16.gmra.mrb[0].mxu0 %v1673
        %v1819 = vpop.f32.mrb[0].mxu0
        %v1820 = vadd.f32 %v1748, %v1819
        %v1821 = vpop.f32.mrb[0].mxu0
        %v1822 = vpop.f32.mrb[0].mxu0
        %v1823 = vpop.f32.mrb[0].mxu0
        %1824 = vdwg.mxu0
        %v1825 = vld [vmem:[%s3] sm:$0xf]
        %v1826 = vld [vmem:[%s3 + $0x4] sm:$0xf]
        %v1827 = vld [vmem:[%s3 + $0x8] sm:$0xf]
        %v1828 = vld [vmem:[%s3 + $0xc] sm:$0xf]
        %v1829 = vld [vmem:[%s3 + $0x10] sm:$0xf]
        %v1830 = vld [vmem:[%s3 + $0x14] sm:$0xf]
        %v1831 = vld [vmem:[%s3 + $0x18] sm:$0xf]
        %v1832 = vld [vmem:[%s3 + $0x1c] sm:$0xf]
        %v1833 = vpack.c.bf16 %v1713, %v1710
        %v1834 = vpack.c.bf16 %v1721, %v1718
        %v1835 = vpack.c.bf16 %v1729, %v1726
        %v1836 = vpack.c.bf16 %v1734, %v1734
        %v1845 = vunpack.c.l.b16 %v1825
        %v1846 = vunpack.c.l.b16 %v1826
        %v1847 = vunpack.c.l.b16 %v1827
        %v1848 = vunpack.c.l.b16 %v1828
        %v1849 = vunpack.c.l.b16 %v1829
        %v1850 = vunpack.c.l.b16 %v1830
        %v1851 = vunpack.c.l.b16 %v1831
        %v1852 = vunpack.c.l.b16 %v1832
        %v1853 = vpack.c.b16 %v1846, %v1845
        %v1854 = vpack.c.b16 %v1848, %v1847
        %v1855 = vpack.c.b16 %v1850, %v1849
        %v1856 = vpack.c.b16 %v1852, %v1851
        %v1858 = vsel %vm606, %v1853, 0
        %v1861 = vsel %vm606, %v1854, 0
        %v1864 = vsel %vm606, %v1855, 0
        %v1867 = vsel %vm606, %v1856, 0
        %v1870 = vsel %vm606, %v1833, 0
        %v1873 = vsel %vm606, %v1834, 0
        %v1876 = vsel %vm606, %v1835, 0
        %v1879 = vsel %vm606, %v1836, 0
        %1881 = vmatprep.subr.bf16.mxu0 0
        %1882 = vmatpush1.bf16.xpose.msra.mxu0 %v1870
        %1883 = vmatprep.subr.bf16.mxu0 0
        %1884 = vmatpush1.bf16.xpose.msra.mxu0 %v1873
        %1885 = vmatprep.subr.bf16.mxu0 0
        %1886 = vmatpush1.bf16.xpose.msra.mxu0 %v1876
        %1887 = vmatprep.subr.bf16.mxu0 0
        %1888 = vmatpush1.bf16.xpose.msra.mxu0 %v1879
        %1889 = vmatprep.subr.bf16.mxu0 0
        %1890 = vmatpush1.bf16.xpose.msra.mxu0 0
        %1891 = vmatprep.subr.bf16.mxu0 0
        %1892 = vmatpush1.bf16.xpose.msra.mxu0 0
        %1893 = vmatprep.subr.bf16.mxu0 0
        %1894 = vmatpush1.bf16.xpose.msra.mxu0 0
        %1895 = vmatprep.subr.bf16.mxu0 0
        %1896 = vmatpush1.bf16.xpose.msra.mxu0 0
        %1897 = vmatprep.subr.bf16.mxu0 0
        %1898 = vmatpush1.bf16.xpose.msra.mxu0 0
        %1899 = vmatprep.subr.bf16.mxu0 0
        %1900 = vmatpush1.bf16.xpose.msra.mxu0 0
        %1901 = vmatprep.subr.bf16.mxu0 0
        %1902 = vmatpush1.bf16.xpose.msra.mxu0 0
        %1903 = vmatprep.subr.bf16.mxu0 0
        %1904 = vmatpush1.bf16.xpose.msra.mxu0 0
        %1905 = vmatprep.subr.bf16.mxu0 0
        %1906 = vmatpush1.bf16.xpose.msra.mxu0 0
        %1907 = vmatprep.subr.bf16.mxu0 0
        %1908 = vmatpush1.bf16.xpose.msra.mxu0 0
        %1909 = vmatprep.subr.bf16.mxu0 0
        %1910 = vmatpush1.bf16.xpose.msra.mxu0 0
        %1911 = vmatprep.subr.bf16.mxu0 0
        %1912 = vmatpush1.bf16.xpose.msra.mxu0 0
        %1913 = vmatprep.mubr.bf16.mxu0 0
        %1914 = vmatmul.mubr.bf16.gmra.mrb[0].mxu0 %v1858
        %v1915 = vpop.f32.mrb[0].mxu0
        %v1916 = vadd.f32 0.0, %v1915
        %v1917 = vpop.f32.mrb[0].mxu0
        %v1918 = vpop.f32.mrb[0].mxu0
        %v1919 = vadd.f32 0.0, %v1918
        %v1920 = vpop.f32.mrb[0].mxu0
        %1921 = vmatprep.mubr.bf16.mxu0 0
        %1922 = vmatmul.mubr.bf16.gmra.mrb[0].mxu0 %v1861
        %v1923 = vpop.f32.mrb[0].mxu0
        %v1924 = vadd.f32 0.0, %v1923
        %v1925 = vpop.f32.mrb[0].mxu0
        %v1926 = vpop.f32.mrb[0].mxu0
        %v1927 = vadd.f32 0.0, %v1926
        %v1928 = vpop.f32.mrb[0].mxu0
        %1929 = vmatprep.mubr.bf16.mxu0 0
        %1930 = vmatmul.mubr.bf16.gmra.mrb[0].mxu0 %v1864
        %v1931 = vpop.f32.mrb[0].mxu0
        %v1932 = vadd.f32 0.0, %v1931
        %v1933 = vpop.f32.mrb[0].mxu0
        %v1934 = vpop.f32.mrb[0].mxu0
        %v1935 = vadd.f32 0.0, %v1934
        %v1936 = vpop.f32.mrb[0].mxu0
        %1937 = vmatprep.mubr.bf16.mxu0 0
        %1938 = vmatmul.mubr.bf16.gmra.mrb[0].mxu0 %v1867
        %v1939 = vpop.f32.mrb[0].mxu0
        %v1940 = vadd.f32 0.0, %v1939
        %v1941 = vpop.f32.mrb[0].mxu0
        %v1942 = vpop.f32.mrb[0].mxu0
        %v1943 = vadd.f32 0.0, %v1942
        %v1944 = vpop.f32.mrb[0].mxu0
        %1945 = vdwg.mxu0
        %v1946 = vmul.f32 %v1916, 0.25
        %v1947 = vmul.f32 %v1919, 0.25
        %v1948 = vmul.f32 %v1924, 0.25
        %v1949 = vmul.f32 %v1927, 0.25
        %v1950 = vmul.f32 %v1932, 0.25
        %v1951 = vmul.f32 %v1935, 0.25
        %v1952 = vmul.f32 %v1940, 0.25
        %v1953 = vmul.f32 %v1943, 0.25
        %v1955 = vlaneseq
        %v1956 = vshrl.u32 %v1955, 7
        %v1957 = vsub.s32 0, %v1956
        %v1958 = vrot.slane %v370, %v1957
        %v1960 = vadd.f32 %v1946, %v1958
        %v1961 = vadd.f32 %v1947, %v1958
        %v1962 = vadd.f32 %v1948, %v1958
        %v1963 = vadd.f32 %v1949, %v1958
        %v1964 = vadd.f32 %v1950, %v1958
        %v1965 = vadd.f32 %v1951, %v1958
        %v1966 = vadd.f32 %v1952, %v1958
        %v1967 = vadd.f32 %v1953, %v1958
        %vm1968 = vcmask 457728
        %v1969 = vsel %vm1968, %v1960, -inf
        %1970 = vmax.xlane.f32.xlu0 %v1969
        %v1971 = vpop.xlane.xlu0 %1970
        %v1972 = vsel %vm1968, %v1961, -inf
        %1973 = vmax.xlane.f32.xlu0 %v1972
        %v1974 = vpop.xlane.xlu0 %1973
        %v1975 = vsel %vm1968, %v1962, -inf
        %1976 = vmax.xlane.f32.xlu0 %v1975
        %v1977 = vpop.xlane.xlu0 %1976
        %v1978 = vsel %vm1968, %v1963, -inf
        %1979 = vmax.xlane.f32.xlu0 %v1978
        %v1980 = vpop.xlane.xlu0 %1979
        %v1981 = vsel %vm1968, %v1964, -inf
        %1982 = vmax.xlane.f32.xlu0 %v1981
        %v1983 = vpop.xlane.xlu0 %1982
        %v1984 = vsel %vm1968, %v1965, -inf
        %1985 = vmax.xlane.f32.xlu0 %v1984
        %v1986 = vpop.xlane.xlu0 %1985
        %v1987 = vsel %vm1968, %v1966, -inf
        %1988 = vmax.xlane.f32.xlu0 %v1987
        %v1989 = vpop.xlane.xlu0 %1988
        %v1990 = vsel %vm1968, %v1967, -inf
        %1991 = vmax.xlane.f32.xlu0 %v1990
        %v1992 = vpop.xlane.xlu0 %1991
        %v1993 = vsub.f32 %v1960, %v1971
        %v1994 = vsub.f32 %v1961, %v1974
        %v1995 = vsub.f32 %v1962, %v1977
        %v1996 = vsub.f32 %v1963, %v1980
        %v1997 = vsub.f32 %v1964, %v1983
        %v1998 = vsub.f32 %v1965, %v1986
        %v1999 = vsub.f32 %v1966, %v1989
        %v2000 = vsub.f32 %v1967, %v1992
        %v2001 = vmul.f32 %v1993, 1.442695
        %v2002 = vpow.pop %v2001
        %v2003 = vmul.f32 %v1994, 1.442695
        %v2004 = vpow.pop %v2003
        %v2005 = vmul.f32 %v1995, 1.442695
        %v2006 = vpow.pop %v2005
        %v2007 = vmul.f32 %v1996, 1.442695
        %v2008 = vpow.pop %v2007
        %v2009 = vmul.f32 %v1997, 1.442695
        %v2010 = vpow.pop %v2009
        %v2011 = vmul.f32 %v1998, 1.442695
        %v2012 = vpow.pop %v2011
        %v2013 = vmul.f32 %v1999, 1.442695
        %v2014 = vpow.pop %v2013
        %v2015 = vmul.f32 %v2000, 1.442695
        %v2016 = vpow.pop %v2015
        %v2017 = vsel %vm1968, %v2002, 0.0
        %2018 = vadd.xlane.f32.xlu0 %v2017
        %v2019 = vpop.xlane.xlu0 %2018
        %v2020 = vsel %vm1968, %v2004, 0.0
        %2021 = vadd.xlane.f32.xlu0 %v2020
        %v2022 = vpop.xlane.xlu0 %2021
        %v2023 = vsel %vm1968, %v2006, 0.0
        %2024 = vadd.xlane.f32.xlu0 %v2023
        %v2025 = vpop.xlane.xlu0 %2024
        %v2026 = vsel %vm1968, %v2008, 0.0
        %2027 = vadd.xlane.f32.xlu0 %v2026
        %v2028 = vpop.xlane.xlu0 %2027
        %v2029 = vsel %vm1968, %v2010, 0.0
        %2030 = vadd.xlane.f32.xlu0 %v2029
        %v2031 = vpop.xlane.xlu0 %2030
        %v2032 = vsel %vm1968, %v2012, 0.0
        %2033 = vadd.xlane.f32.xlu0 %v2032
        %v2034 = vpop.xlane.xlu0 %2033
        %v2035 = vsel %vm1968, %v2014, 0.0
        %2036 = vadd.xlane.f32.xlu0 %v2035
        %v2037 = vpop.xlane.xlu0 %2036
        %v2038 = vsel %vm1968, %v2016, 0.0
        %2039 = vadd.xlane.f32.xlu0 %v2038
        %v2040 = vpop.xlane.xlu0 %2039
        %v2041 = vrcp.pop %v2019
        %v2042 = vmul.f32 %v2002, %v2041
        %v2043 = vrcp.pop %v2022
        %v2044 = vmul.f32 %v2004, %v2043
        %v2045 = vrcp.pop %v2025
        %v2046 = vmul.f32 %v2006, %v2045
        %v2047 = vrcp.pop %v2028
        %v2048 = vmul.f32 %v2008, %v2047
        %v2049 = vrcp.pop %v2031
        %v2050 = vmul.f32 %v2010, %v2049
        %v2051 = vrcp.pop %v2034
        %v2052 = vmul.f32 %v2012, %v2051
        %v2053 = vrcp.pop %v2037
        %v2054 = vmul.f32 %v2014, %v2053
        %v2055 = vrcp.pop %v2040
        %v2056 = vmul.f32 %v2016, %v2055
        %v2057 = vpack.c.bf16 %v2044, %v2042
        %v2058 = vpack.c.bf16 %v2048, %v2046
        %v2059 = vpack.c.bf16 %v2052, %v2050
        %v2060 = vpack.c.bf16 %v2056, %v2054
        %v2061 = vpack.c.bf16 %v1799, %v1796
        %v2062 = vpack.c.bf16 %v1807, %v1804
        %v2063 = vpack.c.bf16 %v1815, %v1812
        %v2064 = vpack.c.bf16 %v1820, %v1820
        %v2066 = vsel %vm1968, %v2057, 0
        %v2069 = vsel %vm1968, %v2058, 0
        %v2072 = vsel %vm1968, %v2059, 0
        %v2075 = vsel %vm1968, %v2060, 0
        %v2078 = vsel %vm788, %v2064, 0
        %2080 = vmatprep.subr.bf16.mxu0 0
        %2081 = vmatpush1.bf16.msra.mxu0 %v2061
        %2082 = vmatprep.subr.bf16.mxu0 0
        %2083 = vmatpush1.bf16.msra.mxu0 %v2062
        %2084 = vmatprep.subr.bf16.mxu0 0
        %2085 = vmatpush1.bf16.msra.mxu0 %v2063
        %2086 = vmatprep.subr.bf16.mxu0 0
        %2087 = vmatpush1.bf16.msra.mxu0 %v2078
        %2088 = vmatprep.subr.bf16.mxu0 0
        %2089 = vmatpush1.bf16.msra.mxu0 0
        %2090 = vmatprep.subr.bf16.mxu0 0
        %2091 = vmatpush1.bf16.msra.mxu0 0
        %2092 = vmatprep.subr.bf16.mxu0 0
        %2093 = vmatpush1.bf16.msra.mxu0 0
        %2094 = vmatprep.subr.bf16.mxu0 0
        %2095 = vmatpush1.bf16.msra.mxu0 0
        %2096 = vmatprep.subr.bf16.mxu0 0
        %2097 = vmatpush1.bf16.msra.mxu0 0
        %2098 = vmatprep.subr.bf16.mxu0 0
        %2099 = vmatpush1.bf16.msra.mxu0 0
        %2100 = vmatprep.subr.bf16.mxu0 0
        %2101 = vmatpush1.bf16.msra.mxu0 0
        %2102 = vmatprep.subr.bf16.mxu0 0
        %2103 = vmatpush1.bf16.msra.mxu0 0
        %2104 = vmatprep.subr.bf16.mxu0 0
        %2105 = vmatpush1.bf16.msra.mxu0 0
        %2106 = vmatprep.subr.bf16.mxu0 0
        %2107 = vmatpush1.bf16.msra.mxu0 0
        %2108 = vmatprep.subr.bf16.mxu0 0
        %2109 = vmatpush1.bf16.msra.mxu0 0
        %2110 = vmatprep.subr.bf16.mxu0 0
        %2111 = vmatpush1.bf16.msra.mxu0 0
        %2112 = vmatprep.mubr.bf16.mxu0 0
        %2113 = vmatmul.mubr.bf16.gmra.mrb[0].mxu0 %v2066
        %v2114 = vpop.f32.mrb[0].mxu0
        %v2115 = vadd.f32 0.0, %v2114
        %v2116 = vpop.f32.mrb[0].mxu0
        %v2117 = vpop.f32.mrb[0].mxu0
        %v2118 = vadd.f32 0.0, %v2117
        %v2119 = vpop.f32.mrb[0].mxu0
        %2120 = vmatprep.mubr.bf16.mxu0 0
        %2121 = vmatmul.mubr.bf16.gmra.mrb[0].mxu0 %v2069
        %v2122 = vpop.f32.mrb[0].mxu0
        %v2123 = vadd.f32 0.0, %v2122
        %v2124 = vpop.f32.mrb[0].mxu0
        %v2125 = vpop.f32.mrb[0].mxu0
        %v2126 = vadd.f32 0.0, %v2125
        %v2127 = vpop.f32.mrb[0].mxu0
        %2128 = vmatprep.mubr.bf16.mxu0 0
        %2129 = vmatmul.mubr.bf16.gmra.mrb[0].mxu0 %v2072
        %v2130 = vpop.f32.mrb[0].mxu0
        %v2131 = vadd.f32 0.0, %v2130
        %v2132 = vpop.f32.mrb[0].mxu0
        %v2133 = vpop.f32.mrb[0].mxu0
        %v2134 = vadd.f32 0.0, %v2133
        %v2135 = vpop.f32.mrb[0].mxu0
        %2136 = vmatprep.mubr.bf16.mxu0 0
        %2137 = vmatmul.mubr.bf16.gmra.mrb[0].mxu0 %v2075
        %v2138 = vpop.f32.mrb[0].mxu0
        %v2139 = vadd.f32 0.0, %v2138
        %v2140 = vpop.f32.mrb[0].mxu0
        %v2141 = vpop.f32.mrb[0].mxu0
        %v2142 = vadd.f32 0.0, %v2141
        %v2143 = vpop.f32.mrb[0].mxu0
        %2144 = vdwg.mxu0
        %s2145 = scalar_lea.vmem %s6, 16
        %v2146 = vld [vmem:[%s2145] sm:$0xf]
        %v2147 = vld [vmem:[%s2145 + $0x4] sm:$0xf]
        %v2148 = vpack.c.bf16 %v2118, %v2115
        %v2149 = vpack.c.bf16 %v2126, %v2123
        %v2150 = vpack.c.bf16 %v2134, %v2131
        %v2151 = vpack.c.bf16 %v2142, %v2139
        %s2152 = scalar_lea.vmem %s4, 112
        %v2153 = vld [vmem:[%s2152] sm:$0xf]
        %v2154 = vld [vmem:[%s2152 + $0x4] sm:$0xf]
        %v2155 = vld [vmem:[%s2152 + $0x8] sm:$0xf]
        %v2156 = vld [vmem:[%s2152 + $0xc] sm:$0xf]
        %v2157 = vld [vmem:[%s5 + $0x7] sm:$0x1]
        %v2158 = vlaneseq
        %v2159 = vshrl.u32 %v2158, 7
        %v2160 = vsub.s32 0, %v2159
        %v2161 = vrot.slane %v2157, %v2160
        %v2166 = vunpack.c.l.b16 %v2153
        %v2167 = vunpack.c.l.b16 %v2154
        %v2168 = vunpack.c.l.b16 %v2155
        %v2169 = vunpack.c.l.b16 %v2156
        %v2170 = vpack.c.b16 %v2167, %v2166
        %v2171 = vpack.c.b16 %v2169, %v2168
        %2174 = vmatprep.subr.bf16.mxu0 0
        %2175 = vmatpush1.bf16.msra.mxu0 %v2170
        %2176 = vmatprep.subr.bf16.mxu0 0
        %2177 = vmatpush1.bf16.msra.mxu0 %v2171
        %2178 = vmatprep.subr.bf16.mxu0 0
        %2179 = vmatpush1.bf16.msra.mxu0 0
        %2180 = vmatprep.subr.bf16.mxu0 0
        %2181 = vmatpush1.bf16.msra.mxu0 0
        %2182 = vmatprep.subr.bf16.mxu0 0
        %2183 = vmatpush1.bf16.msra.mxu0 0
        %2184 = vmatprep.subr.bf16.mxu0 0
        %2185 = vmatpush1.bf16.msra.mxu0 0
        %2186 = vmatprep.subr.bf16.mxu0 0
        %2187 = vmatpush1.bf16.msra.mxu0 0
        %2188 = vmatprep.subr.bf16.mxu0 0
        %2189 = vmatpush1.bf16.msra.mxu0 0
        %2190 = vmatprep.subr.bf16.mxu0 0
        %2191 = vmatpush1.bf16.msra.mxu0 0
        %2192 = vmatprep.subr.bf16.mxu0 0
        %2193 = vmatpush1.bf16.msra.mxu0 0
        %2194 = vmatprep.subr.bf16.mxu0 0
        %2195 = vmatpush1.bf16.msra.mxu0 0
        %2196 = vmatprep.subr.bf16.mxu0 0
        %2197 = vmatpush1.bf16.msra.mxu0 0
        %2198 = vmatprep.subr.bf16.mxu0 0
        %2199 = vmatpush1.bf16.msra.mxu0 0
        %2200 = vmatprep.subr.bf16.mxu0 0
        %2201 = vmatpush1.bf16.msra.mxu0 0
        %2202 = vmatprep.subr.bf16.mxu0 0
        %2203 = vmatpush1.bf16.msra.mxu0 0
        %2204 = vmatprep.subr.bf16.mxu0 0
        %2205 = vmatpush1.bf16.msra.mxu0 0
        %2206 = vmatprep.mubr.bf16.mxu0 0
        %2207 = vmatmul.mubr.bf16.gmra.mrb[0].mxu0 %v1664
        %v2208 = vpop.f32.mrb[0].mxu0
        %v2209 = vadd.f32 %v2161, %v2208
        %v2210 = vpop.f32.mrb[0].mxu0
        %v2211 = vpop.f32.mrb[0].mxu0
        %v2212 = vadd.f32 %v2161, %v2211
        %v2213 = vpop.f32.mrb[0].mxu0
        %2214 = vmatprep.mubr.bf16.mxu0 0
        %2215 = vmatmul.mubr.bf16.gmra.mrb[0].mxu0 %v1667
        %v2216 = vpop.f32.mrb[0].mxu0
        %v2217 = vadd.f32 %v2161, %v2216
        %v2218 = vpop.f32.mrb[0].mxu0
        %v2219 = vpop.f32.mrb[0].mxu0
        %v2220 = vadd.f32 %v2161, %v2219
        %v2221 = vpop.f32.mrb[0].mxu0
        %2222 = vmatprep.mubr.bf16.mxu0 0
        %2223 = vmatmul.mubr.bf16.gmra.mrb[0].mxu0 %v1670
        %v2224 = vpop.f32.mrb[0].mxu0
        %v2225 = vadd.f32 %v2161, %v2224
        %v2226 = vpop.f32.mrb[0].mxu0
        %v2227 = vpop.f32.mrb[0].mxu0
        %v2228 = vadd.f32 %v2161, %v2227
        %v2229 = vpop.f32.mrb[0].mxu0
        %2230 = vmatprep.mubr.bf16.mxu0 0
        %2231 = vmatmul.mubr.bf16.gmra.mrb[0].mxu0 %v1673
        %v2232 = vpop.f32.mrb[0].mxu0
        %v2233 = vadd.f32 %v2161, %v2232
        %v2234 = vpop.f32.mrb[0].mxu0
        %v2235 = vpop.f32.mrb[0].mxu0
        %v2236 = vpop.f32.mrb[0].mxu0
        %2237 = vdwg.mxu0
        %s2238 = scalar_lea.vmem %s4, 144
        %v2239 = vld [vmem:[%s2238] sm:$0xf]
        %v2240 = vld [vmem:[%s2238 + $0x4] sm:$0xf]
        %v2241 = vld [vmem:[%s2238 + $0x8] sm:$0xf]
        %v2242 = vld [vmem:[%s2238 + $0xc] sm:$0xf]
        %v2243 = vld [vmem:[%s5 + $0x9] sm:$0x1]
        %v2244 = vlaneseq
        %v2245 = vshrl.u32 %v2244, 7
        %v2246 = vsub.s32 0, %v2245
        %v2247 = vrot.slane %v2243, %v2246
        %v2252 = vunpack.c.l.b16 %v2239
        %v2253 = vunpack.c.l.b16 %v2240
        %v2254 = vunpack.c.l.b16 %v2241
        %v2255 = vunpack.c.l.b16 %v2242
        %v2256 = vpack.c.b16 %v2253, %v2252
        %v2257 = vpack.c.b16 %v2255, %v2254
        %2260 = vmatprep.subr.bf16.mxu0 0
        %2261 = vmatpush1.bf16.msra.mxu0 %v2256
        %2262 = vmatprep.subr.bf16.mxu0 0
        %2263 = vmatpush1.bf16.msra.mxu0 %v2257
        %2264 = vmatprep.subr.bf16.mxu0 0
        %2265 = vmatpush1.bf16.msra.mxu0 0
        %2266 = vmatprep.subr.bf16.mxu0 0
        %2267 = vmatpush1.bf16.msra.mxu0 0
        %2268 = vmatprep.subr.bf16.mxu0 0
        %2269 = vmatpush1.bf16.msra.mxu0 0
        %2270 = vmatprep.subr.bf16.mxu0 0
        %2271 = vmatpush1.bf16.msra.mxu0 0
        %2272 = vmatprep.subr.bf16.mxu0 0
        %2273 = vmatpush1.bf16.msra.mxu0 0
        %2274 = vmatprep.subr.bf16.mxu0 0
        %2275 = vmatpush1.bf16.msra.mxu0 0
        %2276 = vmatprep.subr.bf16.mxu0 0
        %2277 = vmatpush1.bf16.msra.mxu0 0
        %2278 = vmatprep.subr.bf16.mxu0 0
        %2279 = vmatpush1.bf16.msra.mxu0 0
        %2280 = vmatprep.subr.bf16.mxu0 0
        %2281 = vmatpush1.bf16.msra.mxu0 0
        %2282 = vmatprep.subr.bf16.mxu0 0
        %2283 = vmatpush1.bf16.msra.mxu0 0
        %2284 = vmatprep.subr.bf16.mxu0 0
        %2285 = vmatpush1.bf16.msra.mxu0 0
        %2286 = vmatprep.subr.bf16.mxu0 0
        %2287 = vmatpush1.bf16.msra.mxu0 0
        %2288 = vmatprep.subr.bf16.mxu0 0
        %2289 = vmatpush1.bf16.msra.mxu0 0
        %2290 = vmatprep.subr.bf16.mxu0 0
        %2291 = vmatpush1.bf16.msra.mxu0 0
        %2292 = vmatprep.mubr.bf16.mxu0 0
        %2293 = vmatmul.mubr.bf16.gmra.mrb[0].mxu0 %v1664
        %v2294 = vpop.f32.mrb[0].mxu0
        %v2295 = vadd.f32 %v2247, %v2294
        %v2296 = vpop.f32.mrb[0].mxu0
        %v2297 = vpop.f32.mrb[0].mxu0
        %v2298 = vadd.f32 %v2247, %v2297
        %v2299 = vpop.f32.mrb[0].mxu0
        %2300 = vmatprep.mubr.bf16.mxu0 0
        %2301 = vmatmul.mubr.bf16.gmra.mrb[0].mxu0 %v1667
        %v2302 = vpop.f32.mrb[0].mxu0
        %v2303 = vadd.f32 %v2247, %v2302
        %v2304 = vpop.f32.mrb[0].mxu0
        %v2305 = vpop.f32.mrb[0].mxu0
        %v2306 = vadd.f32 %v2247, %v2305
        %v2307 = vpop.f32.mrb[0].mxu0
        %2308 = vmatprep.mubr.bf16.mxu0 0
        %2309 = vmatmul.mubr.bf16.gmra.mrb[0].mxu0 %v1670
        %v2310 = vpop.f32.mrb[0].mxu0
        %v2311 = vadd.f32 %v2247, %v2310
        %v2312 = vpop.f32.mrb[0].mxu0
        %v2313 = vpop.f32.mrb[0].mxu0
        %v2314 = vadd.f32 %v2247, %v2313
        %v2315 = vpop.f32.mrb[0].mxu0
        %2316 = vmatprep.mubr.bf16.mxu0 0
        %2317 = vmatmul.mubr.bf16.gmra.mrb[0].mxu0 %v1673
        %v2318 = vpop.f32.mrb[0].mxu0
        %v2319 = vadd.f32 %v2247, %v2318
        %v2320 = vpop.f32.mrb[0].mxu0
        %v2321 = vpop.f32.mrb[0].mxu0
        %v2322 = vpop.f32.mrb[0].mxu0
        %2323 = vdwg.mxu0
        %s2324 = scalar_lea.vmem %s3, 32
        %v2325 = vld [vmem:[%s2324] sm:$0xf]
        %v2326 = vld [vmem:[%s2324 + $0x4] sm:$0xf]
        %v2327 = vld [vmem:[%s2324 + $0x8] sm:$0xf]
        %v2328 = vld [vmem:[%s2324 + $0xc] sm:$0xf]
        %v2329 = vld [vmem:[%s2324 + $0x10] sm:$0xf]
        %v2330 = vld [vmem:[%s2324 + $0x14] sm:$0xf]
        %v2331 = vld [vmem:[%s2324 + $0x18] sm:$0xf]
        %v2332 = vld [vmem:[%s2324 + $0x1c] sm:$0xf]
        %v2333 = vpack.c.bf16 %v2212, %v2209
        %v2334 = vpack.c.bf16 %v2220, %v2217
        %v2335 = vpack.c.bf16 %v2228, %v2225
        %v2336 = vpack.c.bf16 %v2233, %v2233
        %v2345 = vunpack.c.l.b16 %v2325
        %v2346 = vunpack.c.l.b16 %v2326
        %v2347 = vunpack.c.l.b16 %v2327
        %v2348 = vunpack.c.l.b16 %v2328
        %v2349 = vunpack.c.l.b16 %v2329
        %v2350 = vunpack.c.l.b16 %v2330
        %v2351 = vunpack.c.l.b16 %v2331
        %v2352 = vunpack.c.l.b16 %v2332
        %v2353 = vpack.c.b16 %v2346, %v2345
        %v2354 = vpack.c.b16 %v2348, %v2347
        %v2355 = vpack.c.b16 %v2350, %v2349
        %v2356 = vpack.c.b16 %v2352, %v2351
        %v2358 = vsel %vm606, %v2353, 0
        %v2361 = vsel %vm606, %v2354, 0
        %v2364 = vsel %vm606, %v2355, 0
        %v2367 = vsel %vm606, %v2356, 0
        %v2370 = vsel %vm606, %v2333, 0
        %v2373 = vsel %vm606, %v2334, 0
        %v2376 = vsel %vm606, %v2335, 0
        %v2379 = vsel %vm606, %v2336, 0
        %2381 = vmatprep.subr.bf16.mxu0 0
        %2382 = vmatpush1.bf16.xpose.msra.mxu0 %v2370
        %2383 = vmatprep.subr.bf16.mxu0 0
        %2384 = vmatpush1.bf16.xpose.msra.mxu0 %v2373
        %2385 = vmatprep.subr.bf16.mxu0 0
        %2386 = vmatpush1.bf16.xpose.msra.mxu0 %v2376
        %2387 = vmatprep.subr.bf16.mxu0 0
        %2388 = vmatpush1.bf16.xpose.msra.mxu0 %v2379
        %2389 = vmatprep.subr.bf16.mxu0 0
        %2390 = vmatpush1.bf16.xpose.msra.mxu0 0
        %2391 = vmatprep.subr.bf16.mxu0 0
        %2392 = vmatpush1.bf16.xpose.msra.mxu0 0
        %2393 = vmatprep.subr.bf16.mxu0 0
        %2394 = vmatpush1.bf16.xpose.msra.mxu0 0
        %2395 = vmatprep.subr.bf16.mxu0 0
        %2396 = vmatpush1.bf16.xpose.msra.mxu0 0
        %2397 = vmatprep.subr.bf16.mxu0 0
        %2398 = vmatpush1.bf16.xpose.msra.mxu0 0
        %2399 = vmatprep.subr.bf16.mxu0 0
        %2400 = vmatpush1.bf16.xpose.msra.mxu0 0
        %2401 = vmatprep.subr.bf16.mxu0 0
        %2402 = vmatpush1.bf16.xpose.msra.mxu0 0
        %2403 = vmatprep.subr.bf16.mxu0 0
        %2404 = vmatpush1.bf16.xpose.msra.mxu0 0
        %2405 = vmatprep.subr.bf16.mxu0 0
        %2406 = vmatpush1.bf16.xpose.msra.mxu0 0
        %2407 = vmatprep.subr.bf16.mxu0 0
        %2408 = vmatpush1.bf16.xpose.msra.mxu0 0
        %2409 = vmatprep.subr.bf16.mxu0 0
        %2410 = vmatpush1.bf16.xpose.msra.mxu0 0
        %2411 = vmatprep.subr.bf16.mxu0 0
        %2412 = vmatpush1.bf16.xpose.msra.mxu0 0
        %2413 = vmatprep.mubr.bf16.mxu0 0
        %2414 = vmatmul.mubr.bf16.gmra.mrb[0].mxu0 %v2358
        %v2415 = vpop.f32.mrb[0].mxu0
        %v2416 = vadd.f32 0.0, %v2415
        %v2417 = vpop.f32.mrb[0].mxu0
        %v2418 = vpop.f32.mrb[0].mxu0
        %v2419 = vadd.f32 0.0, %v2418
        %v2420 = vpop.f32.mrb[0].mxu0
        %2421 = vmatprep.mubr.bf16.mxu0 0
        %2422 = vmatmul.mubr.bf16.gmra.mrb[0].mxu0 %v2361
        %v2423 = vpop.f32.mrb[0].mxu0
        %v2424 = vadd.f32 0.0, %v2423
        %v2425 = vpop.f32.mrb[0].mxu0
        %v2426 = vpop.f32.mrb[0].mxu0
        %v2427 = vadd.f32 0.0, %v2426
        %v2428 = vpop.f32.mrb[0].mxu0
        %2429 = vmatprep.mubr.bf16.mxu0 0
        %2430 = vmatmul.mubr.bf16.gmra.mrb[0].mxu0 %v2364
        %v2431 = vpop.f32.mrb[0].mxu0
        %v2432 = vadd.f32 0.0, %v2431
        %v2433 = vpop.f32.mrb[0].mxu0
        %v2434 = vpop.f32.mrb[0].mxu0
        %v2435 = vadd.f32 0.0, %v2434
        %v2436 = vpop.f32.mrb[0].mxu0
        %2437 = vmatprep.mubr.bf16.mxu0 0
        %2438 = vmatmul.mubr.bf16.gmra.mrb[0].mxu0 %v2367
        %v2439 = vpop.f32.mrb[0].mxu0
        %v2440 = vadd.f32 0.0, %v2439
        %v2441 = vpop.f32.mrb[0].mxu0
        %v2442 = vpop.f32.mrb[0].mxu0
        %v2443 = vadd.f32 0.0, %v2442
        %v2444 = vpop.f32.mrb[0].mxu0
        %2445 = vdwg.mxu0
        %v2446 = vmul.f32 %v2416, 0.25
        %v2447 = vmul.f32 %v2419, 0.25
        %v2448 = vmul.f32 %v2424, 0.25
        %v2449 = vmul.f32 %v2427, 0.25
        %v2450 = vmul.f32 %v2432, 0.25
        %v2451 = vmul.f32 %v2435, 0.25
        %v2452 = vmul.f32 %v2440, 0.25
        %v2453 = vmul.f32 %v2443, 0.25
        %v2454 = vadd.f32 %v2446, %v1958
        %v2455 = vadd.f32 %v2447, %v1958
        %v2456 = vadd.f32 %v2448, %v1958
        %v2457 = vadd.f32 %v2449, %v1958
        %v2458 = vadd.f32 %v2450, %v1958
        %v2459 = vadd.f32 %v2451, %v1958
        %v2460 = vadd.f32 %v2452, %v1958
        %v2461 = vadd.f32 %v2453, %v1958
        %v2462 = vsel %vm1968, %v2454, -inf
        %2463 = vmax.xlane.f32.xlu0 %v2462
        %v2464 = vpop.xlane.xlu0 %2463
        %v2465 = vsel %vm1968, %v2455, -inf
        %2466 = vmax.xlane.f32.xlu0 %v2465
        %v2467 = vpop.xlane.xlu0 %2466
        %v2468 = vsel %vm1968, %v2456, -inf
        %2469 = vmax.xlane.f32.xlu0 %v2468
        %v2470 = vpop.xlane.xlu0 %2469
        %v2471 = vsel %vm1968, %v2457, -inf
        %2472 = vmax.xlane.f32.xlu0 %v2471
        %v2473 = vpop.xlane.xlu0 %2472
        %v2474 = vsel %vm1968, %v2458, -inf
        %2475 = vmax.xlane.f32.xlu0 %v2474
        %v2476 = vpop.xlane.xlu0 %2475
        %v2477 = vsel %vm1968, %v2459, -inf
        %2478 = vmax.xlane.f32.xlu0 %v2477
        %v2479 = vpop.xlane.xlu0 %2478
        %v2480 = vsel %vm1968, %v2460, -inf
        %2481 = vmax.xlane.f32.xlu0 %v2480
        %v2482 = vpop.xlane.xlu0 %2481
        %v2483 = vsel %vm1968, %v2461, -inf
        %2484 = vmax.xlane.f32.xlu0 %v2483
        %v2485 = vpop.xlane.xlu0 %2484
        %v2486 = vsub.f32 %v2454, %v2464
        %v2487 = vsub.f32 %v2455, %v2467
        %v2488 = vsub.f32 %v2456, %v2470
        %v2489 = vsub.f32 %v2457, %v2473
        %v2490 = vsub.f32 %v2458, %v2476
        %v2491 = vsub.f32 %v2459, %v2479
        %v2492 = vsub.f32 %v2460, %v2482
        %v2493 = vsub.f32 %v2461, %v2485
        %v2494 = vmul.f32 %v2486, 1.442695
        %v2495 = vpow.pop %v2494
        %v2496 = vmul.f32 %v2487, 1.442695
        %v2497 = vpow.pop %v2496
        %v2498 = vmul.f32 %v2488, 1.442695
        %v2499 = vpow.pop %v2498
        %v2500 = vmul.f32 %v2489, 1.442695
        %v2501 = vpow.pop %v2500
        %v2502 = vmul.f32 %v2490, 1.442695
        %v2503 = vpow.pop %v2502
        %v2504 = vmul.f32 %v2491, 1.442695
        %v2505 = vpow.pop %v2504
        %v2506 = vmul.f32 %v2492, 1.442695
        %v2507 = vpow.pop %v2506
        %v2508 = vmul.f32 %v2493, 1.442695
        %v2509 = vpow.pop %v2508
        %v2510 = vsel %vm1968, %v2495, 0.0
        %2511 = vadd.xlane.f32.xlu0 %v2510
        %v2512 = vpop.xlane.xlu0 %2511
        %v2513 = vsel %vm1968, %v2497, 0.0
        %2514 = vadd.xlane.f32.xlu0 %v2513
        %v2515 = vpop.xlane.xlu0 %2514
        %v2516 = vsel %vm1968, %v2499, 0.0
        %2517 = vadd.xlane.f32.xlu0 %v2516
        %v2518 = vpop.xlane.xlu0 %2517
        %v2519 = vsel %vm1968, %v2501, 0.0
        %2520 = vadd.xlane.f32.xlu0 %v2519
        %v2521 = vpop.xlane.xlu0 %2520
        %v2522 = vsel %vm1968, %v2503, 0.0
        %2523 = vadd.xlane.f32.xlu0 %v2522
        %v2524 = vpop.xlane.xlu0 %2523
        %v2525 = vsel %vm1968, %v2505, 0.0
        %2526 = vadd.xlane.f32.xlu0 %v2525
        %v2527 = vpop.xlane.xlu0 %2526
        %v2528 = vsel %vm1968, %v2507, 0.0
        %2529 = vadd.xlane.f32.xlu0 %v2528
        %v2530 = vpop.xlane.xlu0 %2529
        %v2531 = vsel %vm1968, %v2509, 0.0
        %2532 = vadd.xlane.f32.xlu0 %v2531
        %v2533 = vpop.xlane.xlu0 %2532
        %v2534 = vrcp.pop %v2512
        %v2535 = vmul.f32 %v2495, %v2534
        %v2536 = vrcp.pop %v2515
        %v2537 = vmul.f32 %v2497, %v2536
        %v2538 = vrcp.pop %v2518
        %v2539 = vmul.f32 %v2499, %v2538
        %v2540 = vrcp.pop %v2521
        %v2541 = vmul.f32 %v2501, %v2540
        %v2542 = vrcp.pop %v2524
        %v2543 = vmul.f32 %v2503, %v2542
        %v2544 = vrcp.pop %v2527
        %v2545 = vmul.f32 %v2505, %v2544
        %v2546 = vrcp.pop %v2530
        %v2547 = vmul.f32 %v2507, %v2546
        %v2548 = vrcp.pop %v2533
        %v2549 = vmul.f32 %v2509, %v2548
        %v2550 = vpack.c.bf16 %v2537, %v2535
        %v2551 = vpack.c.bf16 %v2541, %v2539
        %v2552 = vpack.c.bf16 %v2545, %v2543
        %v2553 = vpack.c.bf16 %v2549, %v2547
        %v2554 = vpack.c.bf16 %v2298, %v2295
        %v2555 = vpack.c.bf16 %v2306, %v2303
        %v2556 = vpack.c.bf16 %v2314, %v2311
        %v2557 = vpack.c.bf16 %v2319, %v2319
        %v2559 = vsel %vm1968, %v2550, 0
        %v2562 = vsel %vm1968, %v2551, 0
        %v2565 = vsel %vm1968, %v2552, 0
        %v2568 = vsel %vm1968, %v2553, 0
        %v2571 = vsel %vm788, %v2557, 0
        %2573 = vmatprep.subr.bf16.mxu0 0
        %2574 = vmatpush1.bf16.msra.mxu0 %v2554
        %2575 = vmatprep.subr.bf16.mxu0 0
        %2576 = vmatpush1.bf16.msra.mxu0 %v2555
        %2577 = vmatprep.subr.bf16.mxu0 0
        %2578 = vmatpush1.bf16.msra.mxu0 %v2556
        %2579 = vmatprep.subr.bf16.mxu0 0
        %2580 = vmatpush1.bf16.msra.mxu0 %v2571
        %2581 = vmatprep.subr.bf16.mxu0 0
        %2582 = vmatpush1.bf16.msra.mxu0 0
        %2583 = vmatprep.subr.bf16.mxu0 0
        %2584 = vmatpush1.bf16.msra.mxu0 0
        %2585 = vmatprep.subr.bf16.mxu0 0
        %2586 = vmatpush1.bf16.msra.mxu0 0
        %2587 = vmatprep.subr.bf16.mxu0 0
        %2588 = vmatpush1.bf16.msra.mxu0 0
        %2589 = vmatprep.subr.bf16.mxu0 0
        %2590 = vmatpush1.bf16.msra.mxu0 0
        %2591 = vmatprep.subr.bf16.mxu0 0
        %2592 = vmatpush1.bf16.msra.mxu0 0
        %2593 = vmatprep.subr.bf16.mxu0 0
        %2594 = vmatpush1.bf16.msra.mxu0 0
        %2595 = vmatprep.subr.bf16.mxu0 0
        %2596 = vmatpush1.bf16.msra.mxu0 0
        %2597 = vmatprep.subr.bf16.mxu0 0
        %2598 = vmatpush1.bf16.msra.mxu0 0
        %2599 = vmatprep.subr.bf16.mxu0 0
        %2600 = vmatpush1.bf16.msra.mxu0 0
        %2601 = vmatprep.subr.bf16.mxu0 0
        %2602 = vmatpush1.bf16.msra.mxu0 0
        %2603 = vmatprep.subr.bf16.mxu0 0
        %2604 = vmatpush1.bf16.msra.mxu0 0
        %2605 = vmatprep.mubr.bf16.mxu0 0
        %2606 = vmatmul.mubr.bf16.gmra.mrb[0].mxu0 %v2559
        %v2607 = vpop.f32.mrb[0].mxu0
        %v2608 = vadd.f32 0.0, %v2607
        %v2609 = vpop.f32.mrb[0].mxu0
        %v2610 = vpop.f32.mrb[0].mxu0
        %v2611 = vadd.f32 0.0, %v2610
        %v2612 = vpop.f32.mrb[0].mxu0
        %2613 = vmatprep.mubr.bf16.mxu0 0
        %2614 = vmatmul.mubr.bf16.gmra.mrb[0].mxu0 %v2562
        %v2615 = vpop.f32.mrb[0].mxu0
        %v2616 = vadd.f32 0.0, %v2615
        %v2617 = vpop.f32.mrb[0].mxu0
        %v2618 = vpop.f32.mrb[0].mxu0
        %v2619 = vadd.f32 0.0, %v2618
        %v2620 = vpop.f32.mrb[0].mxu0
        %2621 = vmatprep.mubr.bf16.mxu0 0
        %2622 = vmatmul.mubr.bf16.gmra.mrb[0].mxu0 %v2565
        %v2623 = vpop.f32.mrb[0].mxu0
        %v2624 = vadd.f32 0.0, %v2623
        %v2625 = vpop.f32.mrb[0].mxu0
        %v2626 = vpop.f32.mrb[0].mxu0
        %v2627 = vadd.f32 0.0, %v2626
        %v2628 = vpop.f32.mrb[0].mxu0
        %2629 = vmatprep.mubr.bf16.mxu0 0
        %2630 = vmatmul.mubr.bf16.gmra.mrb[0].mxu0 %v2568
        %v2631 = vpop.f32.mrb[0].mxu0
        %v2632 = vadd.f32 0.0, %v2631
        %v2633 = vpop.f32.mrb[0].mxu0
        %v2634 = vpop.f32.mrb[0].mxu0
        %v2635 = vadd.f32 0.0, %v2634
        %v2636 = vpop.f32.mrb[0].mxu0
        %2637 = vdwg.mxu0
        %s2638 = scalar_lea.vmem %s6, 24
        %v2639 = vld [vmem:[%s2638] sm:$0xf]
        %v2640 = vld [vmem:[%s2638 + $0x4] sm:$0xf]
        %v2641 = vpack.c.bf16 %v2611, %v2608
        %v2642 = vpack.c.bf16 %v2619, %v2616
        %v2643 = vpack.c.bf16 %v2627, %v2624
        %v2644 = vpack.c.bf16 %v2635, %v2632
        %v2647 = vunpack.c.l.b16 %v2639
        %v2648 = vunpack.c.l.b16 %v2640
        %v2649 = vpack.c.b16 %v2648, %v2647
        %v2652 = vsel %vm606, %v2641, 0
        %v2655 = vsel %vm606, %v2642, 0
        %v2658 = vsel %vm606, %v2643, 0
        %v2661 = vsel %vm606, %v2644, 0
        %2663 = vmatprep.subr.bf16.mxu0 0
        %2664 = vmatpush1.bf16.msra.mxu0 %v2649
        %2665 = vmatprep.subr.bf16.mxu0 0
        %2666 = vmatpush1.bf16.msra.mxu0 0
        %2667 = vmatprep.subr.bf16.mxu0 0
        %2668 = vmatpush1.bf16.msra.mxu0 0
        %2669 = vmatprep.subr.bf16.mxu0 0
        %2670 = vmatpush1.bf16.msra.mxu0 0
        %2671 = vmatprep.subr.bf16.mxu0 0
        %2672 = vmatpush1.bf16.msra.mxu0 0
        %2673 = vmatprep.subr.bf16.mxu0 0
        %2674 = vmatpush1.bf16.msra.mxu0 0
        %2675 = vmatprep.subr.bf16.mxu0 0
        %2676 = vmatpush1.bf16.msra.mxu0 0
        %2677 = vmatprep.subr.bf16.mxu0 0
        %2678 = vmatpush1.bf16.msra.mxu0 0
        %2679 = vmatprep.subr.bf16.mxu0 0
        %2680 = vmatpush1.bf16.msra.mxu0 0
        %2681 = vmatprep.subr.bf16.mxu0 0
        %2682 = vmatpush1.bf16.msra.mxu0 0
        %2683 = vmatprep.subr.bf16.mxu0 0
        %2684 = vmatpush1.bf16.msra.mxu0 0
        %2685 = vmatprep.subr.bf16.mxu0 0
        %2686 = vmatpush1.bf16.msra.mxu0 0
        %2687 = vmatprep.subr.bf16.mxu0 0
        %2688 = vmatpush1.bf16.msra.mxu0 0
        %2689 = vmatprep.subr.bf16.mxu0 0
        %2690 = vmatpush1.bf16.msra.mxu0 0
        %2691 = vmatprep.subr.bf16.mxu0 0
        %2692 = vmatpush1.bf16.msra.mxu0 0
        %2693 = vmatprep.subr.bf16.mxu0 0
        %2694 = vmatpush1.bf16.msra.mxu0 0
        %2695 = vmatprep.mubr.bf16.mxu0 0
        %2696 = vmatmul.mubr.bf16.gmra.mrb[0].mxu0 %v2652
        %v2697 = vpop.f32.mrb[0].mxu0
        %v2698 = vadd.f32 0.0, %v2697
        %v2699 = vpop.f32.mrb[0].mxu0
        %v2700 = vpop.f32.mrb[0].mxu0
        %v2701 = vadd.f32 0.0, %v2700
        %v2702 = vpop.f32.mrb[0].mxu0
        %2703 = vmatprep.mubr.bf16.mxu0 0
        %2704 = vmatmul.mubr.bf16.gmra.mrb[0].mxu0 %v2655
        %v2705 = vpop.f32.mrb[0].mxu0
        %v2706 = vadd.f32 0.0, %v2705
        %v2707 = vpop.f32.mrb[0].mxu0
        %v2708 = vpop.f32.mrb[0].mxu0
        %v2709 = vadd.f32 0.0, %v2708
        %v2710 = vpop.f32.mrb[0].mxu0
        %2711 = vmatprep.mubr.bf16.mxu0 0
        %2712 = vmatmul.mubr.bf16.gmra.mrb[0].mxu0 %v2658
        %v2713 = vpop.f32.mrb[0].mxu0
        %v2714 = vadd.f32 0.0, %v2713
        %v2715 = vpop.f32.mrb[0].mxu0
        %v2716 = vpop.f32.mrb[0].mxu0
        %v2717 = vadd.f32 0.0, %v2716
        %v2718 = vpop.f32.mrb[0].mxu0
        %2719 = vmatprep.mubr.bf16.mxu0 0
        %2720 = vmatmul.mubr.bf16.gmra.mrb[0].mxu0 %v2661
        %v2721 = vpop.f32.mrb[0].mxu0
        %v2722 = vadd.f32 0.0, %v2721
        %v2723 = vpop.f32.mrb[0].mxu0
        %v2724 = vpop.f32.mrb[0].mxu0
        %v2725 = vadd.f32 0.0, %v2724
        %v2726 = vpop.f32.mrb[0].mxu0
        %2727 = vdwg.mxu0
        %v2730 = vunpack.c.l.b16 %v2146
        %v2731 = vunpack.c.l.b16 %v2147
        %v2732 = vpack.c.b16 %v2731, %v2730
        %v2735 = vsel %vm606, %v2148, 0
        %v2738 = vsel %vm606, %v2149, 0
        %v2741 = vsel %vm606, %v2150, 0
        %v2744 = vsel %vm606, %v2151, 0
        %2746 = vmatprep.subr.bf16.mxu0 0
        %2747 = vmatpush1.bf16.msra.mxu0 %v2732
        %2748 = vmatprep.subr.bf16.mxu0 0
        %2749 = vmatpush1.bf16.msra.mxu0 0
        %2750 = vmatprep.subr.bf16.mxu0 0
        %2751 = vmatpush1.bf16.msra.mxu0 0
        %2752 = vmatprep.subr.bf16.mxu0 0
        %2753 = vmatpush1.bf16.msra.mxu0 0
        %2754 = vmatprep.subr.bf16.mxu0 0
        %2755 = vmatpush1.bf16.msra.mxu0 0
        %2756 = vmatprep.subr.bf16.mxu0 0
        %2757 = vmatpush1.bf16.msra.mxu0 0
        %2758 = vmatprep.subr.bf16.mxu0 0
        %2759 = vmatpush1.bf16.msra.mxu0 0
        %2760 = vmatprep.subr.bf16.mxu0 0
        %2761 = vmatpush1.bf16.msra.mxu0 0
        %2762 = vmatprep.subr.bf16.mxu0 0
        %2763 = vmatpush1.bf16.msra.mxu0 0
        %2764 = vmatprep.subr.bf16.mxu0 0
        %2765 = vmatpush1.bf16.msra.mxu0 0
        %2766 = vmatprep.subr.bf16.mxu0 0
        %2767 = vmatpush1.bf16.msra.mxu0 0
        %2768 = vmatprep.subr.bf16.mxu0 0
        %2769 = vmatpush1.bf16.msra.mxu0 0
        %2770 = vmatprep.subr.bf16.mxu0 0
        %2771 = vmatpush1.bf16.msra.mxu0 0
        %2772 = vmatprep.subr.bf16.mxu0 0
        %2773 = vmatpush1.bf16.msra.mxu0 0
        %2774 = vmatprep.subr.bf16.mxu0 0
        %2775 = vmatpush1.bf16.msra.mxu0 0
        %2776 = vmatprep.subr.bf16.mxu0 0
        %2777 = vmatpush1.bf16.msra.mxu0 0
        %2778 = vmatprep.mubr.bf16.mxu0 0
        %2779 = vmatmul.mubr.bf16.gmra.mrb[0].mxu0 %v2735
        %v2780 = vpop.f32.mrb[0].mxu0
        %v2781 = vadd.f32 %v2698, %v2780
        %v2782 = vpop.f32.mrb[0].mxu0
        %v2783 = vpop.f32.mrb[0].mxu0
        %v2784 = vadd.f32 %v2701, %v2783
        %v2785 = vpop.f32.mrb[0].mxu0
        %2786 = vmatprep.mubr.bf16.mxu0 0
        %2787 = vmatmul.mubr.bf16.gmra.mrb[0].mxu0 %v2738
        %v2788 = vpop.f32.mrb[0].mxu0
        %v2789 = vadd.f32 %v2706, %v2788
        %v2790 = vpop.f32.mrb[0].mxu0
        %v2791 = vpop.f32.mrb[0].mxu0
        %v2792 = vadd.f32 %v2709, %v2791
        %v2793 = vpop.f32.mrb[0].mxu0
        %2794 = vmatprep.mubr.bf16.mxu0 0
        %2795 = vmatmul.mubr.bf16.gmra.mrb[0].mxu0 %v2741
        %v2796 = vpop.f32.mrb[0].mxu0
        %v2797 = vadd.f32 %v2714, %v2796
        %v2798 = vpop.f32.mrb[0].mxu0
        %v2799 = vpop.f32.mrb[0].mxu0
        %v2800 = vadd.f32 %v2717, %v2799
        %v2801 = vpop.f32.mrb[0].mxu0
        %2802 = vmatprep.mubr.bf16.mxu0 0
        %2803 = vmatmul.mubr.bf16.gmra.mrb[0].mxu0 %v2744
        %v2804 = vpop.f32.mrb[0].mxu0
        %v2805 = vadd.f32 %v2722, %v2804
        %v2806 = vpop.f32.mrb[0].mxu0
        %v2807 = vpop.f32.mrb[0].mxu0
        %v2808 = vadd.f32 %v2725, %v2807
        %v2809 = vpop.f32.mrb[0].mxu0
        %2810 = vdwg.mxu0
        %v2811 = vld [vmem:[%s8 + $0x3] sm:$0x1]
        %v2812 = vlaneseq
        %v2813 = vshrl.u32 %v2812, 7
        %v2814 = vsub.s32 0, %v2813
        %v2815 = vrot.slane %v2811, %v2814
        %v2816 = vadd.f32 %v2781, %v2815
        %v2817 = vadd.f32 %v2784, %v2815
        %v2818 = vadd.f32 %v2789, %v2815
        %v2819 = vadd.f32 %v2792, %v2815
        %v2820 = vadd.f32 %v2797, %v2815
        %v2821 = vadd.f32 %v2800, %v2815
        %v2822 = vadd.f32 %v2805, %v2815
        %v2823 = vadd.f32 %v2808, %v2815
        %v2824 = vld [vmem:[%s7] sm:$0xf]
        %v2825 = vld [vmem:[%s7 + $0x4] sm:$0xf]
        %v2826 = vld [vmem:[%s7 + $0x8] sm:$0xf]
        %v2827 = vld [vmem:[%s7 + $0xc] sm:$0xf]
        %v2828 = vpack.c.bf16 %v2817, %v2816
        %v2829 = vpack.c.bf16 %v2819, %v2818
        %v2830 = vpack.c.bf16 %v2821, %v2820
        %v2831 = vpack.c.bf16 %v2823, %v2822
        %v2832 = vld [vmem:[%s8 + $0x4] sm:$0x1]
        %v2833 = vlaneseq
        %v2834 = vshrl.u32 %v2833, 7
        %v2835 = vsub.s32 0, %v2834
        %v2836 = vrot.slane %v2832, %v2835
        %v2841 = vunpack.c.l.b16 %v2824
        %v2842 = vunpack.c.l.b16 %v2825
        %v2843 = vunpack.c.l.b16 %v2826
        %v2844 = vunpack.c.l.b16 %v2827
        %v2845 = vpack.c.b16 %v2842, %v2841
        %v2846 = vpack.c.b16 %v2844, %v2843
        %v2850 = vsel %vm396, %v2828, 0
        %v2853 = vsel %vm396, %v2829, 0
        %v2856 = vsel %vm396, %v2830, 0
        %v2859 = vsel %vm396, %v2831, 0
        %2861 = vmatprep.subr.bf16.mxu0 0
        %2862 = vmatpush1.bf16.msra.mxu0 %v2845
        %2863 = vmatprep.subr.bf16.mxu0 0
        %2864 = vmatpush1.bf16.msra.mxu0 %v2846
        %2865 = vmatprep.subr.bf16.mxu0 0
        %2866 = vmatpush1.bf16.msra.mxu0 0
        %2867 = vmatprep.subr.bf16.mxu0 0
        %2868 = vmatpush1.bf16.msra.mxu0 0
        %2869 = vmatprep.subr.bf16.mxu0 0
        %2870 = vmatpush1.bf16.msra.mxu0 0
        %2871 = vmatprep.subr.bf16.mxu0 0
        %2872 = vmatpush1.bf16.msra.mxu0 0
        %2873 = vmatprep.subr.bf16.mxu0 0
        %2874 = vmatpush1.bf16.msra.mxu0 0
        %2875 = vmatprep.subr.bf16.mxu0 0
        %2876 = vmatpush1.bf16.msra.mxu0 0
        %2877 = vmatprep.subr.bf16.mxu0 0
        %2878 = vmatpush1.bf16.msra.mxu0 0
        %2879 = vmatprep.subr.bf16.mxu0 0
        %2880 = vmatpush1.bf16.msra.mxu0 0
        %2881 = vmatprep.subr.bf16.mxu0 0
        %2882 = vmatpush1.bf16.msra.mxu0 0
        %2883 = vmatprep.subr.bf16.mxu0 0
        %2884 = vmatpush1.bf16.msra.mxu0 0
        %2885 = vmatprep.subr.bf16.mxu0 0
        %2886 = vmatpush1.bf16.msra.mxu0 0
        %2887 = vmatprep.subr.bf16.mxu0 0
        %2888 = vmatpush1.bf16.msra.mxu0 0
        %2889 = vmatprep.subr.bf16.mxu0 0
        %2890 = vmatpush1.bf16.msra.mxu0 0
        %2891 = vmatprep.subr.bf16.mxu0 0
        %2892 = vmatpush1.bf16.msra.mxu0 0
        %2893 = vmatprep.mubr.bf16.mxu0 0
        %2894 = vmatmul.mubr.bf16.gmra.mrb[0].mxu0 %v2850
        %v2895 = vpop.f32.mrb[0].mxu0
        %v2896 = vadd.f32 %v2836, %v2895
        %v2897 = vpop.f32.mrb[0].mxu0
        %v2898 = vpop.f32.mrb[0].mxu0
        %v2899 = vadd.f32 %v2836, %v2898
        %v2900 = vpop.f32.mrb[0].mxu0
        %2901 = vmatprep.mubr.bf16.mxu0 0
        %2902 = vmatmul.mubr.bf16.gmra.mrb[0].mxu0 %v2853
        %v2903 = vpop.f32.mrb[0].mxu0
        %v2904 = vadd.f32 %v2836, %v2903
        %v2905 = vpop.f32.mrb[0].mxu0
        %v2906 = vpop.f32.mrb[0].mxu0
        %v2907 = vadd.f32 %v2836, %v2906
        %v2908 = vpop.f32.mrb[0].mxu0
        %2909 = vmatprep.mubr.bf16.mxu0 0
        %2910 = vmatmul.mubr.bf16.gmra.mrb[0].mxu0 %v2856
        %v2911 = vpop.f32.mrb[0].mxu0
        %v2912 = vadd.f32 %v2836, %v2911
        %v2913 = vpop.f32.mrb[0].mxu0
        %v2914 = vpop.f32.mrb[0].mxu0
        %v2915 = vadd.f32 %v2836, %v2914
        %v2916 = vpop.f32.mrb[0].mxu0
        %2917 = vmatprep.mubr.bf16.mxu0 0
        %2918 = vmatmul.mubr.bf16.gmra.mrb[0].mxu0 %v2859
        %v2919 = vpop.f32.mrb[0].mxu0
        %v2920 = vadd.f32 %v2836, %v2919
        %v2921 = vpop.f32.mrb[0].mxu0
        %v2922 = vpop.f32.mrb[0].mxu0
        %v2923 = vadd.f32 %v2836, %v2922
        %v2924 = vpop.f32.mrb[0].mxu0
        %2925 = vdwg.mxu0
        %v2926 = vld [vmem:[%s8 + $0x5] sm:$0x1]
        %v2927 = vld [vmem:[%s8 + $0x6] sm:$0x1]
        %v2928 = vsel %vm396, %v2896, 0.0
        %2929 = vadd.xlane.f32.xlu0 %v2928
        %v2930 = vpop.xlane.xlu0 %2929
        %v2931 = vsel %vm396, %v2899, 0.0
        %2932 = vadd.xlane.f32.xlu0 %v2931
        %v2933 = vpop.xlane.xlu0 %2932
        %v2934 = vsel %vm396, %v2904, 0.0
        %2935 = vadd.xlane.f32.xlu0 %v2934
        %v2936 = vpop.xlane.xlu0 %2935
        %v2937 = vsel %vm396, %v2907, 0.0
        %2938 = vadd.xlane.f32.xlu0 %v2937
        %v2939 = vpop.xlane.xlu0 %2938
        %v2940 = vsel %vm396, %v2912, 0.0
        %2941 = vadd.xlane.f32.xlu0 %v2940
        %v2942 = vpop.xlane.xlu0 %2941
        %v2943 = vsel %vm396, %v2915, 0.0
        %2944 = vadd.xlane.f32.xlu0 %v2943
        %v2945 = vpop.xlane.xlu0 %2944
        %v2946 = vsel %vm396, %v2920, 0.0
        %2947 = vadd.xlane.f32.xlu0 %v2946
        %v2948 = vpop.xlane.xlu0 %2947
        %v2949 = vsel %vm396, %v2923, 0.0
        %2950 = vadd.xlane.f32.xlu0 %v2949
        %v2951 = vpop.xlane.xlu0 %2950
        %v2952 = vmul.f32 %v2930, %v1544
        %v2953 = vmul.f32 %v2933, %v1544
        %v2954 = vmul.f32 %v2936, %v1544
        %v2955 = vmul.f32 %v2939, %v1544
        %v2956 = vmul.f32 %v2942, %v1544
        %v2957 = vmul.f32 %v2945, %v1544
        %v2958 = vmul.f32 %v2948, %v1544
        %v2959 = vmul.f32 %v2951, %v1544
        %v2960 = vsub.f32 %v2896, %v2952
        %v2961 = vsub.f32 %v2899, %v2953
        %v2962 = vsub.f32 %v2904, %v2954
        %v2963 = vsub.f32 %v2907, %v2955
        %v2964 = vsub.f32 %v2912, %v2956
        %v2965 = vsub.f32 %v2915, %v2957
        %v2966 = vsub.f32 %v2920, %v2958
        %v2967 = vsub.f32 %v2923, %v2959
        %v2968 = vmul.f32 %v2960, %v2960
        %v2969 = vmul.f32 %v2961, %v2961
        %v2970 = vmul.f32 %v2962, %v2962
        %v2971 = vmul.f32 %v2963, %v2963
        %v2972 = vmul.f32 %v2964, %v2964
        %v2973 = vmul.f32 %v2965, %v2965
        %v2974 = vmul.f32 %v2966, %v2966
        %v2975 = vmul.f32 %v2967, %v2967
        %v2976 = vsel %vm396, %v2968, 0.0
        %2977 = vadd.xlane.f32.xlu0 %v2976
        %v2978 = vpop.xlane.xlu0 %2977
        %v2979 = vsel %vm396, %v2969, 0.0
        %2980 = vadd.xlane.f32.xlu0 %v2979
        %v2981 = vpop.xlane.xlu0 %2980
        %v2982 = vsel %vm396, %v2970, 0.0
        %2983 = vadd.xlane.f32.xlu0 %v2982
        %v2984 = vpop.xlane.xlu0 %2983
        %v2985 = vsel %vm396, %v2971, 0.0
        %2986 = vadd.xlane.f32.xlu0 %v2985
        %v2987 = vpop.xlane.xlu0 %2986
        %v2988 = vsel %vm396, %v2972, 0.0
        %2989 = vadd.xlane.f32.xlu0 %v2988
        %v2990 = vpop.xlane.xlu0 %2989
        %v2991 = vsel %vm396, %v2973, 0.0
        %2992 = vadd.xlane.f32.xlu0 %v2991
        %v2993 = vpop.xlane.xlu0 %2992
        %v2994 = vsel %vm396, %v2974, 0.0
        %2995 = vadd.xlane.f32.xlu0 %v2994
        %v2996 = vpop.xlane.xlu0 %2995
        %v2997 = vsel %vm396, %v2975, 0.0
        %2998 = vadd.xlane.f32.xlu0 %v2997
        %v2999 = vpop.xlane.xlu0 %2998
        %v3000 = vmul.f32 %v2978, %v1544
        %v3001 = vmul.f32 %v2981, %v1544
        %v3002 = vmul.f32 %v2984, %v1544
        %v3003 = vmul.f32 %v2987, %v1544
        %v3004 = vmul.f32 %v2990, %v1544
        %v3005 = vmul.f32 %v2993, %v1544
        %v3006 = vmul.f32 %v2996, %v1544
        %v3007 = vmul.f32 %v2999, %v1544
        %v3008 = vadd.f32 %v3000, 1e-05
        %v3009 = vadd.f32 %v3001, 1e-05
        %v3010 = vadd.f32 %v3002, 1e-05
        %v3011 = vadd.f32 %v3003, 1e-05
        %v3012 = vadd.f32 %v3004, 1e-05
        %v3013 = vadd.f32 %v3005, 1e-05
        %v3014 = vadd.f32 %v3006, 1e-05
        %v3015 = vadd.f32 %v3007, 1e-05
        %v3016 = vrsqrt.pop %v3008
        %v3017 = vrsqrt.pop %v3009
        %v3018 = vrsqrt.pop %v3010
        %v3019 = vrsqrt.pop %v3011
        %v3020 = vrsqrt.pop %v3012
        %v3021 = vrsqrt.pop %v3013
        %v3022 = vrsqrt.pop %v3014
        %v3023 = vrsqrt.pop %v3015
        %v3024 = vmul.f32 %v2960, %v3016
        %v3025 = vmul.f32 %v2961, %v3017
        %v3026 = vmul.f32 %v2962, %v3018
        %v3027 = vmul.f32 %v2963, %v3019
        %v3028 = vmul.f32 %v2964, %v3020
        %v3029 = vmul.f32 %v2965, %v3021
        %v3030 = vmul.f32 %v2966, %v3022
        %v3031 = vmul.f32 %v2967, %v3023
        %v3032 = vlaneseq
        %v3033 = vshrl.u32 %v3032, 7
        %v3034 = vsub.s32 0, %v3033
        %v3035 = vrot.slane %v2926, %v3034
        %v3036 = vmul.f32 %v3024, %v3035
        %v3037 = vmul.f32 %v3025, %v3035
        %v3038 = vmul.f32 %v3026, %v3035
        %v3039 = vmul.f32 %v3027, %v3035
        %v3040 = vmul.f32 %v3028, %v3035
        %v3041 = vmul.f32 %v3029, %v3035
        %v3042 = vmul.f32 %v3030, %v3035
        %v3043 = vmul.f32 %v3031, %v3035
        %v3044 = vlaneseq
        %v3045 = vshrl.u32 %v3044, 7
        %v3046 = vsub.s32 0, %v3045
        %v3047 = vrot.slane %v2927, %v3046
        %v3048 = vadd.f32 %v3036, %v3047
        %v3049 = vadd.f32 %v3037, %v3047
        %v3050 = vadd.f32 %v3038, %v3047
        %v3051 = vadd.f32 %v3039, %v3047
        %v3052 = vadd.f32 %v3040, %v3047
        %v3053 = vadd.f32 %v3041, %v3047
        %v3054 = vadd.f32 %v3042, %v3047
        %v3055 = vadd.f32 %v3043, %v3047
        %v3056 = vmax.f32 %v3048, 0.0
        %v3057 = vmax.f32 %v3049, 0.0
        %v3058 = vmax.f32 %v3050, 0.0
        %v3059 = vmax.f32 %v3051, 0.0
        %v3060 = vmax.f32 %v3052, 0.0
        %v3061 = vmax.f32 %v3053, 0.0
        %v3062 = vmax.f32 %v3054, 0.0
        %v3063 = vmax.f32 %v3055, 0.0
        %v3064 = vld [vmem:[%s8 + $0x7] sm:$0x1]
        %v3065 = vld [vmem:[%s8 + $0x8] sm:$0x1]
        %v3066 = vld [vmem:[%s8 + $0x9] sm:$0x1]
        %v3067 = vpack.c.bf16 %v3064, %v3064
        %v3068 = vpack.c.bf16 %v3065, %v3065
        %v3069 = vpack.c.bf16 %v3057, %v3056
        %v3070 = vpack.c.bf16 %v3059, %v3058
        %v3071 = vpack.c.bf16 %v3061, %v3060
        %v3072 = vpack.c.bf16 %v3063, %v3062
        %v3074 = vsel %vm396, %v3068, 0
        %v3077 = vsel %vm396, %v3069, 0
        %v3080 = vsel %vm396, %v3070, 0
        %v3083 = vsel %vm396, %v3071, 0
        %v3086 = vsel %vm396, %v3072, 0
        %3088 = vmatprep.subr.bf16.mxu0 0
        %3089 = vmatpush1.bf16.xpose.msra.mxu0 %v3077
        %3090 = vmatprep.subr.bf16.mxu0 0
        %3091 = vmatpush1.bf16.xpose.msra.mxu0 %v3080
        %3092 = vmatprep.subr.bf16.mxu0 0
        %3093 = vmatpush1.bf16.xpose.msra.mxu0 %v3083
        %3094 = vmatprep.subr.bf16.mxu0 0
        %3095 = vmatpush1.bf16.xpose.msra.mxu0 %v3086
        %3096 = vmatprep.subr.bf16.mxu0 0
        %3097 = vmatpush1.bf16.xpose.msra.mxu0 0
        %3098 = vmatprep.subr.bf16.mxu0 0
        %3099 = vmatpush1.bf16.xpose.msra.mxu0 0
        %3100 = vmatprep.subr.bf16.mxu0 0
        %3101 = vmatpush1.bf16.xpose.msra.mxu0 0
        %3102 = vmatprep.subr.bf16.mxu0 0
        %3103 = vmatpush1.bf16.xpose.msra.mxu0 0
        %3104 = vmatprep.subr.bf16.mxu0 0
        %3105 = vmatpush1.bf16.xpose.msra.mxu0 0
        %3106 = vmatprep.subr.bf16.mxu0 0
        %3107 = vmatpush1.bf16.xpose.msra.mxu0 0
        %3108 = vmatprep.subr.bf16.mxu0 0
        %3109 = vmatpush1.bf16.xpose.msra.mxu0 0
        %3110 = vmatprep.subr.bf16.mxu0 0
        %3111 = vmatpush1.bf16.xpose.msra.mxu0 0
        %3112 = vmatprep.subr.bf16.mxu0 0
        %3113 = vmatpush1.bf16.xpose.msra.mxu0 0
        %3114 = vmatprep.subr.bf16.mxu0 0
        %3115 = vmatpush1.bf16.xpose.msra.mxu0 0
        %3116 = vmatprep.subr.bf16.mxu0 0
        %3117 = vmatpush1.bf16.xpose.msra.mxu0 0
        %3118 = vmatprep.subr.bf16.mxu0 0
        %3119 = vmatpush1.bf16.xpose.msra.mxu0 0
        %3120 = vmatprep.mubr.bf16.mxu0 0
        %3121 = vmatmul.mubr.bf16.gmra.mrb[0].mxu0 %v3074
        %v3122 = vpop.f32.mrb[0].mxu0
        %v3123 = vadd.f32 0.0, %v3122
        %v3124 = vpop.f32.mrb[0].mxu0
        %v3125 = vpop.f32.mrb[0].mxu0
        %v3126 = vpop.f32.mrb[0].mxu0
        %3127 = vdwg.mxu0
        %v3129 = vsel %vm396, %v3067, 0
        %3131 = vmatprep.subr.bf16.mxu0 0
        %3132 = vmatpush1.bf16.xpose.msra.mxu0 %v2850
        %3133 = vmatprep.subr.bf16.mxu0 0
        %3134 = vmatpush1.bf16.xpose.msra.mxu0 %v2853
        %3135 = vmatprep.subr.bf16.mxu0 0
        %3136 = vmatpush1.bf16.xpose.msra.mxu0 %v2856
        %3137 = vmatprep.subr.bf16.mxu0 0
        %3138 = vmatpush1.bf16.xpose.msra.mxu0 %v2859
        %3139 = vmatprep.subr.bf16.mxu0 0
        %3140 = vmatpush1.bf16.xpose.msra.mxu0 0
        %3141 = vmatprep.subr.bf16.mxu0 0
        %3142 = vmatpush1.bf16.xpose.msra.mxu0 0
        %3143 = vmatprep.subr.bf16.mxu0 0
        %3144 = vmatpush1.bf16.xpose.msra.mxu0 0
        %3145 = vmatprep.subr.bf16.mxu0 0
        %3146 = vmatpush1.bf16.xpose.msra.mxu0 0
        %3147 = vmatprep.subr.bf16.mxu0 0
        %3148 = vmatpush1.bf16.xpose.msra.mxu0 0
        %3149 = vmatprep.subr.bf16.mxu0 0
        %3150 = vmatpush1.bf16.xpose.msra.mxu0 0
        %3151 = vmatprep.subr.bf16.mxu0 0
        %3152 = vmatpush1.bf16.xpose.msra.mxu0 0
        %3153 = vmatprep.subr.bf16.mxu0 0
        %3154 = vmatpush1.bf16.xpose.msra.mxu0 0
        %3155 = vmatprep.subr.bf16.mxu0 0
        %3156 = vmatpush1.bf16.xpose.msra.mxu0 0
        %3157 = vmatprep.subr.bf16.mxu0 0
        %3158 = vmatpush1.bf16.xpose.msra.mxu0 0
        %3159 = vmatprep.subr.bf16.mxu0 0
        %3160 = vmatpush1.bf16.xpose.msra.mxu0 0
        %3161 = vmatprep.subr.bf16.mxu0 0
        %3162 = vmatpush1.bf16.xpose.msra.mxu0 0
        %3163 = vmatprep.mubr.bf16.mxu0 0
        %3164 = vmatmul.mubr.bf16.gmra.mrb[0].mxu0 %v3129
        %v3165 = vpop.f32.mrb[0].mxu0
        %v3166 = vadd.f32 %v3123, %v3165
        %v3167 = vpop.f32.mrb[0].mxu0
        %v3168 = vpop.f32.mrb[0].mxu0
        %v3169 = vpop.f32.mrb[0].mxu0
        %3170 = vdwg.mxu0
        %3172 = vset.pattern.permute.xlu0 0
        %3173 = vperm.xlu0 %3172, %v3066
        %v3174 = vpop.permute.xlu0 %3173
        %v3176 = vadd.f32 %v3166, %v3174
        %vm3177 = vcmask 516096
        %v3178 = vsel %vm3177, %v3176, -inf
        %3179 = vmax.xlane.f32.xlu0 %v3178
        %v3180 = vpop.xlane.xlu0 %3179
        %v3181 = vsub.f32 %v3176, %v3180
        %v3182 = vmul.f32 %v3181, 1.442695
        %v3183 = vpow.pop %v3182
        %v3184 = vsel %vm3177, %v3183, 0.0
        %3185 = vadd.xlane.f32.xlu0 %v3184
        %v3186 = vpop.xlane.xlu0 %3185
        %v3187 = vlog2.pop %v3186
        %v3188 = vmul.f32 %v3187, 0.6931472
        %v3189 = vadd.f32 %v3188, %v3180
        %v3190 = vsub.f32 %v3176, %v3189
        %3191 = vst.msk [vmem:[%s348] sm:$0x1] %vm3177, %v3190
        %s3192 = sand.u32 %s235, 1
        %s3193 = scalar_lea.sflag [#allocation3], %s3192
        %s3194 = sand.u32 %s235, 1
        %s3195 = scalar_lea.vmem [#allocation2], %s3194
        // Predicated region
        $region57: #{tpu_custom_call.1} parent=55 // pred_check
          %p3196 = pneg %p245
        $region58: #{tpu_custom_call.1} parent=55 // pred_check_branch
          %3198 = sbr.rel (%p3196) target = $region60
        $region59: #{tpu_custom_call.1} parent=55 // pred_region
          %s3200 = ssub.s32 16, 16
          %3201 = vsyncadd %s3193, %s3200
          %s3202 = smul.addr %s23, 16
          %s3203 = scalar_lea.hbm %s9, %s3202
          %s3205 = sshll.u32 %s3195, 4
          %s3206 = int_to_ptr.vmem [resolvable:$true] %s3205
          %3208 = dma.vmem_to_hbm [thread:$0]  %s3206, 16, %s3203, %s3193
        $region60: #{tpu_custom_call.1} parent=55 // pred_fallthru
          _
      $region56: #{tpu_custom_call.1} parent=5 // pred_fallthru
        _
      %p3209 = scmp.le.s32.totalorder 2, %s18
      // Predicated region
      $region61: #{tpu_custom_call.1} parent=5 // pred_check
        %p3210 = pneg %p3209
      $region62: #{tpu_custom_call.1} parent=5 // pred_check_branch
        %3212 = sbr.rel (%p3210) target = $region64
      $region63: #{tpu_custom_call.1} parent=5 // pred_region
        %s3213 = ssub.s32 %s18, 2
        // Predicated region
        $region65: #{tpu_custom_call.1} parent=63 // pred_check
          %p3214 = pneg %p251
        $region66: #{tpu_custom_call.1} parent=63 // pred_check_branch
          %3216 = sbr.rel (%p3214) target = $region68
        $region67: #{tpu_custom_call.1} parent=63 // pred_region
          %s3217 = sand.u32 %s236, 1
          %s3218 = scalar_lea.sflag [#allocation3], %s3217
          %s3219 = sand.u32 %s236, 1
          %s3220 = scalar_lea.vmem [#allocation2], %s3219
          %3221 = dma.done %s3218, 16
        $region68: #{tpu_custom_call.1} parent=63 // pred_fallthru
          _
      $region64: #{tpu_custom_call.1} parent=5 // pred_fallthru
        _
    $region6: #{tpu_custom_call.1} parent=1 // loop_footer
      %s22 = sadd.s32 1, %s18
    $region7: #{tpu_custom_call.1} parent=1 // loop_footer_branch
      %17 = sbr.rel target = $region3
    $region8: #{tpu_custom_call.1} parent=1 // loop_exit
      _
    %3222 = vsyncpa [#allocation3], 1
    %s3223 = scalar_lea.sflag [#allocation3], 1
    %3224 = vsyncpa %s3223, 1

</llo_original>
